<compile_context>
chip_gen: v7x
topology: tpu7x:2x2x1
jax: 0.10.0
libtpu: 0.0.40
codegen_flags: <defaults>
</compile_context>

<pallas_src>
import jax
import jax.numpy as jnp
from jax.experimental import pallas as pl
from jax.experimental.pallas import tpu as pltpu


# ----------------------------------------------------------------------------
# Fused Pallas kernel (whole forward pass, grid-less, everything VMEM resident)
# ----------------------------------------------------------------------------
def _make_fused_kernel(T, B, H, num_layers):
    """Builds kernel(x, (wih,whh,b)*L, fc_w, fc_b, out, seq_scratch*L)."""
    n_in = 3 + 3 * num_layers  # x + 3 per layer + fc_w + fc_b

    def kernel(*refs):
        x_ref = refs[0]
        fc_w_ref = refs[n_in - 2]
        fc_b_ref = refs[n_in - 1]
        out_ref = refs[n_in]
        seq_refs = refs[n_in + 1:]

        # Layer input, time-major and flattened: row t*B + b == x[t, b].
        cur = x_ref[...]                                   # (T*B, Din)

        for layer in range(num_layers):
            wih_ref = refs[1 + 3 * layer]                  # (Din, 8H) = [Wih_f | Wih_b]
            whh_ref = refs[2 + 3 * layer]                  # (2H, 8H) block-diag(Whh_f, Whh_b)
            b_ref = refs[3 + 3 * layer]                    # (1, 8H)  = [b_f | b_b]
            seq_ref = seq_refs[layer]                      # (T*B, 2H) layer output sequence

            # Input projection for ALL timesteps & both directions: one MXU matmul,
            # bias folded in once (off the recurrent critical path).
            gx = (jnp.dot(cur, wih_ref[...], preferred_element_type=jnp.float32)
                  + b_ref[...])                            # (T*B, 8H)
            whh = whh_ref[...]                             # (2H, 8H)

            h = jnp.zeros((B, 2 * H), jnp.float32)         # [h_fwd | h_bwd]
            c = jnp.zeros((B, 2 * H), jnp.float32)         # [c_fwd | c_bwd]

            # Fully-unrolled recurrence; one (B,2H)x(2H,8H) MXU push per step covers
            # both directions (fwd consumes time s, bwd consumes time T-1-s).
            for s in range(T):
                gh = jnp.dot(h, whh, preferred_element_type=jnp.float32)   # (B, 8H)
                gx_f = gx[s * B:(s + 1) * B, :4 * H]                       # fwd gates_x(t=s)
                gx_b = gx[(T - 1 - s) * B:(T - s) * B, 4 * H:]             # bwd gates_x(t=T-1-s)
                gates = jnp.concatenate([gx_f, gx_b], axis=1) + gh         # (B, 8H)

                # One sigmoid pass over the full gates block; tanh only on g slices.
                sg = jax.nn.sigmoid(gates)
                g_g = jnp.tanh(jnp.concatenate(
                    [gates[:, 2 * H:3 * H], gates[:, 6 * H:7 * H]], axis=1))   # (B, 2H)
                i_g = jnp.concatenate([sg[:, 0:H],         sg[:, 4 * H:5 * H]], axis=1)
                f_g = jnp.concatenate([sg[:, H:2 * H],     sg[:, 5 * H:6 * H]], axis=1)
                o_g = jnp.concatenate([sg[:, 3 * H:4 * H], sg[:, 7 * H:8 * H]], axis=1)

                c = f_g * c + i_g * g_g
                h = o_g * jnp.tanh(c)

                # Scatter outputs: fwd hidden belongs to time s, bwd hidden to time T-1-s.
                seq_ref[s * B:(s + 1) * B, 0:H] = h[:, 0:H]
                seq_ref[(T - 1 - s) * B:(T - s) * B, H:2 * H] = h[:, H:2 * H]

            cur = seq_ref[...]                             # (T*B, 2H) -> next layer input

        # out[:, -1, :] == [h_fwd(T-1) | h_bwd(T-1)] of the last layer.
        last = cur[(T - 1) * B:T * B, :]                   # (B, 2H)
        # TODO(synk): dropout is identity here (inference / eval semantics).
        out_ref[...] = (jnp.dot(last, fc_w_ref[...], preferred_element_type=jnp.float32)
                        + fc_b_ref[...])

    return kernel


# ----------------------------------------------------------------------------
# Wrapper: fuse per-direction params into combined tensors and call the kernel
# ----------------------------------------------------------------------------
@jax.jit
def fall_detection_rnn_forward(x, params):
    """x: (B, T, input_size) batch_first, like PyTorch. Returns (B, num_classes)."""
    B, T, Din = x.shape
    H = params["lstm"][0]["fwd"][1].shape[0]               # Whh is (H, 4H)
    num_layers = len(params["lstm"])
    C = params["fc_w"].shape[1]

    # Time-major, flattened: row t*B + b == x[b, t].
    x_flat = jnp.transpose(x, (1, 0, 2)).astype(jnp.float32).reshape(T * B, Din)

    fused_inputs = [x_flat]
    in_specs = [pl.BlockSpec((T * B, Din), lambda: (0, 0))]

    for layer in params["lstm"]:
        wih_f, whh_f, b_f = layer["fwd"]
        wih_b, whh_b, b_b = layer["bwd"]
        din = wih_f.shape[0]
        wih_cat = jnp.concatenate([wih_f, wih_b], axis=1)                  # (din, 8H)
        z = jnp.zeros((H, 4 * H), jnp.float32)
        whh_blk = jnp.concatenate(
            [jnp.concatenate([whh_f, z], axis=1),
             jnp.concatenate([z, whh_b], axis=1)], axis=0)                 # (2H, 8H)
        b_cat = jnp.concatenate([b_f, b_b], axis=1)                        # (1, 8H)
        fused_inputs += [wih_cat, whh_blk, b_cat]
        in_specs += [pl.BlockSpec((din, 8 * H), lambda: (0, 0)),
                     pl.BlockSpec((2 * H, 8 * H), lambda: (0, 0)),
                     pl.BlockSpec((1, 8 * H), lambda: (0, 0))]

    fused_inputs += [params["fc_w"], params["fc_b"]]
    in_specs += [pl.BlockSpec((2 * H, C), lambda: (0, 0)),
                 pl.BlockSpec((1, C), lambda: (0, 0))]

    kernel = _make_fused_kernel(T, B, H, num_layers)
    return pl.pallas_call(
        kernel,
        out_shape=jax.ShapeDtypeStruct((B, C), jnp.float32),
        in_specs=in_specs,
        out_specs=pl.BlockSpec((B, C), lambda: (0, 0)),
        scratch_shapes=[pltpu.VMEM((T * B, 2 * H), jnp.float32)
                        for _ in range(num_layers)],
    )(*fused_inputs)


# ----------------------------------------------------------------------------
# Deterministic parameter init (PyTorch-like shapes; uniform(-1/sqrt(H), +))
# ----------------------------------------------------------------------------
def init_params(key, input_size, hidden_size, num_layers, num_classes,
                bidirectional=True):
    num_dirs = 2 if bidirectional else 1
    stdv = 1.0 / jnp.sqrt(hidden_size)
    params = {"lstm": []}
    for layer in range(num_layers):
        din = input_size if layer == 0 else hidden_size * num_dirs
        layer_p = {}
        for dname in (("fwd", "bwd") if bidirectional else ("fwd",)):
            key, k1, k2, k3, k4 = jax.random.split(key, 5)
            wih = jax.random.uniform(k1, (din, 4 * hidden_size),
                                     jnp.float32, -stdv, stdv)
            whh = jax.random.uniform(k2, (hidden_size, 4 * hidden_size),
                                     jnp.float32, -stdv, stdv)
            b_ih = jax.random.uniform(k3, (4 * hidden_size,), jnp.float32, -stdv, stdv)
            b_hh = jax.random.uniform(k4, (4 * hidden_size,), jnp.float32, -stdv, stdv)
            layer_p[dname] = (wih, whh, (b_ih + b_hh)[None, :])
        params["lstm"].append(layer_p)
    key, k1, k2 = jax.random.split(key, 3)
    fin = hidden_size * num_dirs
    fstd = 1.0 / jnp.sqrt(fin)
    params["fc_w"] = jax.random.uniform(k1, (fin, num_classes), jnp.float32, -fstd, fstd)
    params["fc_b"] = jax.random.uniform(k2, (1, num_classes), jnp.float32, -fstd, fstd)
    return params


# ----------------------------------------------------------------------------
# Pure-JAX reference (lax.scan) for correctness check
# ----------------------------------------------------------------------------
def _ref_lstm_layer(x_tm, wih, whh, b):
    H = whh.shape[0]

    def step(carry, x_t):
        h, c = carry
        g = x_t @ wih + h @ whh + b[0]
        i = jax.nn.sigmoid(g[:, 0 * H:1 * H])
        f = jax.nn.sigmoid(g[:, 1 * H:2 * H])
        gg = jnp.tanh(g[:, 2 * H:3 * H])
        o = jax.nn.sigmoid(g[:, 3 * H:4 * H])
        c = f * c + i * gg
        h = o * jnp.tanh(c)
        return (h, c), h

    B = x_tm.shape[1]
    init = (jnp.zeros((B, H), jnp.float32), jnp.zeros((B, H), jnp.float32))
    _, hs = jax.lax.scan(step, init, x_tm)
    return hs


def reference_forward(x, params):
    seq = jnp.transpose(x, (1, 0, 2)).astype(jnp.float32)
    for layer in params["lstm"]:
        fwd = _ref_lstm_layer(seq, *layer["fwd"])
        bwd = _ref_lstm_layer(seq[::-1], *layer["bwd"])[::-1]
        seq = jnp.concatenate([fwd, bwd], axis=-1)
    return seq[-1] @ params["fc_w"] + params["fc_b"]


# ----------------------------------------------------------------------------
if __name__ == "__main__":
    # Small shapes consistent with the module's forward:
    batch, seq_len, input_size = 2, 8, 16
    hidden_size, num_layers, num_classes = 32, 2, 3

    key = jax.random.PRNGKey(0)
    key, xkey = jax.random.split(key)
    x = jax.random.normal(xkey, (batch, seq_len, input_size), jnp.float32)

    params = init_params(key, input_size, hidden_size, num_layers, num_classes,
                         bidirectional=True)

    out = fall_detection_rnn_forward(x, params)
    out = jax.block_until_ready(out)

    ref = reference_forward(x, params)
    assert out.shape == (batch, num_classes)
    assert jnp.allclose(out, ref, atol=1e-4, rtol=1e-4), (out, ref)

    print("KERNEL_OK")
</pallas_src>

<mosaic_0001>
module attributes {stable_mosaic.version = 11 : i64} {
  func.func @kernel(%arg0: memref<16x16xf32, #tpu.memory_space<vmem>>, %arg1: memref<16x256xf32, #tpu.memory_space<vmem>>, %arg2: memref<64x256xf32, #tpu.memory_space<vmem>>, %arg3: memref<1x256xf32, #tpu.memory_space<vmem>>, %arg4: memref<64x256xf32, #tpu.memory_space<vmem>>, %arg5: memref<64x256xf32, #tpu.memory_space<vmem>>, %arg6: memref<1x256xf32, #tpu.memory_space<vmem>>, %arg7: memref<64x3xf32, #tpu.memory_space<vmem>>, %arg8: memref<1x3xf32, #tpu.memory_space<vmem>>, %arg9: memref<2x3xf32, #tpu.memory_space<vmem>>, %arg10: memref<16x64xf32, #tpu.memory_space<vmem>>, %arg11: memref<16x64xf32, #tpu.memory_space<vmem>>) attributes {dimension_semantics = [], scalar_prefetch = 0 : i64, scratch_operands = 2 : i64, tpu.core_type = #tpu.core_type<tc>} {
    %c0 = arith.constant 0 : index
    %c0_0 = arith.constant 0 : index
    %0 = vector.load %arg0[%c0, %c0_0] : memref<16x16xf32, #tpu.memory_space<vmem>>, vector<16x16xf32>
    %c0_1 = arith.constant 0 : index
    %c0_2 = arith.constant 0 : index
    %1 = vector.load %arg1[%c0_1, %c0_2] : memref<16x256xf32, #tpu.memory_space<vmem>>, vector<16x256xf32>
    %cst = arith.constant dense<0.000000e+00> : vector<16x256xf32>
    %2 = tpu.matmul %0, %1, %cst {dimension_numbers = #tpu.dot_dimension_numbers<[1], [0], [0], [1], [0, 0, 1, 1], [], []>} : vector<16x16xf32>, vector<16x256xf32>, vector<16x256xf32> -> vector<16x256xf32>
    %c0_3 = arith.constant 0 : index
    %c0_4 = arith.constant 0 : index
    %3 = vector.load %arg3[%c0_3, %c0_4] : memref<1x256xf32, #tpu.memory_space<vmem>>, vector<1x256xf32>
    %4 = vector.broadcast %3 : vector<1x256xf32> to vector<16x256xf32>
    %5 = arith.addf %2, %4 : vector<16x256xf32>
    %c0_5 = arith.constant 0 : index
    %c0_6 = arith.constant 0 : index
    %6 = vector.load %arg2[%c0_5, %c0_6] : memref<64x256xf32, #tpu.memory_space<vmem>>, vector<64x256xf32>
    %cst_7 = arith.constant 0.000000e+00 : f32
    %7 = vector.broadcast %cst_7 : f32 to vector<2x64xf32>
    %cst_8 = arith.constant 0.000000e+00 : f32
    %8 = vector.broadcast %cst_8 : f32 to vector<2x64xf32>
    %cst_9 = arith.constant dense<0.000000e+00> : vector<2x256xf32>
    %9 = tpu.matmul %7, %6, %cst_9 {dimension_numbers = #tpu.dot_dimension_numbers<[1], [0], [0], [1], [0, 0, 1, 1], [], []>} : vector<2x64xf32>, vector<64x256xf32>, vector<2x256xf32> -> vector<2x256xf32>
    %10 = vector.extract_strided_slice %5 {offsets = [0, 0], sizes = [2, 128], strides = [1, 1]} : vector<16x256xf32> to vector<2x128xf32>
    %11 = vector.extract_strided_slice %5 {offsets = [14, 128], sizes = [2, 128], strides = [1, 1]} : vector<16x256xf32> to vector<2x128xf32>
    %12 = tpu.concatenate %10, %11 in 1 : vector<2x128xf32>, vector<2x128xf32> -> vector<2x256xf32>
    %13 = arith.addf %12, %9 : vector<2x256xf32>
    %14 = arith.negf %13 : vector<2x256xf32>
    %15 = math.exp %14 : vector<2x256xf32>
    %cst_10 = arith.constant 1.000000e+00 : f32
    %16 = vector.broadcast %cst_10 : f32 to vector<2x256xf32>
    %17 = arith.addf %16, %15 : vector<2x256xf32>
    %18 = arith.divf %16, %17 : vector<2x256xf32>
    %19 = vector.extract_strided_slice %13 {offsets = [0, 64], sizes = [2, 32], strides = [1, 1]} : vector<2x256xf32> to vector<2x32xf32>
    %20 = vector.extract_strided_slice %13 {offsets = [0, 192], sizes = [2, 32], strides = [1, 1]} : vector<2x256xf32> to vector<2x32xf32>
    %21 = tpu.concatenate %19, %20 in 1 : vector<2x32xf32>, vector<2x32xf32> -> vector<2x64xf32>
    %22 = math.tanh %21 : vector<2x64xf32>
    %23 = vector.extract_strided_slice %18 {offsets = [0, 0], sizes = [2, 32], strides = [1, 1]} : vector<2x256xf32> to vector<2x32xf32>
    %24 = vector.extract_strided_slice %18 {offsets = [0, 128], sizes = [2, 32], strides = [1, 1]} : vector<2x256xf32> to vector<2x32xf32>
    %25 = tpu.concatenate %23, %24 in 1 : vector<2x32xf32>, vector<2x32xf32> -> vector<2x64xf32>
    %26 = vector.extract_strided_slice %18 {offsets = [0, 32], sizes = [2, 32], strides = [1, 1]} : vector<2x256xf32> to vector<2x32xf32>
    %27 = vector.extract_strided_slice %18 {offsets = [0, 160], sizes = [2, 32], strides = [1, 1]} : vector<2x256xf32> to vector<2x32xf32>
    %28 = tpu.concatenate %26, %27 in 1 : vector<2x32xf32>, vector<2x32xf32> -> vector<2x64xf32>
    %29 = vector.extract_strided_slice %18 {offsets = [0, 96], sizes = [2, 32], strides = [1, 1]} : vector<2x256xf32> to vector<2x32xf32>
    %30 = vector.extract_strided_slice %18 {offsets = [0, 224], sizes = [2, 32], strides = [1, 1]} : vector<2x256xf32> to vector<2x32xf32>
    %31 = tpu.concatenate %29, %30 in 1 : vector<2x32xf32>, vector<2x32xf32> -> vector<2x64xf32>
    %32 = arith.mulf %28, %8 : vector<2x64xf32>
    %33 = arith.mulf %25, %22 : vector<2x64xf32>
    %34 = arith.addf %32, %33 : vector<2x64xf32>
    %35 = math.tanh %34 : vector<2x64xf32>
    %36 = arith.mulf %31, %35 : vector<2x64xf32>
    %37 = vector.extract_strided_slice %36 {offsets = [0, 0], sizes = [2, 32], strides = [1, 1]} : vector<2x64xf32> to vector<2x32xf32>
    %c0_11 = arith.constant 0 : index
    %c0_12 = arith.constant 0 : index
    %38 = vector.load %arg10[%c0_11, %c0_12] : memref<16x64xf32, #tpu.memory_space<vmem>>, vector<2x32xf32>
    tpu.vector_store %arg10[%c0_11, %c0_12], %37 {strides = array<i32>} : memref<16x64xf32, #tpu.memory_space<vmem>>, vector<2x32xf32>,
    %39 = vector.extract_strided_slice %36 {offsets = [0, 32], sizes = [2, 32], strides = [1, 1]} : vector<2x64xf32> to vector<2x32xf32>
    %c14 = arith.constant 14 : index
    %c32 = arith.constant 32 : index
    %40 = vector.load %arg10[%c14, %c32] : memref<16x64xf32, #tpu.memory_space<vmem>>, vector<2x32xf32>
    tpu.vector_store %arg10[%c14, %c32], %39 {strides = array<i32>} : memref<16x64xf32, #tpu.memory_space<vmem>>, vector<2x32xf32>,
    %cst_13 = arith.constant dense<0.000000e+00> : vector<2x256xf32>
    %41 = tpu.matmul %36, %6, %cst_13 {dimension_numbers = #tpu.dot_dimension_numbers<[1], [0], [0], [1], [0, 0, 1, 1], [], []>} : vector<2x64xf32>, vector<64x256xf32>, vector<2x256xf32> -> vector<2x256xf32>
    %42 = vector.extract_strided_slice %5 {offsets = [2, 0], sizes = [2, 128], strides = [1, 1]} : vector<16x256xf32> to vector<2x128xf32>
    %43 = vector.extract_strided_slice %5 {offsets = [12, 128], sizes = [2, 128], strides = [1, 1]} : vector<16x256xf32> to vector<2x128xf32>
    %44 = tpu.concatenate %42, %43 in 1 : vector<2x128xf32>, vector<2x128xf32> -> vector<2x256xf32>
    %45 = arith.addf %44, %41 : vector<2x256xf32>
    %46 = arith.negf %45 : vector<2x256xf32>
    %47 = math.exp %46 : vector<2x256xf32>
    %cst_14 = arith.constant 1.000000e+00 : f32
    %48 = vector.broadcast %cst_14 : f32 to vector<2x256xf32>
    %49 = arith.addf %48, %47 : vector<2x256xf32>
    %50 = arith.divf %48, %49 : vector<2x256xf32>
    %51 = vector.extract_strided_slice %45 {offsets = [0, 64], sizes = [2, 32], strides = [1, 1]} : vector<2x256xf32> to vector<2x32xf32>
    %52 = vector.extract_strided_slice %45 {offsets = [0, 192], sizes = [2, 32], strides = [1, 1]} : vector<2x256xf32> to vector<2x32xf32>
    %53 = tpu.concatenate %51, %52 in 1 : vector<2x32xf32>, vector<2x32xf32> -> vector<2x64xf32>
    %54 = math.tanh %53 : vector<2x64xf32>
    %55 = vector.extract_strided_slice %50 {offsets = [0, 0], sizes = [2, 32], strides = [1, 1]} : vector<2x256xf32> to vector<2x32xf32>
    %56 = vector.extract_strided_slice %50 {offsets = [0, 128], sizes = [2, 32], strides = [1, 1]} : vector<2x256xf32> to vector<2x32xf32>
    %57 = tpu.concatenate %55, %56 in 1 : vector<2x32xf32>, vector<2x32xf32> -> vector<2x64xf32>
    %58 = vector.extract_strided_slice %50 {offsets = [0, 32], sizes = [2, 32], strides = [1, 1]} : vector<2x256xf32> to vector<2x32xf32>
    %59 = vector.extract_strided_slice %50 {offsets = [0, 160], sizes = [2, 32], strides = [1, 1]} : vector<2x256xf32> to vector<2x32xf32>
    %60 = tpu.concatenate %58, %59 in 1 : vector<2x32xf32>, vector<2x32xf32> -> vector<2x64xf32>
    %61 = vector.extract_strided_slice %50 {offsets = [0, 96], sizes = [2, 32], strides = [1, 1]} : vector<2x256xf32> to vector<2x32xf32>
    %62 = vector.extract_strided_slice %50 {offsets = [0, 224], sizes = [2, 32], strides = [1, 1]} : vector<2x256xf32> to vector<2x32xf32>
    %63 = tpu.concatenate %61, %62 in 1 : vector<2x32xf32>, vector<2x32xf32> -> vector<2x64xf32>
    %64 = arith.mulf %60, %34 : vector<2x64xf32>
    %65 = arith.mulf %57, %54 : vector<2x64xf32>
    %66 = arith.addf %64, %65 : vector<2x64xf32>
    %67 = math.tanh %66 : vector<2x64xf32>
    %68 = arith.mulf %63, %67 : vector<2x64xf32>
    %69 = vector.extract_strided_slice %68 {offsets = [0, 0], sizes = [2, 32], strides = [1, 1]} : vector<2x64xf32> to vector<2x32xf32>
    %c2 = arith.constant 2 : index
    %c0_15 = arith.constant 0 : index
    %70 = vector.load %arg10[%c2, %c0_15] : memref<16x64xf32, #tpu.memory_space<vmem>>, vector<2x32xf32>
    tpu.vector_store %arg10[%c2, %c0_15], %69 {strides = array<i32>} : memref<16x64xf32, #tpu.memory_space<vmem>>, vector<2x32xf32>,
    %71 = vector.extract_strided_slice %68 {offsets = [0, 32], sizes = [2, 32], strides = [1, 1]} : vector<2x64xf32> to vector<2x32xf32>
    %c12 = arith.constant 12 : index
    %c32_16 = arith.constant 32 : index
    %72 = vector.load %arg10[%c12, %c32_16] : memref<16x64xf32, #tpu.memory_space<vmem>>, vector<2x32xf32>
    tpu.vector_store %arg10[%c12, %c32_16], %71 {strides = array<i32>} : memref<16x64xf32, #tpu.memory_space<vmem>>, vector<2x32xf32>,
    %cst_17 = arith.constant dense<0.000000e+00> : vector<2x256xf32>
    %73 = tpu.matmul %68, %6, %cst_17 {dimension_numbers = #tpu.dot_dimension_numbers<[1], [0], [0], [1], [0, 0, 1, 1], [], []>} : vector<2x64xf32>, vector<64x256xf32>, vector<2x256xf32> -> vector<2x256xf32>
    %74 = vector.extract_strided_slice %5 {offsets = [4, 0], sizes = [2, 128], strides = [1, 1]} : vector<16x256xf32> to vector<2x128xf32>
    %75 = vector.extract_strided_slice %5 {offsets = [10, 128], sizes = [2, 128], strides = [1, 1]} : vector<16x256xf32> to vector<2x128xf32>
    %76 = tpu.concatenate %74, %75 in 1 : vector<2x128xf32>, vector<2x128xf32> -> vector<2x256xf32>
    %77 = arith.addf %76, %73 : vector<2x256xf32>
    %78 = arith.negf %77 : vector<2x256xf32>
    %79 = math.exp %78 : vector<2x256xf32>
    %cst_18 = arith.constant 1.000000e+00 : f32
    %80 = vector.broadcast %cst_18 : f32 to vector<2x256xf32>
    %81 = arith.addf %80, %79 : vector<2x256xf32>
    %82 = arith.divf %80, %81 : vector<2x256xf32>
    %83 = vector.extract_strided_slice %77 {offsets = [0, 64], sizes = [2, 32], strides = [1, 1]} : vector<2x256xf32> to vector<2x32xf32>
    %84 = vector.extract_strided_slice %77 {offsets = [0, 192], sizes = [2, 32], strides = [1, 1]} : vector<2x256xf32> to vector<2x32xf32>
    %85 = tpu.concatenate %83, %84 in 1 : vector<2x32xf32>, vector<2x32xf32> -> vector<2x64xf32>
    %86 = math.tanh %85 : vector<2x64xf32>
    %87 = vector.extract_strided_slice %82 {offsets = [0, 0], sizes = [2, 32], strides = [1, 1]} : vector<2x256xf32> to vector<2x32xf32>
    %88 = vector.extract_strided_slice %82 {offsets = [0, 128], sizes = [2, 32], strides = [1, 1]} : vector<2x256xf32> to vector<2x32xf32>
    %89 = tpu.concatenate %87, %88 in 1 : vector<2x32xf32>, vector<2x32xf32> -> vector<2x64xf32>
    %90 = vector.extract_strided_slice %82 {offsets = [0, 32], sizes = [2, 32], strides = [1, 1]} : vector<2x256xf32> to vector<2x32xf32>
    %91 = vector.extract_strided_slice %82 {offsets = [0, 160], sizes = [2, 32], strides = [1, 1]} : vector<2x256xf32> to vector<2x32xf32>
    %92 = tpu.concatenate %90, %91 in 1 : vector<2x32xf32>, vector<2x32xf32> -> vector<2x64xf32>
    %93 = vector.extract_strided_slice %82 {offsets = [0, 96], sizes = [2, 32], strides = [1, 1]} : vector<2x256xf32> to vector<2x32xf32>
    %94 = vector.extract_strided_slice %82 {offsets = [0, 224], sizes = [2, 32], strides = [1, 1]} : vector<2x256xf32> to vector<2x32xf32>
    %95 = tpu.concatenate %93, %94 in 1 : vector<2x32xf32>, vector<2x32xf32> -> vector<2x64xf32>
    %96 = arith.mulf %92, %66 : vector<2x64xf32>
    %97 = arith.mulf %89, %86 : vector<2x64xf32>
    %98 = arith.addf %96, %97 : vector<2x64xf32>
    %99 = math.tanh %98 : vector<2x64xf32>
    %100 = arith.mulf %95, %99 : vector<2x64xf32>
    %101 = vector.extract_strided_slice %100 {offsets = [0, 0], sizes = [2, 32], strides = [1, 1]} : vector<2x64xf32> to vector<2x32xf32>
    %c4 = arith.constant 4 : index
    %c0_19 = arith.constant 0 : index
    %102 = vector.load %arg10[%c4, %c0_19] : memref<16x64xf32, #tpu.memory_space<vmem>>, vector<2x32xf32>
    tpu.vector_store %arg10[%c4, %c0_19], %101 {strides = array<i32>} : memref<16x64xf32, #tpu.memory_space<vmem>>, vector<2x32xf32>,
    %103 = vector.extract_strided_slice %100 {offsets = [0, 32], sizes = [2, 32], strides = [1, 1]} : vector<2x64xf32> to vector<2x32xf32>
    %c10 = arith.constant 10 : index
    %c32_20 = arith.constant 32 : index
    %104 = vector.load %arg10[%c10, %c32_20] : memref<16x64xf32, #tpu.memory_space<vmem>>, vector<2x32xf32>
    tpu.vector_store %arg10[%c10, %c32_20], %103 {strides = array<i32>} : memref<16x64xf32, #tpu.memory_space<vmem>>, vector<2x32xf32>,
    %cst_21 = arith.constant dense<0.000000e+00> : vector<2x256xf32>
    %105 = tpu.matmul %100, %6, %cst_21 {dimension_numbers = #tpu.dot_dimension_numbers<[1], [0], [0], [1], [0, 0, 1, 1], [], []>} : vector<2x64xf32>, vector<64x256xf32>, vector<2x256xf32> -> vector<2x256xf32>
    %106 = vector.extract_strided_slice %5 {offsets = [6, 0], sizes = [2, 128], strides = [1, 1]} : vector<16x256xf32> to vector<2x128xf32>
    %107 = vector.extract_strided_slice %5 {offsets = [8, 128], sizes = [2, 128], strides = [1, 1]} : vector<16x256xf32> to vector<2x128xf32>
    %108 = tpu.concatenate %106, %107 in 1 : vector<2x128xf32>, vector<2x128xf32> -> vector<2x256xf32>
    %109 = arith.addf %108, %105 : vector<2x256xf32>
    %110 = arith.negf %109 : vector<2x256xf32>
    %111 = math.exp %110 : vector<2x256xf32>
    %cst_22 = arith.constant 1.000000e+00 : f32
    %112 = vector.broadcast %cst_22 : f32 to vector<2x256xf32>
    %113 = arith.addf %112, %111 : vector<2x256xf32>
    %114 = arith.divf %112, %113 : vector<2x256xf32>
    %115 = vector.extract_strided_slice %109 {offsets = [0, 64], sizes = [2, 32], strides = [1, 1]} : vector<2x256xf32> to vector<2x32xf32>
    %116 = vector.extract_strided_slice %109 {offsets = [0, 192], sizes = [2, 32], strides = [1, 1]} : vector<2x256xf32> to vector<2x32xf32>
    %117 = tpu.concatenate %115, %116 in 1 : vector<2x32xf32>, vector<2x32xf32> -> vector<2x64xf32>
    %118 = math.tanh %117 : vector<2x64xf32>
    %119 = vector.extract_strided_slice %114 {offsets = [0, 0], sizes = [2, 32], strides = [1, 1]} : vector<2x256xf32> to vector<2x32xf32>
    %120 = vector.extract_strided_slice %114 {offsets = [0, 128], sizes = [2, 32], strides = [1, 1]} : vector<2x256xf32> to vector<2x32xf32>
    %121 = tpu.concatenate %119, %120 in 1 : vector<2x32xf32>, vector<2x32xf32> -> vector<2x64xf32>
    %122 = vector.extract_strided_slice %114 {offsets = [0, 32], sizes = [2, 32], strides = [1, 1]} : vector<2x256xf32> to vector<2x32xf32>
    %123 = vector.extract_strided_slice %114 {offsets = [0, 160], sizes = [2, 32], strides = [1, 1]} : vector<2x256xf32> to vector<2x32xf32>
    %124 = tpu.concatenate %122, %123 in 1 : vector<2x32xf32>, vector<2x32xf32> -> vector<2x64xf32>
    %125 = vector.extract_strided_slice %114 {offsets = [0, 96], sizes = [2, 32], strides = [1, 1]} : vector<2x256xf32> to vector<2x32xf32>
    %126 = vector.extract_strided_slice %114 {offsets = [0, 224], sizes = [2, 32], strides = [1, 1]} : vector<2x256xf32> to vector<2x32xf32>
    %127 = tpu.concatenate %125, %126 in 1 : vector<2x32xf32>, vector<2x32xf32> -> vector<2x64xf32>
    %128 = arith.mulf %124, %98 : vector<2x64xf32>
    %129 = arith.mulf %121, %118 : vector<2x64xf32>
    %130 = arith.addf %128, %129 : vector<2x64xf32>
    %131 = math.tanh %130 : vector<2x64xf32>
    %132 = arith.mulf %127, %131 : vector<2x64xf32>
    %133 = vector.extract_strided_slice %132 {offsets = [0, 0], sizes = [2, 32], strides = [1, 1]} : vector<2x64xf32> to vector<2x32xf32>
    %c6 = arith.constant 6 : index
    %c0_23 = arith.constant 0 : index
    %134 = vector.load %arg10[%c6, %c0_23] : memref<16x64xf32, #tpu.memory_space<vmem>>, vector<2x32xf32>
    tpu.vector_store %arg10[%c6, %c0_23], %133 {strides = array<i32>} : memref<16x64xf32, #tpu.memory_space<vmem>>, vector<2x32xf32>,
    %135 = vector.extract_strided_slice %132 {offsets = [0, 32], sizes = [2, 32], strides = [1, 1]} : vector<2x64xf32> to vector<2x32xf32>
    %c8 = arith.constant 8 : index
    %c32_24 = arith.constant 32 : index
    %136 = vector.load %arg10[%c8, %c32_24] : memref<16x64xf32, #tpu.memory_space<vmem>>, vector<2x32xf32>
    tpu.vector_store %arg10[%c8, %c32_24], %135 {strides = array<i32>} : memref<16x64xf32, #tpu.memory_space<vmem>>, vector<2x32xf32>,
    %cst_25 = arith.constant dense<0.000000e+00> : vector<2x256xf32>
    %137 = tpu.matmul %132, %6, %cst_25 {dimension_numbers = #tpu.dot_dimension_numbers<[1], [0], [0], [1], [0, 0, 1, 1], [], []>} : vector<2x64xf32>, vector<64x256xf32>, vector<2x256xf32> -> vector<2x256xf32>
    %138 = vector.extract_strided_slice %5 {offsets = [8, 0], sizes = [2, 128], strides = [1, 1]} : vector<16x256xf32> to vector<2x128xf32>
    %139 = vector.extract_strided_slice %5 {offsets = [6, 128], sizes = [2, 128], strides = [1, 1]} : vector<16x256xf32> to vector<2x128xf32>
    %140 = tpu.concatenate %138, %139 in 1 : vector<2x128xf32>, vector<2x128xf32> -> vector<2x256xf32>
    %141 = arith.addf %140, %137 : vector<2x256xf32>
    %142 = arith.negf %141 : vector<2x256xf32>
    %143 = math.exp %142 : vector<2x256xf32>
    %cst_26 = arith.constant 1.000000e+00 : f32
    %144 = vector.broadcast %cst_26 : f32 to vector<2x256xf32>
    %145 = arith.addf %144, %143 : vector<2x256xf32>
    %146 = arith.divf %144, %145 : vector<2x256xf32>
    %147 = vector.extract_strided_slice %141 {offsets = [0, 64], sizes = [2, 32], strides = [1, 1]} : vector<2x256xf32> to vector<2x32xf32>
    %148 = vector.extract_strided_slice %141 {offsets = [0, 192], sizes = [2, 32], strides = [1, 1]} : vector<2x256xf32> to vector<2x32xf32>
    %149 = tpu.concatenate %147, %148 in 1 : vector<2x32xf32>, vector<2x32xf32> -> vector<2x64xf32>
    %150 = math.tanh %149 : vector<2x64xf32>
    %151 = vector.extract_strided_slice %146 {offsets = [0, 0], sizes = [2, 32], strides = [1, 1]} : vector<2x256xf32> to vector<2x32xf32>
    %152 = vector.extract_strided_slice %146 {offsets = [0, 128], sizes = [2, 32], strides = [1, 1]} : vector<2x256xf32> to vector<2x32xf32>
    %153 = tpu.concatenate %151, %152 in 1 : vector<2x32xf32>, vector<2x32xf32> -> vector<2x64xf32>
    %154 = vector.extract_strided_slice %146 {offsets = [0, 32], sizes = [2, 32], strides = [1, 1]} : vector<2x256xf32> to vector<2x32xf32>
    %155 = vector.extract_strided_slice %146 {offsets = [0, 160], sizes = [2, 32], strides = [1, 1]} : vector<2x256xf32> to vector<2x32xf32>
    %156 = tpu.concatenate %154, %155 in 1 : vector<2x32xf32>, vector<2x32xf32> -> vector<2x64xf32>
    %157 = vector.extract_strided_slice %146 {offsets = [0, 96], sizes = [2, 32], strides = [1, 1]} : vector<2x256xf32> to vector<2x32xf32>
    %158 = vector.extract_strided_slice %146 {offsets = [0, 224], sizes = [2, 32], strides = [1, 1]} : vector<2x256xf32> to vector<2x32xf32>
    %159 = tpu.concatenate %157, %158 in 1 : vector<2x32xf32>, vector<2x32xf32> -> vector<2x64xf32>
    %160 = arith.mulf %156, %130 : vector<2x64xf32>
    %161 = arith.mulf %153, %150 : vector<2x64xf32>
    %162 = arith.addf %160, %161 : vector<2x64xf32>
    %163 = math.tanh %162 : vector<2x64xf32>
    %164 = arith.mulf %159, %163 : vector<2x64xf32>
    %165 = vector.extract_strided_slice %164 {offsets = [0, 0], sizes = [2, 32], strides = [1, 1]} : vector<2x64xf32> to vector<2x32xf32>
    %c8_27 = arith.constant 8 : index
    %c0_28 = arith.constant 0 : index
    %166 = vector.load %arg10[%c8_27, %c0_28] : memref<16x64xf32, #tpu.memory_space<vmem>>, vector<2x32xf32>
    tpu.vector_store %arg10[%c8_27, %c0_28], %165 {strides = array<i32>} : memref<16x64xf32, #tpu.memory_space<vmem>>, vector<2x32xf32>,
    %167 = vector.extract_strided_slice %164 {offsets = [0, 32], sizes = [2, 32], strides = [1, 1]} : vector<2x64xf32> to vector<2x32xf32>
    %c6_29 = arith.constant 6 : index
    %c32_30 = arith.constant 32 : index
    %168 = vector.load %arg10[%c6_29, %c32_30] : memref<16x64xf32, #tpu.memory_space<vmem>>, vector<2x32xf32>
    tpu.vector_store %arg10[%c6_29, %c32_30], %167 {strides = array<i32>} : memref<16x64xf32, #tpu.memory_space<vmem>>, vector<2x32xf32>,
    %cst_31 = arith.constant dense<0.000000e+00> : vector<2x256xf32>
    %169 = tpu.matmul %164, %6, %cst_31 {dimension_numbers = #tpu.dot_dimension_numbers<[1], [0], [0], [1], [0, 0, 1, 1], [], []>} : vector<2x64xf32>, vector<64x256xf32>, vector<2x256xf32> -> vector<2x256xf32>
    %170 = vector.extract_strided_slice %5 {offsets = [10, 0], sizes = [2, 128], strides = [1, 1]} : vector<16x256xf32> to vector<2x128xf32>
    %171 = vector.extract_strided_slice %5 {offsets = [4, 128], sizes = [2, 128], strides = [1, 1]} : vector<16x256xf32> to vector<2x128xf32>
    %172 = tpu.concatenate %170, %171 in 1 : vector<2x128xf32>, vector<2x128xf32> -> vector<2x256xf32>
    %173 = arith.addf %172, %169 : vector<2x256xf32>
    %174 = arith.negf %173 : vector<2x256xf32>
    %175 = math.exp %174 : vector<2x256xf32>
    %cst_32 = arith.constant 1.000000e+00 : f32
    %176 = vector.broadcast %cst_32 : f32 to vector<2x256xf32>
    %177 = arith.addf %176, %175 : vector<2x256xf32>
    %178 = arith.divf %176, %177 : vector<2x256xf32>
    %179 = vector.extract_strided_slice %173 {offsets = [0, 64], sizes = [2, 32], strides = [1, 1]} : vector<2x256xf32> to vector<2x32xf32>
    %180 = vector.extract_strided_slice %173 {offsets = [0, 192], sizes = [2, 32], strides = [1, 1]} : vector<2x256xf32> to vector<2x32xf32>
    %181 = tpu.concatenate %179, %180 in 1 : vector<2x32xf32>, vector<2x32xf32> -> vector<2x64xf32>
    %182 = math.tanh %181 : vector<2x64xf32>
    %183 = vector.extract_strided_slice %178 {offsets = [0, 0], sizes = [2, 32], strides = [1, 1]} : vector<2x256xf32> to vector<2x32xf32>
    %184 = vector.extract_strided_slice %178 {offsets = [0, 128], sizes = [2, 32], strides = [1, 1]} : vector<2x256xf32> to vector<2x32xf32>
    %185 = tpu.concatenate %183, %184 in 1 : vector<2x32xf32>, vector<2x32xf32> -> vector<2x64xf32>
    %186 = vector.extract_strided_slice %178 {offsets = [0, 32], sizes = [2, 32], strides = [1, 1]} : vector<2x256xf32> to vector<2x32xf32>
    %187 = vector.extract_strided_slice %178 {offsets = [0, 160], sizes = [2, 32], strides = [1, 1]} : vector<2x256xf32> to vector<2x32xf32>
    %188 = tpu.concatenate %186, %187 in 1 : vector<2x32xf32>, vector<2x32xf32> -> vector<2x64xf32>
    %189 = vector.extract_strided_slice %178 {offsets = [0, 96], sizes = [2, 32], strides = [1, 1]} : vector<2x256xf32> to vector<2x32xf32>
    %190 = vector.extract_strided_slice %178 {offsets = [0, 224], sizes = [2, 32], strides = [1, 1]} : vector<2x256xf32> to vector<2x32xf32>
    %191 = tpu.concatenate %189, %190 in 1 : vector<2x32xf32>, vector<2x32xf32> -> vector<2x64xf32>
    %192 = arith.mulf %188, %162 : vector<2x64xf32>
    %193 = arith.mulf %185, %182 : vector<2x64xf32>
    %194 = arith.addf %192, %193 : vector<2x64xf32>
    %195 = math.tanh %194 : vector<2x64xf32>
    %196 = arith.mulf %191, %195 : vector<2x64xf32>
    %197 = vector.extract_strided_slice %196 {offsets = [0, 0], sizes = [2, 32], strides = [1, 1]} : vector<2x64xf32> to vector<2x32xf32>
    %c10_33 = arith.constant 10 : index
    %c0_34 = arith.constant 0 : index
    %198 = vector.load %arg10[%c10_33, %c0_34] : memref<16x64xf32, #tpu.memory_space<vmem>>, vector<2x32xf32>
    tpu.vector_store %arg10[%c10_33, %c0_34], %197 {strides = array<i32>} : memref<16x64xf32, #tpu.memory_space<vmem>>, vector<2x32xf32>,
    %199 = vector.extract_strided_slice %196 {offsets = [0, 32], sizes = [2, 32], strides = [1, 1]} : vector<2x64xf32> to vector<2x32xf32>
    %c4_35 = arith.constant 4 : index
    %c32_36 = arith.constant 32 : index
    %200 = vector.load %arg10[%c4_35, %c32_36] : memref<16x64xf32, #tpu.memory_space<vmem>>, vector<2x32xf32>
    tpu.vector_store %arg10[%c4_35, %c32_36], %199 {strides = array<i32>} : memref<16x64xf32, #tpu.memory_space<vmem>>, vector<2x32xf32>,
    %cst_37 = arith.constant dense<0.000000e+00> : vector<2x256xf32>
    %201 = tpu.matmul %196, %6, %cst_37 {dimension_numbers = #tpu.dot_dimension_numbers<[1], [0], [0], [1], [0, 0, 1, 1], [], []>} : vector<2x64xf32>, vector<64x256xf32>, vector<2x256xf32> -> vector<2x256xf32>
    %202 = vector.extract_strided_slice %5 {offsets = [12, 0], sizes = [2, 128], strides = [1, 1]} : vector<16x256xf32> to vector<2x128xf32>
    %203 = vector.extract_strided_slice %5 {offsets = [2, 128], sizes = [2, 128], strides = [1, 1]} : vector<16x256xf32> to vector<2x128xf32>
    %204 = tpu.concatenate %202, %203 in 1 : vector<2x128xf32>, vector<2x128xf32> -> vector<2x256xf32>
    %205 = arith.addf %204, %201 : vector<2x256xf32>
    %206 = arith.negf %205 : vector<2x256xf32>
    %207 = math.exp %206 : vector<2x256xf32>
    %cst_38 = arith.constant 1.000000e+00 : f32
    %208 = vector.broadcast %cst_38 : f32 to vector<2x256xf32>
    %209 = arith.addf %208, %207 : vector<2x256xf32>
    %210 = arith.divf %208, %209 : vector<2x256xf32>
    %211 = vector.extract_strided_slice %205 {offsets = [0, 64], sizes = [2, 32], strides = [1, 1]} : vector<2x256xf32> to vector<2x32xf32>
    %212 = vector.extract_strided_slice %205 {offsets = [0, 192], sizes = [2, 32], strides = [1, 1]} : vector<2x256xf32> to vector<2x32xf32>
    %213 = tpu.concatenate %211, %212 in 1 : vector<2x32xf32>, vector<2x32xf32> -> vector<2x64xf32>
    %214 = math.tanh %213 : vector<2x64xf32>
    %215 = vector.extract_strided_slice %210 {offsets = [0, 0], sizes = [2, 32], strides = [1, 1]} : vector<2x256xf32> to vector<2x32xf32>
    %216 = vector.extract_strided_slice %210 {offsets = [0, 128], sizes = [2, 32], strides = [1, 1]} : vector<2x256xf32> to vector<2x32xf32>
    %217 = tpu.concatenate %215, %216 in 1 : vector<2x32xf32>, vector<2x32xf32> -> vector<2x64xf32>
    %218 = vector.extract_strided_slice %210 {offsets = [0, 32], sizes = [2, 32], strides = [1, 1]} : vector<2x256xf32> to vector<2x32xf32>
    %219 = vector.extract_strided_slice %210 {offsets = [0, 160], sizes = [2, 32], strides = [1, 1]} : vector<2x256xf32> to vector<2x32xf32>
    %220 = tpu.concatenate %218, %219 in 1 : vector<2x32xf32>, vector<2x32xf32> -> vector<2x64xf32>
    %221 = vector.extract_strided_slice %210 {offsets = [0, 96], sizes = [2, 32], strides = [1, 1]} : vector<2x256xf32> to vector<2x32xf32>
    %222 = vector.extract_strided_slice %210 {offsets = [0, 224], sizes = [2, 32], strides = [1, 1]} : vector<2x256xf32> to vector<2x32xf32>
    %223 = tpu.concatenate %221, %222 in 1 : vector<2x32xf32>, vector<2x32xf32> -> vector<2x64xf32>
    %224 = arith.mulf %220, %194 : vector<2x64xf32>
    %225 = arith.mulf %217, %214 : vector<2x64xf32>
    %226 = arith.addf %224, %225 : vector<2x64xf32>
    %227 = math.tanh %226 : vector<2x64xf32>
    %228 = arith.mulf %223, %227 : vector<2x64xf32>
    %229 = vector.extract_strided_slice %228 {offsets = [0, 0], sizes = [2, 32], strides = [1, 1]} : vector<2x64xf32> to vector<2x32xf32>
    %c12_39 = arith.constant 12 : index
    %c0_40 = arith.constant 0 : index
    %230 = vector.load %arg10[%c12_39, %c0_40] : memref<16x64xf32, #tpu.memory_space<vmem>>, vector<2x32xf32>
    tpu.vector_store %arg10[%c12_39, %c0_40], %229 {strides = array<i32>} : memref<16x64xf32, #tpu.memory_space<vmem>>, vector<2x32xf32>,
    %231 = vector.extract_strided_slice %228 {offsets = [0, 32], sizes = [2, 32], strides = [1, 1]} : vector<2x64xf32> to vector<2x32xf32>
    %c2_41 = arith.constant 2 : index
    %c32_42 = arith.constant 32 : index
    %232 = vector.load %arg10[%c2_41, %c32_42] : memref<16x64xf32, #tpu.memory_space<vmem>>, vector<2x32xf32>
    tpu.vector_store %arg10[%c2_41, %c32_42], %231 {strides = array<i32>} : memref<16x64xf32, #tpu.memory_space<vmem>>, vector<2x32xf32>,
    %cst_43 = arith.constant dense<0.000000e+00> : vector<2x256xf32>
    %233 = tpu.matmul %228, %6, %cst_43 {dimension_numbers = #tpu.dot_dimension_numbers<[1], [0], [0], [1], [0, 0, 1, 1], [], []>} : vector<2x64xf32>, vector<64x256xf32>, vector<2x256xf32> -> vector<2x256xf32>
    %234 = vector.extract_strided_slice %5 {offsets = [14, 0], sizes = [2, 128], strides = [1, 1]} : vector<16x256xf32> to vector<2x128xf32>
    %235 = vector.extract_strided_slice %5 {offsets = [0, 128], sizes = [2, 128], strides = [1, 1]} : vector<16x256xf32> to vector<2x128xf32>
    %236 = tpu.concatenate %234, %235 in 1 : vector<2x128xf32>, vector<2x128xf32> -> vector<2x256xf32>
    %237 = arith.addf %236, %233 : vector<2x256xf32>
    %238 = arith.negf %237 : vector<2x256xf32>
    %239 = math.exp %238 : vector<2x256xf32>
    %cst_44 = arith.constant 1.000000e+00 : f32
    %240 = vector.broadcast %cst_44 : f32 to vector<2x256xf32>
    %241 = arith.addf %240, %239 : vector<2x256xf32>
    %242 = arith.divf %240, %241 : vector<2x256xf32>
    %243 = vector.extract_strided_slice %237 {offsets = [0, 64], sizes = [2, 32], strides = [1, 1]} : vector<2x256xf32> to vector<2x32xf32>
    %244 = vector.extract_strided_slice %237 {offsets = [0, 192], sizes = [2, 32], strides = [1, 1]} : vector<2x256xf32> to vector<2x32xf32>
    %245 = tpu.concatenate %243, %244 in 1 : vector<2x32xf32>, vector<2x32xf32> -> vector<2x64xf32>
    %246 = math.tanh %245 : vector<2x64xf32>
    %247 = vector.extract_strided_slice %242 {offsets = [0, 0], sizes = [2, 32], strides = [1, 1]} : vector<2x256xf32> to vector<2x32xf32>
    %248 = vector.extract_strided_slice %242 {offsets = [0, 128], sizes = [2, 32], strides = [1, 1]} : vector<2x256xf32> to vector<2x32xf32>
    %249 = tpu.concatenate %247, %248 in 1 : vector<2x32xf32>, vector<2x32xf32> -> vector<2x64xf32>
    %250 = vector.extract_strided_slice %242 {offsets = [0, 32], sizes = [2, 32], strides = [1, 1]} : vector<2x256xf32> to vector<2x32xf32>
    %251 = vector.extract_strided_slice %242 {offsets = [0, 160], sizes = [2, 32], strides = [1, 1]} : vector<2x256xf32> to vector<2x32xf32>
    %252 = tpu.concatenate %250, %251 in 1 : vector<2x32xf32>, vector<2x32xf32> -> vector<2x64xf32>
    %253 = vector.extract_strided_slice %242 {offsets = [0, 96], sizes = [2, 32], strides = [1, 1]} : vector<2x256xf32> to vector<2x32xf32>
    %254 = vector.extract_strided_slice %242 {offsets = [0, 224], sizes = [2, 32], strides = [1, 1]} : vector<2x256xf32> to vector<2x32xf32>
    %255 = tpu.concatenate %253, %254 in 1 : vector<2x32xf32>, vector<2x32xf32> -> vector<2x64xf32>
    %256 = arith.mulf %252, %226 : vector<2x64xf32>
    %257 = arith.mulf %249, %246 : vector<2x64xf32>
    %258 = arith.addf %256, %257 : vector<2x64xf32>
    %259 = math.tanh %258 : vector<2x64xf32>
    %260 = arith.mulf %255, %259 : vector<2x64xf32>
    %261 = vector.extract_strided_slice %260 {offsets = [0, 0], sizes = [2, 32], strides = [1, 1]} : vector<2x64xf32> to vector<2x32xf32>
    %c14_45 = arith.constant 14 : index
    %c0_46 = arith.constant 0 : index
    %262 = vector.load %arg10[%c14_45, %c0_46] : memref<16x64xf32, #tpu.memory_space<vmem>>, vector<2x32xf32>
    tpu.vector_store %arg10[%c14_45, %c0_46], %261 {strides = array<i32>} : memref<16x64xf32, #tpu.memory_space<vmem>>, vector<2x32xf32>,
    %263 = vector.extract_strided_slice %260 {offsets = [0, 32], sizes = [2, 32], strides = [1, 1]} : vector<2x64xf32> to vector<2x32xf32>
    %c0_47 = arith.constant 0 : index
    %c32_48 = arith.constant 32 : index
    %264 = vector.load %arg10[%c0_47, %c32_48] : memref<16x64xf32, #tpu.memory_space<vmem>>, vector<2x32xf32>
    tpu.vector_store %arg10[%c0_47, %c32_48], %263 {strides = array<i32>} : memref<16x64xf32, #tpu.memory_space<vmem>>, vector<2x32xf32>,
    %c0_49 = arith.constant 0 : index
    %c0_50 = arith.constant 0 : index
    %265 = vector.load %arg10[%c0_49, %c0_50] : memref<16x64xf32, #tpu.memory_space<vmem>>, vector<16x64xf32>
    %c0_51 = arith.constant 0 : index
    %c0_52 = arith.constant 0 : index
    %266 = vector.load %arg4[%c0_51, %c0_52] : memref<64x256xf32, #tpu.memory_space<vmem>>, vector<64x256xf32>
    %cst_53 = arith.constant dense<0.000000e+00> : vector<16x256xf32>
    %267 = tpu.matmul %265, %266, %cst_53 {dimension_numbers = #tpu.dot_dimension_numbers<[1], [0], [0], [1], [0, 0, 1, 1], [], []>} : vector<16x64xf32>, vector<64x256xf32>, vector<16x256xf32> -> vector<16x256xf32>
    %c0_54 = arith.constant 0 : index
    %c0_55 = arith.constant 0 : index
    %268 = vector.load %arg6[%c0_54, %c0_55] : memref<1x256xf32, #tpu.memory_space<vmem>>, vector<1x256xf32>
    %269 = vector.broadcast %268 : vector<1x256xf32> to vector<16x256xf32>
    %270 = arith.addf %267, %269 : vector<16x256xf32>
    %c0_56 = arith.constant 0 : index
    %c0_57 = arith.constant 0 : index
    %271 = vector.load %arg5[%c0_56, %c0_57] : memref<64x256xf32, #tpu.memory_space<vmem>>, vector<64x256xf32>
    %cst_58 = arith.constant 0.000000e+00 : f32
    %272 = vector.broadcast %cst_58 : f32 to vector<2x64xf32>
    %cst_59 = arith.constant 0.000000e+00 : f32
    %273 = vector.broadcast %cst_59 : f32 to vector<2x64xf32>
    %cst_60 = arith.constant dense<0.000000e+00> : vector<2x256xf32>
    %274 = tpu.matmul %272, %271, %cst_60 {dimension_numbers = #tpu.dot_dimension_numbers<[1], [0], [0], [1], [0, 0, 1, 1], [], []>} : vector<2x64xf32>, vector<64x256xf32>, vector<2x256xf32> -> vector<2x256xf32>
    %275 = vector.extract_strided_slice %270 {offsets = [0, 0], sizes = [2, 128], strides = [1, 1]} : vector<16x256xf32> to vector<2x128xf32>
    %276 = vector.extract_strided_slice %270 {offsets = [14, 128], sizes = [2, 128], strides = [1, 1]} : vector<16x256xf32> to vector<2x128xf32>
    %277 = tpu.concatenate %275, %276 in 1 : vector<2x128xf32>, vector<2x128xf32> -> vector<2x256xf32>
    %278 = arith.addf %277, %274 : vector<2x256xf32>
    %279 = arith.negf %278 : vector<2x256xf32>
    %280 = math.exp %279 : vector<2x256xf32>
    %cst_61 = arith.constant 1.000000e+00 : f32
    %281 = vector.broadcast %cst_61 : f32 to vector<2x256xf32>
    %282 = arith.addf %281, %280 : vector<2x256xf32>
    %283 = arith.divf %281, %282 : vector<2x256xf32>
    %284 = vector.extract_strided_slice %278 {offsets = [0, 64], sizes = [2, 32], strides = [1, 1]} : vector<2x256xf32> to vector<2x32xf32>
    %285 = vector.extract_strided_slice %278 {offsets = [0, 192], sizes = [2, 32], strides = [1, 1]} : vector<2x256xf32> to vector<2x32xf32>
    %286 = tpu.concatenate %284, %285 in 1 : vector<2x32xf32>, vector<2x32xf32> -> vector<2x64xf32>
    %287 = math.tanh %286 : vector<2x64xf32>
    %288 = vector.extract_strided_slice %283 {offsets = [0, 0], sizes = [2, 32], strides = [1, 1]} : vector<2x256xf32> to vector<2x32xf32>
    %289 = vector.extract_strided_slice %283 {offsets = [0, 128], sizes = [2, 32], strides = [1, 1]} : vector<2x256xf32> to vector<2x32xf32>
    %290 = tpu.concatenate %288, %289 in 1 : vector<2x32xf32>, vector<2x32xf32> -> vector<2x64xf32>
    %291 = vector.extract_strided_slice %283 {offsets = [0, 32], sizes = [2, 32], strides = [1, 1]} : vector<2x256xf32> to vector<2x32xf32>
    %292 = vector.extract_strided_slice %283 {offsets = [0, 160], sizes = [2, 32], strides = [1, 1]} : vector<2x256xf32> to vector<2x32xf32>
    %293 = tpu.concatenate %291, %292 in 1 : vector<2x32xf32>, vector<2x32xf32> -> vector<2x64xf32>
    %294 = vector.extract_strided_slice %283 {offsets = [0, 96], sizes = [2, 32], strides = [1, 1]} : vector<2x256xf32> to vector<2x32xf32>
    %295 = vector.extract_strided_slice %283 {offsets = [0, 224], sizes = [2, 32], strides = [1, 1]} : vector<2x256xf32> to vector<2x32xf32>
    %296 = tpu.concatenate %294, %295 in 1 : vector<2x32xf32>, vector<2x32xf32> -> vector<2x64xf32>
    %297 = arith.mulf %293, %273 : vector<2x64xf32>
    %298 = arith.mulf %290, %287 : vector<2x64xf32>
    %299 = arith.addf %297, %298 : vector<2x64xf32>
    %300 = math.tanh %299 : vector<2x64xf32>
    %301 = arith.mulf %296, %300 : vector<2x64xf32>
    %302 = vector.extract_strided_slice %301 {offsets = [0, 0], sizes = [2, 32], strides = [1, 1]} : vector<2x64xf32> to vector<2x32xf32>
    %c0_62 = arith.constant 0 : index
    %c0_63 = arith.constant 0 : index
    %303 = vector.load %arg11[%c0_62, %c0_63] : memref<16x64xf32, #tpu.memory_space<vmem>>, vector<2x32xf32>
    tpu.vector_store %arg11[%c0_62, %c0_63], %302 {strides = array<i32>} : memref<16x64xf32, #tpu.memory_space<vmem>>, vector<2x32xf32>,
    %304 = vector.extract_strided_slice %301 {offsets = [0, 32], sizes = [2, 32], strides = [1, 1]} : vector<2x64xf32> to vector<2x32xf32>
    %c14_64 = arith.constant 14 : index
    %c32_65 = arith.constant 32 : index
    %305 = vector.load %arg11[%c14_64, %c32_65] : memref<16x64xf32, #tpu.memory_space<vmem>>, vector<2x32xf32>
    tpu.vector_store %arg11[%c14_64, %c32_65], %304 {strides = array<i32>} : memref<16x64xf32, #tpu.memory_space<vmem>>, vector<2x32xf32>,
    %cst_66 = arith.constant dense<0.000000e+00> : vector<2x256xf32>
    %306 = tpu.matmul %301, %271, %cst_66 {dimension_numbers = #tpu.dot_dimension_numbers<[1], [0], [0], [1], [0, 0, 1, 1], [], []>} : vector<2x64xf32>, vector<64x256xf32>, vector<2x256xf32> -> vector<2x256xf32>
    %307 = vector.extract_strided_slice %270 {offsets = [2, 0], sizes = [2, 128], strides = [1, 1]} : vector<16x256xf32> to vector<2x128xf32>
    %308 = vector.extract_strided_slice %270 {offsets = [12, 128], sizes = [2, 128], strides = [1, 1]} : vector<16x256xf32> to vector<2x128xf32>
    %309 = tpu.concatenate %307, %308 in 1 : vector<2x128xf32>, vector<2x128xf32> -> vector<2x256xf32>
    %310 = arith.addf %309, %306 : vector<2x256xf32>
    %311 = arith.negf %310 : vector<2x256xf32>
    %312 = math.exp %311 : vector<2x256xf32>
    %cst_67 = arith.constant 1.000000e+00 : f32
    %313 = vector.broadcast %cst_67 : f32 to vector<2x256xf32>
    %314 = arith.addf %313, %312 : vector<2x256xf32>
    %315 = arith.divf %313, %314 : vector<2x256xf32>
    %316 = vector.extract_strided_slice %310 {offsets = [0, 64], sizes = [2, 32], strides = [1, 1]} : vector<2x256xf32> to vector<2x32xf32>
    %317 = vector.extract_strided_slice %310 {offsets = [0, 192], sizes = [2, 32], strides = [1, 1]} : vector<2x256xf32> to vector<2x32xf32>
    %318 = tpu.concatenate %316, %317 in 1 : vector<2x32xf32>, vector<2x32xf32> -> vector<2x64xf32>
    %319 = math.tanh %318 : vector<2x64xf32>
    %320 = vector.extract_strided_slice %315 {offsets = [0, 0], sizes = [2, 32], strides = [1, 1]} : vector<2x256xf32> to vector<2x32xf32>
    %321 = vector.extract_strided_slice %315 {offsets = [0, 128], sizes = [2, 32], strides = [1, 1]} : vector<2x256xf32> to vector<2x32xf32>
    %322 = tpu.concatenate %320, %321 in 1 : vector<2x32xf32>, vector<2x32xf32> -> vector<2x64xf32>
    %323 = vector.extract_strided_slice %315 {offsets = [0, 32], sizes = [2, 32], strides = [1, 1]} : vector<2x256xf32> to vector<2x32xf32>
    %324 = vector.extract_strided_slice %315 {offsets = [0, 160], sizes = [2, 32], strides = [1, 1]} : vector<2x256xf32> to vector<2x32xf32>
    %325 = tpu.concatenate %323, %324 in 1 : vector<2x32xf32>, vector<2x32xf32> -> vector<2x64xf32>
    %326 = vector.extract_strided_slice %315 {offsets = [0, 96], sizes = [2, 32], strides = [1, 1]} : vector<2x256xf32> to vector<2x32xf32>
    %327 = vector.extract_strided_slice %315 {offsets = [0, 224], sizes = [2, 32], strides = [1, 1]} : vector<2x256xf32> to vector<2x32xf32>
    %328 = tpu.concatenate %326, %327 in 1 : vector<2x32xf32>, vector<2x32xf32> -> vector<2x64xf32>
    %329 = arith.mulf %325, %299 : vector<2x64xf32>
    %330 = arith.mulf %322, %319 : vector<2x64xf32>
    %331 = arith.addf %329, %330 : vector<2x64xf32>
    %332 = math.tanh %331 : vector<2x64xf32>
    %333 = arith.mulf %328, %332 : vector<2x64xf32>
    %334 = vector.extract_strided_slice %333 {offsets = [0, 0], sizes = [2, 32], strides = [1, 1]} : vector<2x64xf32> to vector<2x32xf32>
    %c2_68 = arith.constant 2 : index
    %c0_69 = arith.constant 0 : index
    %335 = vector.load %arg11[%c2_68, %c0_69] : memref<16x64xf32, #tpu.memory_space<vmem>>, vector<2x32xf32>
    tpu.vector_store %arg11[%c2_68, %c0_69], %334 {strides = array<i32>} : memref<16x64xf32, #tpu.memory_space<vmem>>, vector<2x32xf32>,
    %336 = vector.extract_strided_slice %333 {offsets = [0, 32], sizes = [2, 32], strides = [1, 1]} : vector<2x64xf32> to vector<2x32xf32>
    %c12_70 = arith.constant 12 : index
    %c32_71 = arith.constant 32 : index
    %337 = vector.load %arg11[%c12_70, %c32_71] : memref<16x64xf32, #tpu.memory_space<vmem>>, vector<2x32xf32>
    tpu.vector_store %arg11[%c12_70, %c32_71], %336 {strides = array<i32>} : memref<16x64xf32, #tpu.memory_space<vmem>>, vector<2x32xf32>,
    %cst_72 = arith.constant dense<0.000000e+00> : vector<2x256xf32>
    %338 = tpu.matmul %333, %271, %cst_72 {dimension_numbers = #tpu.dot_dimension_numbers<[1], [0], [0], [1], [0, 0, 1, 1], [], []>} : vector<2x64xf32>, vector<64x256xf32>, vector<2x256xf32> -> vector<2x256xf32>
    %339 = vector.extract_strided_slice %270 {offsets = [4, 0], sizes = [2, 128], strides = [1, 1]} : vector<16x256xf32> to vector<2x128xf32>
    %340 = vector.extract_strided_slice %270 {offsets = [10, 128], sizes = [2, 128], strides = [1, 1]} : vector<16x256xf32> to vector<2x128xf32>
    %341 = tpu.concatenate %339, %340 in 1 : vector<2x128xf32>, vector<2x128xf32> -> vector<2x256xf32>
    %342 = arith.addf %341, %338 : vector<2x256xf32>
    %343 = arith.negf %342 : vector<2x256xf32>
    %344 = math.exp %343 : vector<2x256xf32>
    %cst_73 = arith.constant 1.000000e+00 : f32
    %345 = vector.broadcast %cst_73 : f32 to vector<2x256xf32>
    %346 = arith.addf %345, %344 : vector<2x256xf32>
    %347 = arith.divf %345, %346 : vector<2x256xf32>
    %348 = vector.extract_strided_slice %342 {offsets = [0, 64], sizes = [2, 32], strides = [1, 1]} : vector<2x256xf32> to vector<2x32xf32>
    %349 = vector.extract_strided_slice %342 {offsets = [0, 192], sizes = [2, 32], strides = [1, 1]} : vector<2x256xf32> to vector<2x32xf32>
    %350 = tpu.concatenate %348, %349 in 1 : vector<2x32xf32>, vector<2x32xf32> -> vector<2x64xf32>
    %351 = math.tanh %350 : vector<2x64xf32>
    %352 = vector.extract_strided_slice %347 {offsets = [0, 0], sizes = [2, 32], strides = [1, 1]} : vector<2x256xf32> to vector<2x32xf32>
    %353 = vector.extract_strided_slice %347 {offsets = [0, 128], sizes = [2, 32], strides = [1, 1]} : vector<2x256xf32> to vector<2x32xf32>
    %354 = tpu.concatenate %352, %353 in 1 : vector<2x32xf32>, vector<2x32xf32> -> vector<2x64xf32>
    %355 = vector.extract_strided_slice %347 {offsets = [0, 32], sizes = [2, 32], strides = [1, 1]} : vector<2x256xf32> to vector<2x32xf32>
    %356 = vector.extract_strided_slice %347 {offsets = [0, 160], sizes = [2, 32], strides = [1, 1]} : vector<2x256xf32> to vector<2x32xf32>
    %357 = tpu.concatenate %355, %356 in 1 : vector<2x32xf32>, vector<2x32xf32> -> vector<2x64xf32>
    %358 = vector.extract_strided_slice %347 {offsets = [0, 96], sizes = [2, 32], strides = [1, 1]} : vector<2x256xf32> to vector<2x32xf32>
    %359 = vector.extract_strided_slice %347 {offsets = [0, 224], sizes = [2, 32], strides = [1, 1]} : vector<2x256xf32> to vector<2x32xf32>
    %360 = tpu.concatenate %358, %359 in 1 : vector<2x32xf32>, vector<2x32xf32> -> vector<2x64xf32>
    %361 = arith.mulf %357, %331 : vector<2x64xf32>
    %362 = arith.mulf %354, %351 : vector<2x64xf32>
    %363 = arith.addf %361, %362 : vector<2x64xf32>
    %364 = math.tanh %363 : vector<2x64xf32>
    %365 = arith.mulf %360, %364 : vector<2x64xf32>
    %366 = vector.extract_strided_slice %365 {offsets = [0, 0], sizes = [2, 32], strides = [1, 1]} : vector<2x64xf32> to vector<2x32xf32>
    %c4_74 = arith.constant 4 : index
    %c0_75 = arith.constant 0 : index
    %367 = vector.load %arg11[%c4_74, %c0_75] : memref<16x64xf32, #tpu.memory_space<vmem>>, vector<2x32xf32>
    tpu.vector_store %arg11[%c4_74, %c0_75], %366 {strides = array<i32>} : memref<16x64xf32, #tpu.memory_space<vmem>>, vector<2x32xf32>,
    %368 = vector.extract_strided_slice %365 {offsets = [0, 32], sizes = [2, 32], strides = [1, 1]} : vector<2x64xf32> to vector<2x32xf32>
    %c10_76 = arith.constant 10 : index
    %c32_77 = arith.constant 32 : index
    %369 = vector.load %arg11[%c10_76, %c32_77] : memref<16x64xf32, #tpu.memory_space<vmem>>, vector<2x32xf32>
    tpu.vector_store %arg11[%c10_76, %c32_77], %368 {strides = array<i32>} : memref<16x64xf32, #tpu.memory_space<vmem>>, vector<2x32xf32>,
    %cst_78 = arith.constant dense<0.000000e+00> : vector<2x256xf32>
    %370 = tpu.matmul %365, %271, %cst_78 {dimension_numbers = #tpu.dot_dimension_numbers<[1], [0], [0], [1], [0, 0, 1, 1], [], []>} : vector<2x64xf32>, vector<64x256xf32>, vector<2x256xf32> -> vector<2x256xf32>
    %371 = vector.extract_strided_slice %270 {offsets = [6, 0], sizes = [2, 128], strides = [1, 1]} : vector<16x256xf32> to vector<2x128xf32>
    %372 = vector.extract_strided_slice %270 {offsets = [8, 128], sizes = [2, 128], strides = [1, 1]} : vector<16x256xf32> to vector<2x128xf32>
    %373 = tpu.concatenate %371, %372 in 1 : vector<2x128xf32>, vector<2x128xf32> -> vector<2x256xf32>
    %374 = arith.addf %373, %370 : vector<2x256xf32>
    %375 = arith.negf %374 : vector<2x256xf32>
    %376 = math.exp %375 : vector<2x256xf32>
    %cst_79 = arith.constant 1.000000e+00 : f32
    %377 = vector.broadcast %cst_79 : f32 to vector<2x256xf32>
    %378 = arith.addf %377, %376 : vector<2x256xf32>
    %379 = arith.divf %377, %378 : vector<2x256xf32>
    %380 = vector.extract_strided_slice %374 {offsets = [0, 64], sizes = [2, 32], strides = [1, 1]} : vector<2x256xf32> to vector<2x32xf32>
    %381 = vector.extract_strided_slice %374 {offsets = [0, 192], sizes = [2, 32], strides = [1, 1]} : vector<2x256xf32> to vector<2x32xf32>
    %382 = tpu.concatenate %380, %381 in 1 : vector<2x32xf32>, vector<2x32xf32> -> vector<2x64xf32>
    %383 = math.tanh %382 : vector<2x64xf32>
    %384 = vector.extract_strided_slice %379 {offsets = [0, 0], sizes = [2, 32], strides = [1, 1]} : vector<2x256xf32> to vector<2x32xf32>
    %385 = vector.extract_strided_slice %379 {offsets = [0, 128], sizes = [2, 32], strides = [1, 1]} : vector<2x256xf32> to vector<2x32xf32>
    %386 = tpu.concatenate %384, %385 in 1 : vector<2x32xf32>, vector<2x32xf32> -> vector<2x64xf32>
    %387 = vector.extract_strided_slice %379 {offsets = [0, 32], sizes = [2, 32], strides = [1, 1]} : vector<2x256xf32> to vector<2x32xf32>
    %388 = vector.extract_strided_slice %379 {offsets = [0, 160], sizes = [2, 32], strides = [1, 1]} : vector<2x256xf32> to vector<2x32xf32>
    %389 = tpu.concatenate %387, %388 in 1 : vector<2x32xf32>, vector<2x32xf32> -> vector<2x64xf32>
    %390 = vector.extract_strided_slice %379 {offsets = [0, 96], sizes = [2, 32], strides = [1, 1]} : vector<2x256xf32> to vector<2x32xf32>
    %391 = vector.extract_strided_slice %379 {offsets = [0, 224], sizes = [2, 32], strides = [1, 1]} : vector<2x256xf32> to vector<2x32xf32>
    %392 = tpu.concatenate %390, %391 in 1 : vector<2x32xf32>, vector<2x32xf32> -> vector<2x64xf32>
    %393 = arith.mulf %389, %363 : vector<2x64xf32>
    %394 = arith.mulf %386, %383 : vector<2x64xf32>
    %395 = arith.addf %393, %394 : vector<2x64xf32>
    %396 = math.tanh %395 : vector<2x64xf32>
    %397 = arith.mulf %392, %396 : vector<2x64xf32>
    %398 = vector.extract_strided_slice %397 {offsets = [0, 0], sizes = [2, 32], strides = [1, 1]} : vector<2x64xf32> to vector<2x32xf32>
    %c6_80 = arith.constant 6 : index
    %c0_81 = arith.constant 0 : index
    %399 = vector.load %arg11[%c6_80, %c0_81] : memref<16x64xf32, #tpu.memory_space<vmem>>, vector<2x32xf32>
    tpu.vector_store %arg11[%c6_80, %c0_81], %398 {strides = array<i32>} : memref<16x64xf32, #tpu.memory_space<vmem>>, vector<2x32xf32>,
    %400 = vector.extract_strided_slice %397 {offsets = [0, 32], sizes = [2, 32], strides = [1, 1]} : vector<2x64xf32> to vector<2x32xf32>
    %c8_82 = arith.constant 8 : index
    %c32_83 = arith.constant 32 : index
    %401 = vector.load %arg11[%c8_82, %c32_83] : memref<16x64xf32, #tpu.memory_space<vmem>>, vector<2x32xf32>
    tpu.vector_store %arg11[%c8_82, %c32_83], %400 {strides = array<i32>} : memref<16x64xf32, #tpu.memory_space<vmem>>, vector<2x32xf32>,
    %cst_84 = arith.constant dense<0.000000e+00> : vector<2x256xf32>
    %402 = tpu.matmul %397, %271, %cst_84 {dimension_numbers = #tpu.dot_dimension_numbers<[1], [0], [0], [1], [0, 0, 1, 1], [], []>} : vector<2x64xf32>, vector<64x256xf32>, vector<2x256xf32> -> vector<2x256xf32>
    %403 = vector.extract_strided_slice %270 {offsets = [8, 0], sizes = [2, 128], strides = [1, 1]} : vector<16x256xf32> to vector<2x128xf32>
    %404 = vector.extract_strided_slice %270 {offsets = [6, 128], sizes = [2, 128], strides = [1, 1]} : vector<16x256xf32> to vector<2x128xf32>
    %405 = tpu.concatenate %403, %404 in 1 : vector<2x128xf32>, vector<2x128xf32> -> vector<2x256xf32>
    %406 = arith.addf %405, %402 : vector<2x256xf32>
    %407 = arith.negf %406 : vector<2x256xf32>
    %408 = math.exp %407 : vector<2x256xf32>
    %cst_85 = arith.constant 1.000000e+00 : f32
    %409 = vector.broadcast %cst_85 : f32 to vector<2x256xf32>
    %410 = arith.addf %409, %408 : vector<2x256xf32>
    %411 = arith.divf %409, %410 : vector<2x256xf32>
    %412 = vector.extract_strided_slice %406 {offsets = [0, 64], sizes = [2, 32], strides = [1, 1]} : vector<2x256xf32> to vector<2x32xf32>
    %413 = vector.extract_strided_slice %406 {offsets = [0, 192], sizes = [2, 32], strides = [1, 1]} : vector<2x256xf32> to vector<2x32xf32>
    %414 = tpu.concatenate %412, %413 in 1 : vector<2x32xf32>, vector<2x32xf32> -> vector<2x64xf32>
    %415 = math.tanh %414 : vector<2x64xf32>
    %416 = vector.extract_strided_slice %411 {offsets = [0, 0], sizes = [2, 32], strides = [1, 1]} : vector<2x256xf32> to vector<2x32xf32>
    %417 = vector.extract_strided_slice %411 {offsets = [0, 128], sizes = [2, 32], strides = [1, 1]} : vector<2x256xf32> to vector<2x32xf32>
    %418 = tpu.concatenate %416, %417 in 1 : vector<2x32xf32>, vector<2x32xf32> -> vector<2x64xf32>
    %419 = vector.extract_strided_slice %411 {offsets = [0, 32], sizes = [2, 32], strides = [1, 1]} : vector<2x256xf32> to vector<2x32xf32>
    %420 = vector.extract_strided_slice %411 {offsets = [0, 160], sizes = [2, 32], strides = [1, 1]} : vector<2x256xf32> to vector<2x32xf32>
    %421 = tpu.concatenate %419, %420 in 1 : vector<2x32xf32>, vector<2x32xf32> -> vector<2x64xf32>
    %422 = vector.extract_strided_slice %411 {offsets = [0, 96], sizes = [2, 32], strides = [1, 1]} : vector<2x256xf32> to vector<2x32xf32>
    %423 = vector.extract_strided_slice %411 {offsets = [0, 224], sizes = [2, 32], strides = [1, 1]} : vector<2x256xf32> to vector<2x32xf32>
    %424 = tpu.concatenate %422, %423 in 1 : vector<2x32xf32>, vector<2x32xf32> -> vector<2x64xf32>
    %425 = arith.mulf %421, %395 : vector<2x64xf32>
    %426 = arith.mulf %418, %415 : vector<2x64xf32>
    %427 = arith.addf %425, %426 : vector<2x64xf32>
    %428 = math.tanh %427 : vector<2x64xf32>
    %429 = arith.mulf %424, %428 : vector<2x64xf32>
    %430 = vector.extract_strided_slice %429 {offsets = [0, 0], sizes = [2, 32], strides = [1, 1]} : vector<2x64xf32> to vector<2x32xf32>
    %c8_86 = arith.constant 8 : index
    %c0_87 = arith.constant 0 : index
    %431 = vector.load %arg11[%c8_86, %c0_87] : memref<16x64xf32, #tpu.memory_space<vmem>>, vector<2x32xf32>
    tpu.vector_store %arg11[%c8_86, %c0_87], %430 {strides = array<i32>} : memref<16x64xf32, #tpu.memory_space<vmem>>, vector<2x32xf32>,
    %432 = vector.extract_strided_slice %429 {offsets = [0, 32], sizes = [2, 32], strides = [1, 1]} : vector<2x64xf32> to vector<2x32xf32>
    %c6_88 = arith.constant 6 : index
    %c32_89 = arith.constant 32 : index
    %433 = vector.load %arg11[%c6_88, %c32_89] : memref<16x64xf32, #tpu.memory_space<vmem>>, vector<2x32xf32>
    tpu.vector_store %arg11[%c6_88, %c32_89], %432 {strides = array<i32>} : memref<16x64xf32, #tpu.memory_space<vmem>>, vector<2x32xf32>,
    %cst_90 = arith.constant dense<0.000000e+00> : vector<2x256xf32>
    %434 = tpu.matmul %429, %271, %cst_90 {dimension_numbers = #tpu.dot_dimension_numbers<[1], [0], [0], [1], [0, 0, 1, 1], [], []>} : vector<2x64xf32>, vector<64x256xf32>, vector<2x256xf32> -> vector<2x256xf32>
    %435 = vector.extract_strided_slice %270 {offsets = [10, 0], sizes = [2, 128], strides = [1, 1]} : vector<16x256xf32> to vector<2x128xf32>
    %436 = vector.extract_strided_slice %270 {offsets = [4, 128], sizes = [2, 128], strides = [1, 1]} : vector<16x256xf32> to vector<2x128xf32>
    %437 = tpu.concatenate %435, %436 in 1 : vector<2x128xf32>, vector<2x128xf32> -> vector<2x256xf32>
    %438 = arith.addf %437, %434 : vector<2x256xf32>
    %439 = arith.negf %438 : vector<2x256xf32>
    %440 = math.exp %439 : vector<2x256xf32>
    %cst_91 = arith.constant 1.000000e+00 : f32
    %441 = vector.broadcast %cst_91 : f32 to vector<2x256xf32>
    %442 = arith.addf %441, %440 : vector<2x256xf32>
    %443 = arith.divf %441, %442 : vector<2x256xf32>
    %444 = vector.extract_strided_slice %438 {offsets = [0, 64], sizes = [2, 32], strides = [1, 1]} : vector<2x256xf32> to vector<2x32xf32>
    %445 = vector.extract_strided_slice %438 {offsets = [0, 192], sizes = [2, 32], strides = [1, 1]} : vector<2x256xf32> to vector<2x32xf32>
    %446 = tpu.concatenate %444, %445 in 1 : vector<2x32xf32>, vector<2x32xf32> -> vector<2x64xf32>
    %447 = math.tanh %446 : vector<2x64xf32>
    %448 = vector.extract_strided_slice %443 {offsets = [0, 0], sizes = [2, 32], strides = [1, 1]} : vector<2x256xf32> to vector<2x32xf32>
    %449 = vector.extract_strided_slice %443 {offsets = [0, 128], sizes = [2, 32], strides = [1, 1]} : vector<2x256xf32> to vector<2x32xf32>
    %450 = tpu.concatenate %448, %449 in 1 : vector<2x32xf32>, vector<2x32xf32> -> vector<2x64xf32>
    %451 = vector.extract_strided_slice %443 {offsets = [0, 32], sizes = [2, 32], strides = [1, 1]} : vector<2x256xf32> to vector<2x32xf32>
    %452 = vector.extract_strided_slice %443 {offsets = [0, 160], sizes = [2, 32], strides = [1, 1]} : vector<2x256xf32> to vector<2x32xf32>
    %453 = tpu.concatenate %451, %452 in 1 : vector<2x32xf32>, vector<2x32xf32> -> vector<2x64xf32>
    %454 = vector.extract_strided_slice %443 {offsets = [0, 96], sizes = [2, 32], strides = [1, 1]} : vector<2x256xf32> to vector<2x32xf32>
    %455 = vector.extract_strided_slice %443 {offsets = [0, 224], sizes = [2, 32], strides = [1, 1]} : vector<2x256xf32> to vector<2x32xf32>
    %456 = tpu.concatenate %454, %455 in 1 : vector<2x32xf32>, vector<2x32xf32> -> vector<2x64xf32>
    %457 = arith.mulf %453, %427 : vector<2x64xf32>
    %458 = arith.mulf %450, %447 : vector<2x64xf32>
    %459 = arith.addf %457, %458 : vector<2x64xf32>
    %460 = math.tanh %459 : vector<2x64xf32>
    %461 = arith.mulf %456, %460 : vector<2x64xf32>
    %462 = vector.extract_strided_slice %461 {offsets = [0, 0], sizes = [2, 32], strides = [1, 1]} : vector<2x64xf32> to vector<2x32xf32>
    %c10_92 = arith.constant 10 : index
    %c0_93 = arith.constant 0 : index
    %463 = vector.load %arg11[%c10_92, %c0_93] : memref<16x64xf32, #tpu.memory_space<vmem>>, vector<2x32xf32>
    tpu.vector_store %arg11[%c10_92, %c0_93], %462 {strides = array<i32>} : memref<16x64xf32, #tpu.memory_space<vmem>>, vector<2x32xf32>,
    %464 = vector.extract_strided_slice %461 {offsets = [0, 32], sizes = [2, 32], strides = [1, 1]} : vector<2x64xf32> to vector<2x32xf32>
    %c4_94 = arith.constant 4 : index
    %c32_95 = arith.constant 32 : index
    %465 = vector.load %arg11[%c4_94, %c32_95] : memref<16x64xf32, #tpu.memory_space<vmem>>, vector<2x32xf32>
    tpu.vector_store %arg11[%c4_94, %c32_95], %464 {strides = array<i32>} : memref<16x64xf32, #tpu.memory_space<vmem>>, vector<2x32xf32>,
    %cst_96 = arith.constant dense<0.000000e+00> : vector<2x256xf32>
    %466 = tpu.matmul %461, %271, %cst_96 {dimension_numbers = #tpu.dot_dimension_numbers<[1], [0], [0], [1], [0, 0, 1, 1], [], []>} : vector<2x64xf32>, vector<64x256xf32>, vector<2x256xf32> -> vector<2x256xf32>
    %467 = vector.extract_strided_slice %270 {offsets = [12, 0], sizes = [2, 128], strides = [1, 1]} : vector<16x256xf32> to vector<2x128xf32>
    %468 = vector.extract_strided_slice %270 {offsets = [2, 128], sizes = [2, 128], strides = [1, 1]} : vector<16x256xf32> to vector<2x128xf32>
    %469 = tpu.concatenate %467, %468 in 1 : vector<2x128xf32>, vector<2x128xf32> -> vector<2x256xf32>
    %470 = arith.addf %469, %466 : vector<2x256xf32>
    %471 = arith.negf %470 : vector<2x256xf32>
    %472 = math.exp %471 : vector<2x256xf32>
    %cst_97 = arith.constant 1.000000e+00 : f32
    %473 = vector.broadcast %cst_97 : f32 to vector<2x256xf32>
    %474 = arith.addf %473, %472 : vector<2x256xf32>
    %475 = arith.divf %473, %474 : vector<2x256xf32>
    %476 = vector.extract_strided_slice %470 {offsets = [0, 64], sizes = [2, 32], strides = [1, 1]} : vector<2x256xf32> to vector<2x32xf32>
    %477 = vector.extract_strided_slice %470 {offsets = [0, 192], sizes = [2, 32], strides = [1, 1]} : vector<2x256xf32> to vector<2x32xf32>
    %478 = tpu.concatenate %476, %477 in 1 : vector<2x32xf32>, vector<2x32xf32> -> vector<2x64xf32>
    %479 = math.tanh %478 : vector<2x64xf32>
    %480 = vector.extract_strided_slice %475 {offsets = [0, 0], sizes = [2, 32], strides = [1, 1]} : vector<2x256xf32> to vector<2x32xf32>
    %481 = vector.extract_strided_slice %475 {offsets = [0, 128], sizes = [2, 32], strides = [1, 1]} : vector<2x256xf32> to vector<2x32xf32>
    %482 = tpu.concatenate %480, %481 in 1 : vector<2x32xf32>, vector<2x32xf32> -> vector<2x64xf32>
    %483 = vector.extract_strided_slice %475 {offsets = [0, 32], sizes = [2, 32], strides = [1, 1]} : vector<2x256xf32> to vector<2x32xf32>
    %484 = vector.extract_strided_slice %475 {offsets = [0, 160], sizes = [2, 32], strides = [1, 1]} : vector<2x256xf32> to vector<2x32xf32>
    %485 = tpu.concatenate %483, %484 in 1 : vector<2x32xf32>, vector<2x32xf32> -> vector<2x64xf32>
    %486 = vector.extract_strided_slice %475 {offsets = [0, 96], sizes = [2, 32], strides = [1, 1]} : vector<2x256xf32> to vector<2x32xf32>
    %487 = vector.extract_strided_slice %475 {offsets = [0, 224], sizes = [2, 32], strides = [1, 1]} : vector<2x256xf32> to vector<2x32xf32>
    %488 = tpu.concatenate %486, %487 in 1 : vector<2x32xf32>, vector<2x32xf32> -> vector<2x64xf32>
    %489 = arith.mulf %485, %459 : vector<2x64xf32>
    %490 = arith.mulf %482, %479 : vector<2x64xf32>
    %491 = arith.addf %489, %490 : vector<2x64xf32>
    %492 = math.tanh %491 : vector<2x64xf32>
    %493 = arith.mulf %488, %492 : vector<2x64xf32>
    %494 = vector.extract_strided_slice %493 {offsets = [0, 0], sizes = [2, 32], strides = [1, 1]} : vector<2x64xf32> to vector<2x32xf32>
    %c12_98 = arith.constant 12 : index
    %c0_99 = arith.constant 0 : index
    %495 = vector.load %arg11[%c12_98, %c0_99] : memref<16x64xf32, #tpu.memory_space<vmem>>, vector<2x32xf32>
    tpu.vector_store %arg11[%c12_98, %c0_99], %494 {strides = array<i32>} : memref<16x64xf32, #tpu.memory_space<vmem>>, vector<2x32xf32>,
    %496 = vector.extract_strided_slice %493 {offsets = [0, 32], sizes = [2, 32], strides = [1, 1]} : vector<2x64xf32> to vector<2x32xf32>
    %c2_100 = arith.constant 2 : index
    %c32_101 = arith.constant 32 : index
    %497 = vector.load %arg11[%c2_100, %c32_101] : memref<16x64xf32, #tpu.memory_space<vmem>>, vector<2x32xf32>
    tpu.vector_store %arg11[%c2_100, %c32_101], %496 {strides = array<i32>} : memref<16x64xf32, #tpu.memory_space<vmem>>, vector<2x32xf32>,
    %cst_102 = arith.constant dense<0.000000e+00> : vector<2x256xf32>
    %498 = tpu.matmul %493, %271, %cst_102 {dimension_numbers = #tpu.dot_dimension_numbers<[1], [0], [0], [1], [0, 0, 1, 1], [], []>} : vector<2x64xf32>, vector<64x256xf32>, vector<2x256xf32> -> vector<2x256xf32>
    %499 = vector.extract_strided_slice %270 {offsets = [14, 0], sizes = [2, 128], strides = [1, 1]} : vector<16x256xf32> to vector<2x128xf32>
    %500 = vector.extract_strided_slice %270 {offsets = [0, 128], sizes = [2, 128], strides = [1, 1]} : vector<16x256xf32> to vector<2x128xf32>
    %501 = tpu.concatenate %499, %500 in 1 : vector<2x128xf32>, vector<2x128xf32> -> vector<2x256xf32>
    %502 = arith.addf %501, %498 : vector<2x256xf32>
    %503 = arith.negf %502 : vector<2x256xf32>
    %504 = math.exp %503 : vector<2x256xf32>
    %cst_103 = arith.constant 1.000000e+00 : f32
    %505 = vector.broadcast %cst_103 : f32 to vector<2x256xf32>
    %506 = arith.addf %505, %504 : vector<2x256xf32>
    %507 = arith.divf %505, %506 : vector<2x256xf32>
    %508 = vector.extract_strided_slice %502 {offsets = [0, 64], sizes = [2, 32], strides = [1, 1]} : vector<2x256xf32> to vector<2x32xf32>
    %509 = vector.extract_strided_slice %502 {offsets = [0, 192], sizes = [2, 32], strides = [1, 1]} : vector<2x256xf32> to vector<2x32xf32>
    %510 = tpu.concatenate %508, %509 in 1 : vector<2x32xf32>, vector<2x32xf32> -> vector<2x64xf32>
    %511 = math.tanh %510 : vector<2x64xf32>
    %512 = vector.extract_strided_slice %507 {offsets = [0, 0], sizes = [2, 32], strides = [1, 1]} : vector<2x256xf32> to vector<2x32xf32>
    %513 = vector.extract_strided_slice %507 {offsets = [0, 128], sizes = [2, 32], strides = [1, 1]} : vector<2x256xf32> to vector<2x32xf32>
    %514 = tpu.concatenate %512, %513 in 1 : vector<2x32xf32>, vector<2x32xf32> -> vector<2x64xf32>
    %515 = vector.extract_strided_slice %507 {offsets = [0, 32], sizes = [2, 32], strides = [1, 1]} : vector<2x256xf32> to vector<2x32xf32>
    %516 = vector.extract_strided_slice %507 {offsets = [0, 160], sizes = [2, 32], strides = [1, 1]} : vector<2x256xf32> to vector<2x32xf32>
    %517 = tpu.concatenate %515, %516 in 1 : vector<2x32xf32>, vector<2x32xf32> -> vector<2x64xf32>
    %518 = vector.extract_strided_slice %507 {offsets = [0, 96], sizes = [2, 32], strides = [1, 1]} : vector<2x256xf32> to vector<2x32xf32>
    %519 = vector.extract_strided_slice %507 {offsets = [0, 224], sizes = [2, 32], strides = [1, 1]} : vector<2x256xf32> to vector<2x32xf32>
    %520 = tpu.concatenate %518, %519 in 1 : vector<2x32xf32>, vector<2x32xf32> -> vector<2x64xf32>
    %521 = arith.mulf %517, %491 : vector<2x64xf32>
    %522 = arith.mulf %514, %511 : vector<2x64xf32>
    %523 = arith.addf %521, %522 : vector<2x64xf32>
    %524 = math.tanh %523 : vector<2x64xf32>
    %525 = arith.mulf %520, %524 : vector<2x64xf32>
    %526 = vector.extract_strided_slice %525 {offsets = [0, 0], sizes = [2, 32], strides = [1, 1]} : vector<2x64xf32> to vector<2x32xf32>
    %c14_104 = arith.constant 14 : index
    %c0_105 = arith.constant 0 : index
    %527 = vector.load %arg11[%c14_104, %c0_105] : memref<16x64xf32, #tpu.memory_space<vmem>>, vector<2x32xf32>
    tpu.vector_store %arg11[%c14_104, %c0_105], %526 {strides = array<i32>} : memref<16x64xf32, #tpu.memory_space<vmem>>, vector<2x32xf32>,
    %528 = vector.extract_strided_slice %525 {offsets = [0, 32], sizes = [2, 32], strides = [1, 1]} : vector<2x64xf32> to vector<2x32xf32>
    %c0_106 = arith.constant 0 : index
    %c32_107 = arith.constant 32 : index
    %529 = vector.load %arg11[%c0_106, %c32_107] : memref<16x64xf32, #tpu.memory_space<vmem>>, vector<2x32xf32>
    tpu.vector_store %arg11[%c0_106, %c32_107], %528 {strides = array<i32>} : memref<16x64xf32, #tpu.memory_space<vmem>>, vector<2x32xf32>,
    %c0_108 = arith.constant 0 : index
    %c0_109 = arith.constant 0 : index
    %530 = vector.load %arg11[%c0_108, %c0_109] : memref<16x64xf32, #tpu.memory_space<vmem>>, vector<16x64xf32>
    %531 = vector.extract_strided_slice %530 {offsets = [14, 0], sizes = [2, 64], strides = [1, 1]} : vector<16x64xf32> to vector<2x64xf32>
    %c0_110 = arith.constant 0 : index
    %c0_111 = arith.constant 0 : index
    %532 = vector.load %arg7[%c0_110, %c0_111] : memref<64x3xf32, #tpu.memory_space<vmem>>, vector<64x3xf32>
    %cst_112 = arith.constant dense<0.000000e+00> : vector<2x3xf32>
    %533 = tpu.matmul %531, %532, %cst_112 {dimension_numbers = #tpu.dot_dimension_numbers<[1], [0], [0], [1], [0, 0, 1, 1], [], []>} : vector<2x64xf32>, vector<64x3xf32>, vector<2x3xf32> -> vector<2x3xf32>
    %c0_113 = arith.constant 0 : index
    %c0_114 = arith.constant 0 : index
    %534 = vector.load %arg8[%c0_113, %c0_114] : memref<1x3xf32, #tpu.memory_space<vmem>>, vector<1x3xf32>
    %535 = vector.broadcast %534 : vector<1x3xf32> to vector<2x3xf32>
    %536 = arith.addf %533, %535 : vector<2x3xf32>
    %c0_115 = arith.constant 0 : index
    %c0_116 = arith.constant 0 : index
    %537 = vector.load %arg9[%c0_115, %c0_116] : memref<2x3xf32, #tpu.memory_space<vmem>>, vector<2x3xf32>
    tpu.vector_store %arg9[%c0_115, %c0_116], %536 {strides = array<i32>} : memref<2x3xf32, #tpu.memory_space<vmem>>, vector<2x3xf32>,
    return
  }
}

</mosaic_0001>

<llo_original>
// kernel: fall_detection_rnn_forward.1
$region0: #{fall_detection_rnn_forward.1}
  #allocation0 [shape = 'u32[]', space=smem, size = 0x4, offset = 0x4, fixed_abs, tag = 'smem constant byte address 0x4 - core index']
  #allocation1 [shape = 'u32[144,128]{1,0:T(1,128)}', space=vmem, size = 0x12000, scoped, tag = 'internal scratch']
  #allocation2 [shape = 'f32[16,64]{1,0:T(8,128)}', space=vmem, size = 0x2000, scoped, tag = 'scratch operand']
  #allocation3 [shape = 'f32[16,64]{1,0:T(8,128)}', space=vmem, size = 0x2000, scoped, tag = 'scratch operand']
  %s0 = inlined_call_operand.vmem [shape: f32[16,16], index: 0, kind: input, shape index: {}]
  %s1 = inlined_call_operand.vmem [shape: f32[16,256], index: 1, kind: input, shape index: {}]
  %s2 = inlined_call_operand.vmem [shape: f32[64,256], index: 2, kind: input, shape index: {}]
  %s3 = inlined_call_operand.vmem [shape: f32[1,256], index: 3, kind: input, shape index: {}]
  %s4 = inlined_call_operand.vmem [shape: f32[64,256], index: 4, kind: input, shape index: {}]
  %s5 = inlined_call_operand.vmem [shape: f32[64,256], index: 5, kind: input, shape index: {}]
  %s6 = inlined_call_operand.vmem [shape: f32[1,256], index: 6, kind: input, shape index: {}]
  %s7 = inlined_call_operand.vmem [shape: f32[64,3], index: 7, kind: input, shape index: {}]
  %s8 = inlined_call_operand.vmem [shape: f32[1,3], index: 8, kind: input, shape index: {}]
  %s9 = inlined_call_operand.hbm [shape: f32[2,3], index: 9, kind: output, shape index: {}]
  %s10 = sld [smem:[#allocation0]]
  $region46: #{fall_detection_rnn_forward.1} parent=0
    _
  %s12 = ssub.s32 1, %s10
  %s13 = scalar_select 0, %s12, %s10
  $region1: #{fall_detection_rnn_forward.1} parent=0
    #allocation4 [shape = 'u8[1024]{0}', space=vmem, size = 0x400, scoped, tag = 'output window, operand 0, single buffered']
    #allocation5 [shape = 's32[1]{0}', space=sflag, size = 0x4, scoped, tag = 'scoped memory for fall_detection_rnn_forward.1']
    %14 = vsyncpa [#allocation5], 0
    // Predicated region
    $region2: #{fall_detection_rnn_forward.1} parent=1 // pred_check
      _
    $region3: #{fall_detection_rnn_forward.1} parent=1 // pred_check_branch
      %16 = sbr.rel (0) target = $region5
    $region4: #{fall_detection_rnn_forward.1} parent=1 // pred_region
      _
    $region5: #{fall_detection_rnn_forward.1} parent=1 // pred_fallthru
      _
    // Predicated region
    $region6: #{fall_detection_rnn_forward.1} parent=1 // pred_check
      _
    $region7: #{fall_detection_rnn_forward.1} parent=1 // pred_check_branch
      %18 = sbr.rel (0) target = $region9
    $region8: #{fall_detection_rnn_forward.1} parent=1 // pred_region
      _
    $region9: #{fall_detection_rnn_forward.1} parent=1 // pred_fallthru
      _
    // Predicated region
    $region10: #{fall_detection_rnn_forward.1} parent=1 // pred_check
      _
    $region11: #{fall_detection_rnn_forward.1} parent=1 // pred_check_branch
      %20 = sbr.rel (0) target = $region13
    $region12: #{fall_detection_rnn_forward.1} parent=1 // pred_region
      _
    $region13: #{fall_detection_rnn_forward.1} parent=1 // pred_fallthru
      _
    // Predicated region
    $region14: #{fall_detection_rnn_forward.1} parent=1 // pred_check
      _
    $region15: #{fall_detection_rnn_forward.1} parent=1 // pred_check_branch
      %22 = sbr.rel (0) target = $region17
    $region16: #{fall_detection_rnn_forward.1} parent=1 // pred_region
      _
    $region17: #{fall_detection_rnn_forward.1} parent=1 // pred_fallthru
      _
    // Predicated region
    $region18: #{fall_detection_rnn_forward.1} parent=1 // pred_check
      _
    $region19: #{fall_detection_rnn_forward.1} parent=1 // pred_check_branch
      %24 = sbr.rel (0) target = $region21
    $region20: #{fall_detection_rnn_forward.1} parent=1 // pred_region
      _
    $region21: #{fall_detection_rnn_forward.1} parent=1 // pred_fallthru
      _
    // Predicated region
    $region22: #{fall_detection_rnn_forward.1} parent=1 // pred_check
      _
    $region23: #{fall_detection_rnn_forward.1} parent=1 // pred_check_branch
      %26 = sbr.rel (0) target = $region25
    $region24: #{fall_detection_rnn_forward.1} parent=1 // pred_region
      _
    $region25: #{fall_detection_rnn_forward.1} parent=1 // pred_fallthru
      _
    // Predicated region
    $region26: #{fall_detection_rnn_forward.1} parent=1 // pred_check
      _
    $region27: #{fall_detection_rnn_forward.1} parent=1 // pred_check_branch
      %28 = sbr.rel (0) target = $region29
    $region28: #{fall_detection_rnn_forward.1} parent=1 // pred_region
      _
    $region29: #{fall_detection_rnn_forward.1} parent=1 // pred_fallthru
      _
    // Predicated region
    $region30: #{fall_detection_rnn_forward.1} parent=1 // pred_check
      _
    $region31: #{fall_detection_rnn_forward.1} parent=1 // pred_check_branch
      %30 = sbr.rel (0) target = $region33
    $region32: #{fall_detection_rnn_forward.1} parent=1 // pred_region
      _
    $region33: #{fall_detection_rnn_forward.1} parent=1 // pred_fallthru
      _
    // Predicated region
    $region34: #{fall_detection_rnn_forward.1} parent=1 // pred_check
      _
    $region35: #{fall_detection_rnn_forward.1} parent=1 // pred_check_branch
      %32 = sbr.rel (0) target = $region37
    $region36: #{fall_detection_rnn_forward.1} parent=1 // pred_region
      _
    $region37: #{fall_detection_rnn_forward.1} parent=1 // pred_fallthru
      _
    %v33 = vld [vmem:[%s0] sm:$0xff]
    %v34 = vld [vmem:[%s0 + $0x8] sm:$0xff]
    %v35 = vld [vmem:[%s1] sm:$0xff]
    %v36 = vld [vmem:[%s1 + $0x8] sm:$0xff]
    %v37 = vld [vmem:[%s1 + $0x10] sm:$0xff]
    %v38 = vld [vmem:[%s1 + $0x18] sm:$0xff]
    %v39 = vld [vmem:[%s3] sm:$0x3]
    %v41 = vlaneseq
    %v42 = vshrl.u32 %v41, 7
    %v43 = vsub.s32 0, %v42
    %v44 = vrot.slane %v39, %v43
    %v45 = vlaneseq
    %v46 = vshrl.u32 %v45, 7
    %v47 = vsub.s32 1, %v46
    %v48 = vrot.slane %v39, %v47
    %vm51 = vcmask 130048
    %v53 = vsel %vm51, %v33, 0
    %v56 = vsel %vm51, %v34, 0
    %58 = vmatprep.subr.mxu0 %v36
    %59 = vmatpush1.msra.mxu0 %v35
    %60 = vmatprep.subr.mxu0 %v38
    %61 = vmatpush1.msra.mxu0 %v37
    %62 = vmatprep.subr.mxu0 0.0
    %63 = vmatpush1.msra.mxu0 0.0
    %64 = vmatprep.subr.mxu0 0.0
    %65 = vmatpush1.msra.mxu0 0.0
    %66 = vmatprep.subr.mxu0 0.0
    %67 = vmatpush1.msra.mxu0 0.0
    %68 = vmatprep.subr.mxu0 0.0
    %69 = vmatpush1.msra.mxu0 0.0
    %70 = vmatprep.subr.mxu0 0.0
    %71 = vmatpush1.msra.mxu0 0.0
    %72 = vmatprep.subr.mxu0 0.0
    %73 = vmatpush1.msra.mxu0 0.0
    %74 = vmatprep.subr.mxu0 0.0
    %75 = vmatpush1.msra.mxu0 0.0
    %76 = vmatprep.subr.mxu0 0.0
    %77 = vmatpush1.msra.mxu0 0.0
    %78 = vmatprep.subr.mxu0 0.0
    %79 = vmatpush1.msra.mxu0 0.0
    %80 = vmatprep.subr.mxu0 0.0
    %81 = vmatpush1.msra.mxu0 0.0
    %82 = vmatprep.subr.mxu0 0.0
    %83 = vmatpush1.msra.mxu0 0.0
    %84 = vmatprep.subr.mxu0 0.0
    %85 = vmatpush1.msra.mxu0 0.0
    %86 = vmatprep.subr.mxu0 0.0
    %87 = vmatpush1.msra.mxu0 0.0
    %88 = vmatprep.subr.mxu0 0.0
    %89 = vmatpush1.msra.mxu0 0.0
    %90 = vmatprep.subr.mxu0 0.0
    %91 = vmatpush1.msra.mxu0 0.0
    %92 = vmatprep.subr.mxu0 0.0
    %93 = vmatpush1.msra.mxu0 0.0
    %94 = vmatprep.subr.mxu0 0.0
    %95 = vmatpush1.msra.mxu0 0.0
    %96 = vmatprep.subr.mxu0 0.0
    %97 = vmatpush1.msra.mxu0 0.0
    %98 = vmatprep.subr.mxu0 0.0
    %99 = vmatpush1.msra.mxu0 0.0
    %100 = vmatprep.subr.mxu0 0.0
    %101 = vmatpush1.msra.mxu0 0.0
    %102 = vmatprep.subr.mxu0 0.0
    %103 = vmatpush1.msra.mxu0 0.0
    %104 = vmatprep.subr.mxu0 0.0
    %105 = vmatpush1.msra.mxu0 0.0
    %106 = vmatprep.subr.mxu0 0.0
    %107 = vmatpush1.msra.mxu0 0.0
    %108 = vmatprep.subr.mxu0 0.0
    %109 = vmatpush1.msra.mxu0 0.0
    %110 = vmatprep.subr.mxu0 0.0
    %111 = vmatpush1.msra.mxu0 0.0
    %112 = vmatprep.subr.mxu0 0.0
    %113 = vmatpush1.msra.mxu0 0.0
    %114 = vmatprep.subr.mxu0 0.0
    %115 = vmatpush1.msra.mxu0 0.0
    %116 = vmatprep.subr.mxu0 0.0
    %117 = vmatpush1.msra.mxu0 0.0
    %118 = vmatprep.subr.mxu0 0.0
    %119 = vmatpush1.msra.mxu0 0.0
    %120 = vmatprep.subr.mxu0 0.0
    %121 = vmatpush1.msra.mxu0 0.0
    %122 = vmatprep.mubr.f32.mxu0 0.0
    %123 = vmatmul.mubr.f32.gmra.mrb[0].mxu0 %v53
    %v124 = vpop.f32.mrb[0].mxu0
    %v125 = vadd.f32 %v44, %v124
    %v126 = vpop.f32.mrb[0].mxu0
    %v127 = vadd.f32 %v48, %v126
    %128 = vmatprep.mubr.f32.mxu0 0.0
    %129 = vmatmul.mubr.f32.gmra.mrb[0].mxu0 %v56
    %v130 = vpop.f32.mrb[0].mxu0
    %v131 = vadd.f32 %v44, %v130
    %v132 = vpop.f32.mrb[0].mxu0
    %v133 = vadd.f32 %v48, %v132
    %134 = vdwg.mxu0
    %v135 = vld [vmem:[%s2] sm:$0xff]
    %v136 = vld [vmem:[%s2 + $0x8] sm:$0xff]
    %v137 = vld [vmem:[%s2 + $0x10] sm:$0xff]
    %v138 = vld [vmem:[%s2 + $0x18] sm:$0xff]
    %v139 = vld [vmem:[%s2 + $0x20] sm:$0xff]
    %v140 = vld [vmem:[%s2 + $0x28] sm:$0xff]
    %v141 = vld [vmem:[%s2 + $0x30] sm:$0xff]
    %v142 = vld [vmem:[%s2 + $0x38] sm:$0xff]
    %v143 = vld [vmem:[%s2 + $0x40] sm:$0xff]
    %v144 = vld [vmem:[%s2 + $0x48] sm:$0xff]
    %v145 = vld [vmem:[%s2 + $0x50] sm:$0xff]
    %v146 = vld [vmem:[%s2 + $0x58] sm:$0xff]
    %v147 = vld [vmem:[%s2 + $0x60] sm:$0xff]
    %v148 = vld [vmem:[%s2 + $0x68] sm:$0xff]
    %v149 = vld [vmem:[%s2 + $0x70] sm:$0xff]
    %v150 = vld [vmem:[%s2 + $0x78] sm:$0xff]
    %vm151 = vcmask 523264
    %v153 = vsel %vm151, 0.0, 0
    %155 = vmatprep.subr.mxu0 %v136
    %156 = vmatpush1.msra.mxu0 %v135
    %157 = vmatprep.subr.mxu0 %v138
    %158 = vmatpush1.msra.mxu0 %v137
    %159 = vmatprep.subr.mxu0 %v140
    %160 = vmatpush1.msra.mxu0 %v139
    %161 = vmatprep.subr.mxu0 %v142
    %162 = vmatpush1.msra.mxu0 %v141
    %163 = vmatprep.subr.mxu0 %v144
    %164 = vmatpush1.msra.mxu0 %v143
    %165 = vmatprep.subr.mxu0 %v146
    %166 = vmatpush1.msra.mxu0 %v145
    %167 = vmatprep.subr.mxu0 %v148
    %168 = vmatpush1.msra.mxu0 %v147
    %169 = vmatprep.subr.mxu0 %v150
    %170 = vmatpush1.msra.mxu0 %v149
    %171 = vmatprep.subr.mxu0 0.0
    %172 = vmatpush1.msra.mxu0 0.0
    %173 = vmatprep.subr.mxu0 0.0
    %174 = vmatpush1.msra.mxu0 0.0
    %175 = vmatprep.subr.mxu0 0.0
    %176 = vmatpush1.msra.mxu0 0.0
    %177 = vmatprep.subr.mxu0 0.0
    %178 = vmatpush1.msra.mxu0 0.0
    %179 = vmatprep.subr.mxu0 0.0
    %180 = vmatpush1.msra.mxu0 0.0
    %181 = vmatprep.subr.mxu0 0.0
    %182 = vmatpush1.msra.mxu0 0.0
    %183 = vmatprep.subr.mxu0 0.0
    %184 = vmatpush1.msra.mxu0 0.0
    %185 = vmatprep.subr.mxu0 0.0
    %186 = vmatpush1.msra.mxu0 0.0
    %187 = vmatprep.subr.mxu0 0.0
    %188 = vmatpush1.msra.mxu0 0.0
    %189 = vmatprep.subr.mxu0 0.0
    %190 = vmatpush1.msra.mxu0 0.0
    %191 = vmatprep.subr.mxu0 0.0
    %192 = vmatpush1.msra.mxu0 0.0
    %193 = vmatprep.subr.mxu0 0.0
    %194 = vmatpush1.msra.mxu0 0.0
    %195 = vmatprep.subr.mxu0 0.0
    %196 = vmatpush1.msra.mxu0 0.0
    %197 = vmatprep.subr.mxu0 0.0
    %198 = vmatpush1.msra.mxu0 0.0
    %199 = vmatprep.subr.mxu0 0.0
    %200 = vmatpush1.msra.mxu0 0.0
    %201 = vmatprep.subr.mxu0 0.0
    %202 = vmatpush1.msra.mxu0 0.0
    %203 = vmatprep.subr.mxu0 0.0
    %204 = vmatpush1.msra.mxu0 0.0
    %205 = vmatprep.subr.mxu0 0.0
    %206 = vmatpush1.msra.mxu0 0.0
    %207 = vmatprep.subr.mxu0 0.0
    %208 = vmatpush1.msra.mxu0 0.0
    %209 = vmatprep.subr.mxu0 0.0
    %210 = vmatpush1.msra.mxu0 0.0
    %211 = vmatprep.subr.mxu0 0.0
    %212 = vmatpush1.msra.mxu0 0.0
    %213 = vmatprep.subr.mxu0 0.0
    %214 = vmatpush1.msra.mxu0 0.0
    %215 = vmatprep.subr.mxu0 0.0
    %216 = vmatpush1.msra.mxu0 0.0
    %217 = vmatprep.subr.mxu0 0.0
    %218 = vmatpush1.msra.mxu0 0.0
    %219 = vmatprep.mubr.f32.mxu0 0.0
    %220 = vmatmul.mubr.f32.gmra.mrb[0].mxu0 %v153
    %v221 = vpop.f32.mrb[0].mxu0
    %v222 = vadd.f32 0.0, %v221
    %v223 = vpop.f32.mrb[0].mxu0
    %v224 = vadd.f32 0.0, %v223
    %225 = vdwg.mxu0
    %v227 = vrot.slane %v133, 6
    %v229 = vadd.f32 %v125, %v222
    %v230 = vadd.f32 %v227, %v224
    %v231 = vxor.u32 %v229, 2147483648
    %v232 = vxor.u32 %v230, 2147483648
    %v233 = vmul.f32 %v231, 1.442695
    %v234 = vpow.pop %v233
    %v235 = vmul.f32 %v232, 1.442695
    %v236 = vpow.pop %v235
    %v237 = vadd.f32 %v234, 1.0
    %v238 = vadd.f32 %v236, 1.0
    %v239 = vrcp.pop %v237
    %v240 = vmul.f32 1.0, %v239
    %v241 = vrcp.pop %v238
    %v242 = vmul.f32 1.0, %v241
    %244 = vrot.lane.b32.xlu0 %v229, 64
    %v245 = vpop.permute.xlu0 %244
    %248 = vrot.lane.b32.xlu0 %v230, 96
    %v249 = vpop.permute.xlu0 %248
    %vm251 = vcmask 261120
    %v252 = vsel %vm251, %v245, %v249
    %v253 = vtanh.pop %v252
    %255 = vrot.lane.b32.xlu0 %v242, 32
    %v256 = vpop.permute.xlu0 %255
    %v258 = vsel %vm251, %v240, %v256
    %260 = vrot.lane.b32.xlu0 %v240, 96
    %v261 = vpop.permute.xlu0 %260
    %v263 = vsel %vm251, %v261, %v242
    %264 = vrot.lane.b32.xlu0 %v240, 32
    %v265 = vpop.permute.xlu0 %264
    %267 = vrot.lane.b32.xlu0 %v242, 64
    %v268 = vpop.permute.xlu0 %267
    %v270 = vsel %vm251, %v265, %v268
    %v271 = vmul.f32 %v263, 0.0
    %v272 = vmul.f32 %v258, %v253
    %v273 = vadd.f32 %v271, %v272
    %v274 = vtanh.pop %v273
    %v275 = vmul.f32 %v270, %v274
    %vm276 = vcmask 254976
    %277 = vst.msk [vmem:[#allocation2] sm:$0x3] %vm276, %v275
    %vm278 = vcmask 517376
    %279 = vst.msk [vmem:[#allocation2 + $0xe] sm:$0x3] %vm278, %v275
    %v281 = vsel %vm151, %v275, 0
    %283 = vmatprep.subr.mxu0 %v136
    %284 = vmatpush1.msra.mxu0 %v135
    %285 = vmatprep.subr.mxu0 %v138
    %286 = vmatpush1.msra.mxu0 %v137
    %287 = vmatprep.subr.mxu0 %v140
    %288 = vmatpush1.msra.mxu0 %v139
    %289 = vmatprep.subr.mxu0 %v142
    %290 = vmatpush1.msra.mxu0 %v141
    %291 = vmatprep.subr.mxu0 %v144
    %292 = vmatpush1.msra.mxu0 %v143
    %293 = vmatprep.subr.mxu0 %v146
    %294 = vmatpush1.msra.mxu0 %v145
    %295 = vmatprep.subr.mxu0 %v148
    %296 = vmatpush1.msra.mxu0 %v147
    %297 = vmatprep.subr.mxu0 %v150
    %298 = vmatpush1.msra.mxu0 %v149
    %299 = vmatprep.subr.mxu0 0.0
    %300 = vmatpush1.msra.mxu0 0.0
    %301 = vmatprep.subr.mxu0 0.0
    %302 = vmatpush1.msra.mxu0 0.0
    %303 = vmatprep.subr.mxu0 0.0
    %304 = vmatpush1.msra.mxu0 0.0
    %305 = vmatprep.subr.mxu0 0.0
    %306 = vmatpush1.msra.mxu0 0.0
    %307 = vmatprep.subr.mxu0 0.0
    %308 = vmatpush1.msra.mxu0 0.0
    %309 = vmatprep.subr.mxu0 0.0
    %310 = vmatpush1.msra.mxu0 0.0
    %311 = vmatprep.subr.mxu0 0.0
    %312 = vmatpush1.msra.mxu0 0.0
    %313 = vmatprep.subr.mxu0 0.0
    %314 = vmatpush1.msra.mxu0 0.0
    %315 = vmatprep.subr.mxu0 0.0
    %316 = vmatpush1.msra.mxu0 0.0
    %317 = vmatprep.subr.mxu0 0.0
    %318 = vmatpush1.msra.mxu0 0.0
    %319 = vmatprep.subr.mxu0 0.0
    %320 = vmatpush1.msra.mxu0 0.0
    %321 = vmatprep.subr.mxu0 0.0
    %322 = vmatpush1.msra.mxu0 0.0
    %323 = vmatprep.subr.mxu0 0.0
    %324 = vmatpush1.msra.mxu0 0.0
    %325 = vmatprep.subr.mxu0 0.0
    %326 = vmatpush1.msra.mxu0 0.0
    %327 = vmatprep.subr.mxu0 0.0
    %328 = vmatpush1.msra.mxu0 0.0
    %329 = vmatprep.subr.mxu0 0.0
    %330 = vmatpush1.msra.mxu0 0.0
    %331 = vmatprep.subr.mxu0 0.0
    %332 = vmatpush1.msra.mxu0 0.0
    %333 = vmatprep.subr.mxu0 0.0
    %334 = vmatpush1.msra.mxu0 0.0
    %335 = vmatprep.subr.mxu0 0.0
    %336 = vmatpush1.msra.mxu0 0.0
    %337 = vmatprep.subr.mxu0 0.0
    %338 = vmatpush1.msra.mxu0 0.0
    %339 = vmatprep.subr.mxu0 0.0
    %340 = vmatpush1.msra.mxu0 0.0
    %341 = vmatprep.subr.mxu0 0.0
    %342 = vmatpush1.msra.mxu0 0.0
    %343 = vmatprep.subr.mxu0 0.0
    %344 = vmatpush1.msra.mxu0 0.0
    %345 = vmatprep.subr.mxu0 0.0
    %346 = vmatpush1.msra.mxu0 0.0
    %347 = vmatprep.mubr.f32.mxu0 0.0
    %348 = vmatmul.mubr.f32.gmra.mrb[0].mxu0 %v281
    %v349 = vpop.f32.mrb[0].mxu0
    %v350 = vadd.f32 0.0, %v349
    %v351 = vpop.f32.mrb[0].mxu0
    %v352 = vadd.f32 0.0, %v351
    %353 = vdwg.mxu0
    %v354 = vrot.slane %v133, 2
    %v358 = vrot.slane %v350, 6
    %v359 = vrot.slane %v352, 6
    %v362 = vadd.f32 %v125, %v358
    %v363 = vadd.f32 %v354, %v359
    %v364 = vxor.u32 %v362, 2147483648
    %v365 = vxor.u32 %v363, 2147483648
    %v366 = vmul.f32 %v364, 1.442695
    %v367 = vpow.pop %v366
    %v368 = vmul.f32 %v365, 1.442695
    %v369 = vpow.pop %v368
    %v370 = vadd.f32 %v367, 1.0
    %v371 = vadd.f32 %v369, 1.0
    %v372 = vrcp.pop %v370
    %v373 = vmul.f32 1.0, %v372
    %v374 = vrcp.pop %v371
    %v375 = vmul.f32 1.0, %v374
    %377 = vrot.lane.b32.xlu0 %v362, 64
    %v378 = vpop.permute.xlu0 %377
    %381 = vrot.lane.b32.xlu0 %v363, 96
    %v382 = vpop.permute.xlu0 %381
    %v384 = vsel %vm251, %v378, %v382
    %v385 = vtanh.pop %v384
    %387 = vrot.lane.b32.xlu0 %v375, 32
    %v388 = vpop.permute.xlu0 %387
    %v390 = vsel %vm251, %v373, %v388
    %392 = vrot.lane.b32.xlu0 %v373, 96
    %v393 = vpop.permute.xlu0 %392
    %v395 = vsel %vm251, %v393, %v375
    %396 = vrot.lane.b32.xlu0 %v373, 32
    %v397 = vpop.permute.xlu0 %396
    %399 = vrot.lane.b32.xlu0 %v375, 64
    %v400 = vpop.permute.xlu0 %399
    %v402 = vsel %vm251, %v397, %v400
    %v404 = vrot.slane %v273, 6
    %v406 = vmul.f32 %v395, %v404
    %v407 = vmul.f32 %v390, %v385
    %v408 = vadd.f32 %v406, %v407
    %v409 = vtanh.pop %v408
    %v410 = vmul.f32 %v402, %v409
    %vm411 = vcmask 257026
    %412 = vst.msk [vmem:[#allocation2] sm:$0xc] %vm411, %v410
    %vm413 = vcmask 519426
    %414 = vst.msk [vmem:[#allocation2 + $0xa] sm:$0xc] %vm413, %v410
    %v416 = vrot.slane %v410, 2
    %v417 = vsel %vm151, %v416, 0
    %419 = vmatprep.subr.mxu0 %v136
    %420 = vmatpush1.msra.mxu0 %v135
    %421 = vmatprep.subr.mxu0 %v138
    %422 = vmatpush1.msra.mxu0 %v137
    %423 = vmatprep.subr.mxu0 %v140
    %424 = vmatpush1.msra.mxu0 %v139
    %425 = vmatprep.subr.mxu0 %v142
    %426 = vmatpush1.msra.mxu0 %v141
    %427 = vmatprep.subr.mxu0 %v144
    %428 = vmatpush1.msra.mxu0 %v143
    %429 = vmatprep.subr.mxu0 %v146
    %430 = vmatpush1.msra.mxu0 %v145
    %431 = vmatprep.subr.mxu0 %v148
    %432 = vmatpush1.msra.mxu0 %v147
    %433 = vmatprep.subr.mxu0 %v150
    %434 = vmatpush1.msra.mxu0 %v149
    %435 = vmatprep.subr.mxu0 0.0
    %436 = vmatpush1.msra.mxu0 0.0
    %437 = vmatprep.subr.mxu0 0.0
    %438 = vmatpush1.msra.mxu0 0.0
    %439 = vmatprep.subr.mxu0 0.0
    %440 = vmatpush1.msra.mxu0 0.0
    %441 = vmatprep.subr.mxu0 0.0
    %442 = vmatpush1.msra.mxu0 0.0
    %443 = vmatprep.subr.mxu0 0.0
    %444 = vmatpush1.msra.mxu0 0.0
    %445 = vmatprep.subr.mxu0 0.0
    %446 = vmatpush1.msra.mxu0 0.0
    %447 = vmatprep.subr.mxu0 0.0
    %448 = vmatpush1.msra.mxu0 0.0
    %449 = vmatprep.subr.mxu0 0.0
    %450 = vmatpush1.msra.mxu0 0.0
    %451 = vmatprep.subr.mxu0 0.0
    %452 = vmatpush1.msra.mxu0 0.0
    %453 = vmatprep.subr.mxu0 0.0
    %454 = vmatpush1.msra.mxu0 0.0
    %455 = vmatprep.subr.mxu0 0.0
    %456 = vmatpush1.msra.mxu0 0.0
    %457 = vmatprep.subr.mxu0 0.0
    %458 = vmatpush1.msra.mxu0 0.0
    %459 = vmatprep.subr.mxu0 0.0
    %460 = vmatpush1.msra.mxu0 0.0
    %461 = vmatprep.subr.mxu0 0.0
    %462 = vmatpush1.msra.mxu0 0.0
    %463 = vmatprep.subr.mxu0 0.0
    %464 = vmatpush1.msra.mxu0 0.0
    %465 = vmatprep.subr.mxu0 0.0
    %466 = vmatpush1.msra.mxu0 0.0
    %467 = vmatprep.subr.mxu0 0.0
    %468 = vmatpush1.msra.mxu0 0.0
    %469 = vmatprep.subr.mxu0 0.0
    %470 = vmatpush1.msra.mxu0 0.0
    %471 = vmatprep.subr.mxu0 0.0
    %472 = vmatpush1.msra.mxu0 0.0
    %473 = vmatprep.subr.mxu0 0.0
    %474 = vmatpush1.msra.mxu0 0.0
    %475 = vmatprep.subr.mxu0 0.0
    %476 = vmatpush1.msra.mxu0 0.0
    %477 = vmatprep.subr.mxu0 0.0
    %478 = vmatpush1.msra.mxu0 0.0
    %479 = vmatprep.subr.mxu0 0.0
    %480 = vmatpush1.msra.mxu0 0.0
    %481 = vmatprep.subr.mxu0 0.0
    %482 = vmatpush1.msra.mxu0 0.0
    %483 = vmatprep.mubr.f32.mxu0 0.0
    %484 = vmatmul.mubr.f32.gmra.mrb[0].mxu0 %v417
    %v485 = vpop.f32.mrb[0].mxu0
    %v486 = vadd.f32 0.0, %v485
    %v487 = vpop.f32.mrb[0].mxu0
    %v488 = vadd.f32 0.0, %v487
    %489 = vdwg.mxu0
    %v492 = vrot.slane %v486, 4
    %v493 = vrot.slane %v488, 4
    %v496 = vadd.f32 %v125, %v492
    %v497 = vadd.f32 %v227, %v493
    %v498 = vxor.u32 %v496, 2147483648
    %v499 = vxor.u32 %v497, 2147483648
    %v500 = vmul.f32 %v498, 1.442695
    %v501 = vpow.pop %v500
    %v502 = vmul.f32 %v499, 1.442695
    %v503 = vpow.pop %v502
    %v504 = vadd.f32 %v501, 1.0
    %v505 = vadd.f32 %v503, 1.0
    %v506 = vrcp.pop %v504
    %v507 = vmul.f32 1.0, %v506
    %v508 = vrcp.pop %v505
    %v509 = vmul.f32 1.0, %v508
    %511 = vrot.lane.b32.xlu0 %v496, 64
    %v512 = vpop.permute.xlu0 %511
    %515 = vrot.lane.b32.xlu0 %v497, 96
    %v516 = vpop.permute.xlu0 %515
    %v518 = vsel %vm251, %v512, %v516
    %v519 = vtanh.pop %v518
    %521 = vrot.lane.b32.xlu0 %v509, 32
    %v522 = vpop.permute.xlu0 %521
    %v524 = vsel %vm251, %v507, %v522
    %526 = vrot.lane.b32.xlu0 %v507, 96
    %v527 = vpop.permute.xlu0 %526
    %v529 = vsel %vm251, %v527, %v509
    %530 = vrot.lane.b32.xlu0 %v507, 32
    %v531 = vpop.permute.xlu0 %530
    %533 = vrot.lane.b32.xlu0 %v509, 64
    %v534 = vpop.permute.xlu0 %533
    %v536 = vsel %vm251, %v531, %v534
    %v538 = vrot.slane %v408, 6
    %v540 = vmul.f32 %v529, %v538
    %v541 = vmul.f32 %v524, %v519
    %v542 = vadd.f32 %v540, %v541
    %v543 = vtanh.pop %v542
    %v544 = vmul.f32 %v536, %v543
    %vm545 = vcmask 259076
    %546 = vst.msk [vmem:[#allocation2] sm:$0x30] %vm545, %v544
    %vm547 = vcmask 521476
    %548 = vst.msk [vmem:[#allocation2 + $0x6] sm:$0x30] %vm547, %v544
    %v550 = vrot.slane %v544, 4
    %v551 = vsel %vm151, %v550, 0
    %553 = vmatprep.subr.mxu0 %v136
    %554 = vmatpush1.msra.mxu0 %v135
    %555 = vmatprep.subr.mxu0 %v138
    %556 = vmatpush1.msra.mxu0 %v137
    %557 = vmatprep.subr.mxu0 %v140
    %558 = vmatpush1.msra.mxu0 %v139
    %559 = vmatprep.subr.mxu0 %v142
    %560 = vmatpush1.msra.mxu0 %v141
    %561 = vmatprep.subr.mxu0 %v144
    %562 = vmatpush1.msra.mxu0 %v143
    %563 = vmatprep.subr.mxu0 %v146
    %564 = vmatpush1.msra.mxu0 %v145
    %565 = vmatprep.subr.mxu0 %v148
    %566 = vmatpush1.msra.mxu0 %v147
    %567 = vmatprep.subr.mxu0 %v150
    %568 = vmatpush1.msra.mxu0 %v149
    %569 = vmatprep.subr.mxu0 0.0
    %570 = vmatpush1.msra.mxu0 0.0
    %571 = vmatprep.subr.mxu0 0.0
    %572 = vmatpush1.msra.mxu0 0.0
    %573 = vmatprep.subr.mxu0 0.0
    %574 = vmatpush1.msra.mxu0 0.0
    %575 = vmatprep.subr.mxu0 0.0
    %576 = vmatpush1.msra.mxu0 0.0
    %577 = vmatprep.subr.mxu0 0.0
    %578 = vmatpush1.msra.mxu0 0.0
    %579 = vmatprep.subr.mxu0 0.0
    %580 = vmatpush1.msra.mxu0 0.0
    %581 = vmatprep.subr.mxu0 0.0
    %582 = vmatpush1.msra.mxu0 0.0
    %583 = vmatprep.subr.mxu0 0.0
    %584 = vmatpush1.msra.mxu0 0.0
    %585 = vmatprep.subr.mxu0 0.0
    %586 = vmatpush1.msra.mxu0 0.0
    %587 = vmatprep.subr.mxu0 0.0
    %588 = vmatpush1.msra.mxu0 0.0
    %589 = vmatprep.subr.mxu0 0.0
    %590 = vmatpush1.msra.mxu0 0.0
    %591 = vmatprep.subr.mxu0 0.0
    %592 = vmatpush1.msra.mxu0 0.0
    %593 = vmatprep.subr.mxu0 0.0
    %594 = vmatpush1.msra.mxu0 0.0
    %595 = vmatprep.subr.mxu0 0.0
    %596 = vmatpush1.msra.mxu0 0.0
    %597 = vmatprep.subr.mxu0 0.0
    %598 = vmatpush1.msra.mxu0 0.0
    %599 = vmatprep.subr.mxu0 0.0
    %600 = vmatpush1.msra.mxu0 0.0
    %601 = vmatprep.subr.mxu0 0.0
    %602 = vmatpush1.msra.mxu0 0.0
    %603 = vmatprep.subr.mxu0 0.0
    %604 = vmatpush1.msra.mxu0 0.0
    %605 = vmatprep.subr.mxu0 0.0
    %606 = vmatpush1.msra.mxu0 0.0
    %607 = vmatprep.subr.mxu0 0.0
    %608 = vmatpush1.msra.mxu0 0.0
    %609 = vmatprep.subr.mxu0 0.0
    %610 = vmatpush1.msra.mxu0 0.0
    %611 = vmatprep.subr.mxu0 0.0
    %612 = vmatpush1.msra.mxu0 0.0
    %613 = vmatprep.subr.mxu0 0.0
    %614 = vmatpush1.msra.mxu0 0.0
    %615 = vmatprep.subr.mxu0 0.0
    %616 = vmatpush1.msra.mxu0 0.0
    %617 = vmatprep.mubr.f32.mxu0 0.0
    %618 = vmatmul.mubr.f32.gmra.mrb[0].mxu0 %v551
    %v619 = vpop.f32.mrb[0].mxu0
    %v620 = vadd.f32 0.0, %v619
    %v621 = vpop.f32.mrb[0].mxu0
    %v622 = vadd.f32 0.0, %v621
    %623 = vdwg.mxu0
    %v626 = vrot.slane %v620, 2
    %v627 = vrot.slane %v622, 2
    %v630 = vadd.f32 %v125, %v626
    %v631 = vadd.f32 %v354, %v627
    %v632 = vxor.u32 %v630, 2147483648
    %v633 = vxor.u32 %v631, 2147483648
    %v634 = vmul.f32 %v632, 1.442695
    %v635 = vpow.pop %v634
    %v636 = vmul.f32 %v633, 1.442695
    %v637 = vpow.pop %v636
    %v638 = vadd.f32 %v635, 1.0
    %v639 = vadd.f32 %v637, 1.0
    %v640 = vrcp.pop %v638
    %v641 = vmul.f32 1.0, %v640
    %v642 = vrcp.pop %v639
    %v643 = vmul.f32 1.0, %v642
    %645 = vrot.lane.b32.xlu0 %v630, 64
    %v646 = vpop.permute.xlu0 %645
    %649 = vrot.lane.b32.xlu0 %v631, 96
    %v650 = vpop.permute.xlu0 %649
    %v652 = vsel %vm251, %v646, %v650
    %v653 = vtanh.pop %v652
    %655 = vrot.lane.b32.xlu0 %v643, 32
    %v656 = vpop.permute.xlu0 %655
    %v658 = vsel %vm251, %v641, %v656
    %660 = vrot.lane.b32.xlu0 %v641, 96
    %v661 = vpop.permute.xlu0 %660
    %v663 = vsel %vm251, %v661, %v643
    %664 = vrot.lane.b32.xlu0 %v641, 32
    %v665 = vpop.permute.xlu0 %664
    %667 = vrot.lane.b32.xlu0 %v643, 64
    %v668 = vpop.permute.xlu0 %667
    %v670 = vsel %vm251, %v665, %v668
    %v672 = vrot.slane %v542, 6
    %v674 = vmul.f32 %v663, %v672
    %v675 = vmul.f32 %v658, %v653
    %v676 = vadd.f32 %v674, %v675
    %v677 = vtanh.pop %v676
    %v678 = vmul.f32 %v670, %v677
    %vm679 = vcmask 261126
    %680 = vst.msk [vmem:[#allocation2] sm:$0xc0] %vm679, %v678
    %vm681 = vcmask 523526
    %682 = vst.msk [vmem:[#allocation2 + $0x2] sm:$0xc0] %vm681, %v678
    %v684 = vrot.slane %v678, 6
    %v685 = vsel %vm151, %v684, 0
    %687 = vmatprep.subr.mxu0 %v136
    %688 = vmatpush1.msra.mxu0 %v135
    %689 = vmatprep.subr.mxu0 %v138
    %690 = vmatpush1.msra.mxu0 %v137
    %691 = vmatprep.subr.mxu0 %v140
    %692 = vmatpush1.msra.mxu0 %v139
    %693 = vmatprep.subr.mxu0 %v142
    %694 = vmatpush1.msra.mxu0 %v141
    %695 = vmatprep.subr.mxu0 %v144
    %696 = vmatpush1.msra.mxu0 %v143
    %697 = vmatprep.subr.mxu0 %v146
    %698 = vmatpush1.msra.mxu0 %v145
    %699 = vmatprep.subr.mxu0 %v148
    %700 = vmatpush1.msra.mxu0 %v147
    %701 = vmatprep.subr.mxu0 %v150
    %702 = vmatpush1.msra.mxu0 %v149
    %703 = vmatprep.subr.mxu0 0.0
    %704 = vmatpush1.msra.mxu0 0.0
    %705 = vmatprep.subr.mxu0 0.0
    %706 = vmatpush1.msra.mxu0 0.0
    %707 = vmatprep.subr.mxu0 0.0
    %708 = vmatpush1.msra.mxu0 0.0
    %709 = vmatprep.subr.mxu0 0.0
    %710 = vmatpush1.msra.mxu0 0.0
    %711 = vmatprep.subr.mxu0 0.0
    %712 = vmatpush1.msra.mxu0 0.0
    %713 = vmatprep.subr.mxu0 0.0
    %714 = vmatpush1.msra.mxu0 0.0
    %715 = vmatprep.subr.mxu0 0.0
    %716 = vmatpush1.msra.mxu0 0.0
    %717 = vmatprep.subr.mxu0 0.0
    %718 = vmatpush1.msra.mxu0 0.0
    %719 = vmatprep.subr.mxu0 0.0
    %720 = vmatpush1.msra.mxu0 0.0
    %721 = vmatprep.subr.mxu0 0.0
    %722 = vmatpush1.msra.mxu0 0.0
    %723 = vmatprep.subr.mxu0 0.0
    %724 = vmatpush1.msra.mxu0 0.0
    %725 = vmatprep.subr.mxu0 0.0
    %726 = vmatpush1.msra.mxu0 0.0
    %727 = vmatprep.subr.mxu0 0.0
    %728 = vmatpush1.msra.mxu0 0.0
    %729 = vmatprep.subr.mxu0 0.0
    %730 = vmatpush1.msra.mxu0 0.0
    %731 = vmatprep.subr.mxu0 0.0
    %732 = vmatpush1.msra.mxu0 0.0
    %733 = vmatprep.subr.mxu0 0.0
    %734 = vmatpush1.msra.mxu0 0.0
    %735 = vmatprep.subr.mxu0 0.0
    %736 = vmatpush1.msra.mxu0 0.0
    %737 = vmatprep.subr.mxu0 0.0
    %738 = vmatpush1.msra.mxu0 0.0
    %739 = vmatprep.subr.mxu0 0.0
    %740 = vmatpush1.msra.mxu0 0.0
    %741 = vmatprep.subr.mxu0 0.0
    %742 = vmatpush1.msra.mxu0 0.0
    %743 = vmatprep.subr.mxu0 0.0
    %744 = vmatpush1.msra.mxu0 0.0
    %745 = vmatprep.subr.mxu0 0.0
    %746 = vmatpush1.msra.mxu0 0.0
    %747 = vmatprep.subr.mxu0 0.0
    %748 = vmatpush1.msra.mxu0 0.0
    %749 = vmatprep.subr.mxu0 0.0
    %750 = vmatpush1.msra.mxu0 0.0
    %751 = vmatprep.mubr.f32.mxu0 0.0
    %752 = vmatmul.mubr.f32.gmra.mrb[0].mxu0 %v685
    %v753 = vpop.f32.mrb[0].mxu0
    %v754 = vadd.f32 0.0, %v753
    %v755 = vpop.f32.mrb[0].mxu0
    %v756 = vadd.f32 0.0, %v755
    %757 = vdwg.mxu0
    %v759 = vrot.slane %v127, 6
    %v761 = vadd.f32 %v131, %v754
    %v762 = vadd.f32 %v759, %v756
    %v763 = vxor.u32 %v761, 2147483648
    %v764 = vxor.u32 %v762, 2147483648
    %v765 = vmul.f32 %v763, 1.442695
    %v766 = vpow.pop %v765
    %v767 = vmul.f32 %v764, 1.442695
    %v768 = vpow.pop %v767
    %v769 = vadd.f32 %v766, 1.0
    %v770 = vadd.f32 %v768, 1.0
    %v771 = vrcp.pop %v769
    %v772 = vmul.f32 1.0, %v771
    %v773 = vrcp.pop %v770
    %v774 = vmul.f32 1.0, %v773
    %776 = vrot.lane.b32.xlu0 %v761, 64
    %v777 = vpop.permute.xlu0 %776
    %780 = vrot.lane.b32.xlu0 %v762, 96
    %v781 = vpop.permute.xlu0 %780
    %v783 = vsel %vm251, %v777, %v781
    %v784 = vtanh.pop %v783
    %786 = vrot.lane.b32.xlu0 %v774, 32
    %v787 = vpop.permute.xlu0 %786
    %v789 = vsel %vm251, %v772, %v787
    %791 = vrot.lane.b32.xlu0 %v772, 96
    %v792 = vpop.permute.xlu0 %791
    %v794 = vsel %vm251, %v792, %v774
    %795 = vrot.lane.b32.xlu0 %v772, 32
    %v796 = vpop.permute.xlu0 %795
    %798 = vrot.lane.b32.xlu0 %v774, 64
    %v799 = vpop.permute.xlu0 %798
    %v801 = vsel %vm251, %v796, %v799
    %v803 = vrot.slane %v676, 6
    %v805 = vmul.f32 %v794, %v803
    %v806 = vmul.f32 %v789, %v784
    %v807 = vadd.f32 %v805, %v806
    %v808 = vtanh.pop %v807
    %v809 = vmul.f32 %v801, %v808
    %810 = vst.msk [vmem:[#allocation2 + $0x8] sm:$0x3] %vm276, %v809
    %811 = vst.msk [vmem:[#allocation2 + $0x6] sm:$0x3] %vm278, %v809
    %v813 = vsel %vm151, %v809, 0
    %815 = vmatprep.subr.mxu0 %v136
    %816 = vmatpush1.msra.mxu0 %v135
    %817 = vmatprep.subr.mxu0 %v138
    %818 = vmatpush1.msra.mxu0 %v137
    %819 = vmatprep.subr.mxu0 %v140
    %820 = vmatpush1.msra.mxu0 %v139
    %821 = vmatprep.subr.mxu0 %v142
    %822 = vmatpush1.msra.mxu0 %v141
    %823 = vmatprep.subr.mxu0 %v144
    %824 = vmatpush1.msra.mxu0 %v143
    %825 = vmatprep.subr.mxu0 %v146
    %826 = vmatpush1.msra.mxu0 %v145
    %827 = vmatprep.subr.mxu0 %v148
    %828 = vmatpush1.msra.mxu0 %v147
    %829 = vmatprep.subr.mxu0 %v150
    %830 = vmatpush1.msra.mxu0 %v149
    %831 = vmatprep.subr.mxu0 0.0
    %832 = vmatpush1.msra.mxu0 0.0
    %833 = vmatprep.subr.mxu0 0.0
    %834 = vmatpush1.msra.mxu0 0.0
    %835 = vmatprep.subr.mxu0 0.0
    %836 = vmatpush1.msra.mxu0 0.0
    %837 = vmatprep.subr.mxu0 0.0
    %838 = vmatpush1.msra.mxu0 0.0
    %839 = vmatprep.subr.mxu0 0.0
    %840 = vmatpush1.msra.mxu0 0.0
    %841 = vmatprep.subr.mxu0 0.0
    %842 = vmatpush1.msra.mxu0 0.0
    %843 = vmatprep.subr.mxu0 0.0
    %844 = vmatpush1.msra.mxu0 0.0
    %845 = vmatprep.subr.mxu0 0.0
    %846 = vmatpush1.msra.mxu0 0.0
    %847 = vmatprep.subr.mxu0 0.0
    %848 = vmatpush1.msra.mxu0 0.0
    %849 = vmatprep.subr.mxu0 0.0
    %850 = vmatpush1.msra.mxu0 0.0
    %851 = vmatprep.subr.mxu0 0.0
    %852 = vmatpush1.msra.mxu0 0.0
    %853 = vmatprep.subr.mxu0 0.0
    %854 = vmatpush1.msra.mxu0 0.0
    %855 = vmatprep.subr.mxu0 0.0
    %856 = vmatpush1.msra.mxu0 0.0
    %857 = vmatprep.subr.mxu0 0.0
    %858 = vmatpush1.msra.mxu0 0.0
    %859 = vmatprep.subr.mxu0 0.0
    %860 = vmatpush1.msra.mxu0 0.0
    %861 = vmatprep.subr.mxu0 0.0
    %862 = vmatpush1.msra.mxu0 0.0
    %863 = vmatprep.subr.mxu0 0.0
    %864 = vmatpush1.msra.mxu0 0.0
    %865 = vmatprep.subr.mxu0 0.0
    %866 = vmatpush1.msra.mxu0 0.0
    %867 = vmatprep.subr.mxu0 0.0
    %868 = vmatpush1.msra.mxu0 0.0
    %869 = vmatprep.subr.mxu0 0.0
    %870 = vmatpush1.msra.mxu0 0.0
    %871 = vmatprep.subr.mxu0 0.0
    %872 = vmatpush1.msra.mxu0 0.0
    %873 = vmatprep.subr.mxu0 0.0
    %874 = vmatpush1.msra.mxu0 0.0
    %875 = vmatprep.subr.mxu0 0.0
    %876 = vmatpush1.msra.mxu0 0.0
    %877 = vmatprep.subr.mxu0 0.0
    %878 = vmatpush1.msra.mxu0 0.0
    %879 = vmatprep.mubr.f32.mxu0 0.0
    %880 = vmatmul.mubr.f32.gmra.mrb[0].mxu0 %v813
    %v881 = vpop.f32.mrb[0].mxu0
    %v882 = vadd.f32 0.0, %v881
    %v883 = vpop.f32.mrb[0].mxu0
    %v884 = vadd.f32 0.0, %v883
    %885 = vdwg.mxu0
    %v886 = vrot.slane %v127, 2
    %v890 = vrot.slane %v882, 6
    %v891 = vrot.slane %v884, 6
    %v894 = vadd.f32 %v131, %v890
    %v895 = vadd.f32 %v886, %v891
    %v896 = vxor.u32 %v894, 2147483648
    %v897 = vxor.u32 %v895, 2147483648
    %v898 = vmul.f32 %v896, 1.442695
    %v899 = vpow.pop %v898
    %v900 = vmul.f32 %v897, 1.442695
    %v901 = vpow.pop %v900
    %v902 = vadd.f32 %v899, 1.0
    %v903 = vadd.f32 %v901, 1.0
    %v904 = vrcp.pop %v902
    %v905 = vmul.f32 1.0, %v904
    %v906 = vrcp.pop %v903
    %v907 = vmul.f32 1.0, %v906
    %909 = vrot.lane.b32.xlu0 %v894, 64
    %v910 = vpop.permute.xlu0 %909
    %913 = vrot.lane.b32.xlu0 %v895, 96
    %v914 = vpop.permute.xlu0 %913
    %v916 = vsel %vm251, %v910, %v914
    %v917 = vtanh.pop %v916
    %919 = vrot.lane.b32.xlu0 %v907, 32
    %v920 = vpop.permute.xlu0 %919
    %v922 = vsel %vm251, %v905, %v920
    %924 = vrot.lane.b32.xlu0 %v905, 96
    %v925 = vpop.permute.xlu0 %924
    %v927 = vsel %vm251, %v925, %v907
    %928 = vrot.lane.b32.xlu0 %v905, 32
    %v929 = vpop.permute.xlu0 %928
    %931 = vrot.lane.b32.xlu0 %v907, 64
    %v932 = vpop.permute.xlu0 %931
    %v934 = vsel %vm251, %v929, %v932
    %v936 = vrot.slane %v807, 6
    %v938 = vmul.f32 %v927, %v936
    %v939 = vmul.f32 %v922, %v917
    %v940 = vadd.f32 %v938, %v939
    %v941 = vtanh.pop %v940
    %v942 = vmul.f32 %v934, %v941
    %943 = vst.msk [vmem:[#allocation2 + $0x8] sm:$0xc] %vm411, %v942
    %944 = vst.msk [vmem:[#allocation2 + $0x2] sm:$0xc] %vm413, %v942
    %v946 = vrot.slane %v942, 2
    %v947 = vsel %vm151, %v946, 0
    %949 = vmatprep.subr.mxu0 %v136
    %950 = vmatpush1.msra.mxu0 %v135
    %951 = vmatprep.subr.mxu0 %v138
    %952 = vmatpush1.msra.mxu0 %v137
    %953 = vmatprep.subr.mxu0 %v140
    %954 = vmatpush1.msra.mxu0 %v139
    %955 = vmatprep.subr.mxu0 %v142
    %956 = vmatpush1.msra.mxu0 %v141
    %957 = vmatprep.subr.mxu0 %v144
    %958 = vmatpush1.msra.mxu0 %v143
    %959 = vmatprep.subr.mxu0 %v146
    %960 = vmatpush1.msra.mxu0 %v145
    %961 = vmatprep.subr.mxu0 %v148
    %962 = vmatpush1.msra.mxu0 %v147
    %963 = vmatprep.subr.mxu0 %v150
    %964 = vmatpush1.msra.mxu0 %v149
    %965 = vmatprep.subr.mxu0 0.0
    %966 = vmatpush1.msra.mxu0 0.0
    %967 = vmatprep.subr.mxu0 0.0
    %968 = vmatpush1.msra.mxu0 0.0
    %969 = vmatprep.subr.mxu0 0.0
    %970 = vmatpush1.msra.mxu0 0.0
    %971 = vmatprep.subr.mxu0 0.0
    %972 = vmatpush1.msra.mxu0 0.0
    %973 = vmatprep.subr.mxu0 0.0
    %974 = vmatpush1.msra.mxu0 0.0
    %975 = vmatprep.subr.mxu0 0.0
    %976 = vmatpush1.msra.mxu0 0.0
    %977 = vmatprep.subr.mxu0 0.0
    %978 = vmatpush1.msra.mxu0 0.0
    %979 = vmatprep.subr.mxu0 0.0
    %980 = vmatpush1.msra.mxu0 0.0
    %981 = vmatprep.subr.mxu0 0.0
    %982 = vmatpush1.msra.mxu0 0.0
    %983 = vmatprep.subr.mxu0 0.0
    %984 = vmatpush1.msra.mxu0 0.0
    %985 = vmatprep.subr.mxu0 0.0
    %986 = vmatpush1.msra.mxu0 0.0
    %987 = vmatprep.subr.mxu0 0.0
    %988 = vmatpush1.msra.mxu0 0.0
    %989 = vmatprep.subr.mxu0 0.0
    %990 = vmatpush1.msra.mxu0 0.0
    %991 = vmatprep.subr.mxu0 0.0
    %992 = vmatpush1.msra.mxu0 0.0
    %993 = vmatprep.subr.mxu0 0.0
    %994 = vmatpush1.msra.mxu0 0.0
    %995 = vmatprep.subr.mxu0 0.0
    %996 = vmatpush1.msra.mxu0 0.0
    %997 = vmatprep.subr.mxu0 0.0
    %998 = vmatpush1.msra.mxu0 0.0
    %999 = vmatprep.subr.mxu0 0.0
    %1000 = vmatpush1.msra.mxu0 0.0
    %1001 = vmatprep.subr.mxu0 0.0
    %1002 = vmatpush1.msra.mxu0 0.0
    %1003 = vmatprep.subr.mxu0 0.0
    %1004 = vmatpush1.msra.mxu0 0.0
    %1005 = vmatprep.subr.mxu0 0.0
    %1006 = vmatpush1.msra.mxu0 0.0
    %1007 = vmatprep.subr.mxu0 0.0
    %1008 = vmatpush1.msra.mxu0 0.0
    %1009 = vmatprep.subr.mxu0 0.0
    %1010 = vmatpush1.msra.mxu0 0.0
    %1011 = vmatprep.subr.mxu0 0.0
    %1012 = vmatpush1.msra.mxu0 0.0
    %1013 = vmatprep.mubr.f32.mxu0 0.0
    %1014 = vmatmul.mubr.f32.gmra.mrb[0].mxu0 %v947
    %v1015 = vpop.f32.mrb[0].mxu0
    %v1016 = vadd.f32 0.0, %v1015
    %v1017 = vpop.f32.mrb[0].mxu0
    %v1018 = vadd.f32 0.0, %v1017
    %1019 = vdwg.mxu0
    %v1022 = vrot.slane %v1016, 4
    %v1023 = vrot.slane %v1018, 4
    %v1026 = vadd.f32 %v131, %v1022
    %v1027 = vadd.f32 %v759, %v1023
    %v1028 = vxor.u32 %v1026, 2147483648
    %v1029 = vxor.u32 %v1027, 2147483648
    %v1030 = vmul.f32 %v1028, 1.442695
    %v1031 = vpow.pop %v1030
    %v1032 = vmul.f32 %v1029, 1.442695
    %v1033 = vpow.pop %v1032
    %v1034 = vadd.f32 %v1031, 1.0
    %v1035 = vadd.f32 %v1033, 1.0
    %v1036 = vrcp.pop %v1034
    %v1037 = vmul.f32 1.0, %v1036
    %v1038 = vrcp.pop %v1035
    %v1039 = vmul.f32 1.0, %v1038
    %1041 = vrot.lane.b32.xlu0 %v1026, 64
    %v1042 = vpop.permute.xlu0 %1041
    %1045 = vrot.lane.b32.xlu0 %v1027, 96
    %v1046 = vpop.permute.xlu0 %1045
    %v1048 = vsel %vm251, %v1042, %v1046
    %v1049 = vtanh.pop %v1048
    %1051 = vrot.lane.b32.xlu0 %v1039, 32
    %v1052 = vpop.permute.xlu0 %1051
    %v1054 = vsel %vm251, %v1037, %v1052
    %1056 = vrot.lane.b32.xlu0 %v1037, 96
    %v1057 = vpop.permute.xlu0 %1056
    %v1059 = vsel %vm251, %v1057, %v1039
    %1060 = vrot.lane.b32.xlu0 %v1037, 32
    %v1061 = vpop.permute.xlu0 %1060
    %1063 = vrot.lane.b32.xlu0 %v1039, 64
    %v1064 = vpop.permute.xlu0 %1063
    %v1066 = vsel %vm251, %v1061, %v1064
    %v1068 = vrot.slane %v940, 6
    %v1070 = vmul.f32 %v1059, %v1068
    %v1071 = vmul.f32 %v1054, %v1049
    %v1072 = vadd.f32 %v1070, %v1071
    %v1073 = vtanh.pop %v1072
    %v1074 = vmul.f32 %v1066, %v1073
    %1075 = vst.msk [vmem:[#allocation2 + $0x8] sm:$0x30] %vm545, %v1074
    %1076 = vst.msk [vmem:[#allocation2 - $0x2] sm:$0x30] %vm547, %v1074
    %v1078 = vrot.slane %v1074, 4
    %v1079 = vsel %vm151, %v1078, 0
    %1081 = vmatprep.subr.mxu0 %v136
    %1082 = vmatpush1.msra.mxu0 %v135
    %1083 = vmatprep.subr.mxu0 %v138
    %1084 = vmatpush1.msra.mxu0 %v137
    %1085 = vmatprep.subr.mxu0 %v140
    %1086 = vmatpush1.msra.mxu0 %v139
    %1087 = vmatprep.subr.mxu0 %v142
    %1088 = vmatpush1.msra.mxu0 %v141
    %1089 = vmatprep.subr.mxu0 %v144
    %1090 = vmatpush1.msra.mxu0 %v143
    %1091 = vmatprep.subr.mxu0 %v146
    %1092 = vmatpush1.msra.mxu0 %v145
    %1093 = vmatprep.subr.mxu0 %v148
    %1094 = vmatpush1.msra.mxu0 %v147
    %1095 = vmatprep.subr.mxu0 %v150
    %1096 = vmatpush1.msra.mxu0 %v149
    %1097 = vmatprep.subr.mxu0 0.0
    %1098 = vmatpush1.msra.mxu0 0.0
    %1099 = vmatprep.subr.mxu0 0.0
    %1100 = vmatpush1.msra.mxu0 0.0
    %1101 = vmatprep.subr.mxu0 0.0
    %1102 = vmatpush1.msra.mxu0 0.0
    %1103 = vmatprep.subr.mxu0 0.0
    %1104 = vmatpush1.msra.mxu0 0.0
    %1105 = vmatprep.subr.mxu0 0.0
    %1106 = vmatpush1.msra.mxu0 0.0
    %1107 = vmatprep.subr.mxu0 0.0
    %1108 = vmatpush1.msra.mxu0 0.0
    %1109 = vmatprep.subr.mxu0 0.0
    %1110 = vmatpush1.msra.mxu0 0.0
    %1111 = vmatprep.subr.mxu0 0.0
    %1112 = vmatpush1.msra.mxu0 0.0
    %1113 = vmatprep.subr.mxu0 0.0
    %1114 = vmatpush1.msra.mxu0 0.0
    %1115 = vmatprep.subr.mxu0 0.0
    %1116 = vmatpush1.msra.mxu0 0.0
    %1117 = vmatprep.subr.mxu0 0.0
    %1118 = vmatpush1.msra.mxu0 0.0
    %1119 = vmatprep.subr.mxu0 0.0
    %1120 = vmatpush1.msra.mxu0 0.0
    %1121 = vmatprep.subr.mxu0 0.0
    %1122 = vmatpush1.msra.mxu0 0.0
    %1123 = vmatprep.subr.mxu0 0.0
    %1124 = vmatpush1.msra.mxu0 0.0
    %1125 = vmatprep.subr.mxu0 0.0
    %1126 = vmatpush1.msra.mxu0 0.0
    %1127 = vmatprep.subr.mxu0 0.0
    %1128 = vmatpush1.msra.mxu0 0.0
    %1129 = vmatprep.subr.mxu0 0.0
    %1130 = vmatpush1.msra.mxu0 0.0
    %1131 = vmatprep.subr.mxu0 0.0
    %1132 = vmatpush1.msra.mxu0 0.0
    %1133 = vmatprep.subr.mxu0 0.0
    %1134 = vmatpush1.msra.mxu0 0.0
    %1135 = vmatprep.subr.mxu0 0.0
    %1136 = vmatpush1.msra.mxu0 0.0
    %1137 = vmatprep.subr.mxu0 0.0
    %1138 = vmatpush1.msra.mxu0 0.0
    %1139 = vmatprep.subr.mxu0 0.0
    %1140 = vmatpush1.msra.mxu0 0.0
    %1141 = vmatprep.subr.mxu0 0.0
    %1142 = vmatpush1.msra.mxu0 0.0
    %1143 = vmatprep.subr.mxu0 0.0
    %1144 = vmatpush1.msra.mxu0 0.0
    %1145 = vmatprep.mubr.f32.mxu0 0.0
    %1146 = vmatmul.mubr.f32.gmra.mrb[0].mxu0 %v1079
    %v1147 = vpop.f32.mrb[0].mxu0
    %v1148 = vadd.f32 0.0, %v1147
    %v1149 = vpop.f32.mrb[0].mxu0
    %v1150 = vadd.f32 0.0, %v1149
    %1151 = vdwg.mxu0
    %v1154 = vrot.slane %v1148, 2
    %v1155 = vrot.slane %v1150, 2
    %v1158 = vadd.f32 %v131, %v1154
    %v1159 = vadd.f32 %v886, %v1155
    %v1160 = vxor.u32 %v1158, 2147483648
    %v1161 = vxor.u32 %v1159, 2147483648
    %v1162 = vmul.f32 %v1160, 1.442695
    %v1163 = vpow.pop %v1162
    %v1164 = vmul.f32 %v1161, 1.442695
    %v1165 = vpow.pop %v1164
    %v1166 = vadd.f32 %v1163, 1.0
    %v1167 = vadd.f32 %v1165, 1.0
    %v1168 = vrcp.pop %v1166
    %v1169 = vmul.f32 1.0, %v1168
    %v1170 = vrcp.pop %v1167
    %v1171 = vmul.f32 1.0, %v1170
    %1173 = vrot.lane.b32.xlu0 %v1158, 64
    %v1174 = vpop.permute.xlu0 %1173
    %1177 = vrot.lane.b32.xlu0 %v1159, 96
    %v1178 = vpop.permute.xlu0 %1177
    %v1180 = vsel %vm251, %v1174, %v1178
    %v1181 = vtanh.pop %v1180
    %1183 = vrot.lane.b32.xlu0 %v1171, 32
    %v1184 = vpop.permute.xlu0 %1183
    %v1186 = vsel %vm251, %v1169, %v1184
    %1188 = vrot.lane.b32.xlu0 %v1169, 96
    %v1189 = vpop.permute.xlu0 %1188
    %v1191 = vsel %vm251, %v1189, %v1171
    %1192 = vrot.lane.b32.xlu0 %v1169, 32
    %v1193 = vpop.permute.xlu0 %1192
    %1195 = vrot.lane.b32.xlu0 %v1171, 64
    %v1196 = vpop.permute.xlu0 %1195
    %v1198 = vsel %vm251, %v1193, %v1196
    %v1200 = vrot.slane %v1072, 6
    %v1202 = vmul.f32 %v1191, %v1200
    %v1203 = vmul.f32 %v1186, %v1181
    %v1204 = vadd.f32 %v1202, %v1203
    %v1205 = vtanh.pop %v1204
    %v1206 = vmul.f32 %v1198, %v1205
    %1207 = vst.msk [vmem:[#allocation2 + $0x8] sm:$0xc0] %vm679, %v1206
    %1208 = vst.msk [vmem:[#allocation2 - $0x6] sm:$0xc0] %vm681, %v1206
    %v1209 = vld [vmem:[#allocation2] sm:$0xff]
    %v1210 = vld [vmem:[#allocation2 + $0x8] sm:$0xff]
    %v1211 = vld [vmem:[%s4] sm:$0xff]
    %v1212 = vld [vmem:[%s4 + $0x8] sm:$0xff]
    %v1213 = vld [vmem:[%s4 + $0x10] sm:$0xff]
    %v1214 = vld [vmem:[%s4 + $0x18] sm:$0xff]
    %v1215 = vld [vmem:[%s4 + $0x20] sm:$0xff]
    %v1216 = vld [vmem:[%s4 + $0x28] sm:$0xff]
    %v1217 = vld [vmem:[%s4 + $0x30] sm:$0xff]
    %v1218 = vld [vmem:[%s4 + $0x38] sm:$0xff]
    %v1219 = vld [vmem:[%s4 + $0x40] sm:$0xff]
    %v1220 = vld [vmem:[%s4 + $0x48] sm:$0xff]
    %v1221 = vld [vmem:[%s4 + $0x50] sm:$0xff]
    %v1222 = vld [vmem:[%s4 + $0x58] sm:$0xff]
    %v1223 = vld [vmem:[%s4 + $0x60] sm:$0xff]
    %v1224 = vld [vmem:[%s4 + $0x68] sm:$0xff]
    %v1225 = vld [vmem:[%s4 + $0x70] sm:$0xff]
    %v1226 = vld [vmem:[%s4 + $0x78] sm:$0xff]
    %v1227 = vld [vmem:[%s6] sm:$0x3]
    %v1229 = vlaneseq
    %v1230 = vshrl.u32 %v1229, 7
    %v1231 = vsub.s32 0, %v1230
    %v1232 = vrot.slane %v1227, %v1231
    %v1233 = vlaneseq
    %v1234 = vshrl.u32 %v1233, 7
    %v1235 = vsub.s32 1, %v1234
    %v1236 = vrot.slane %v1227, %v1235
    %v1240 = vsel %vm151, %v1209, 0
    %v1243 = vsel %vm151, %v1210, 0
    %1245 = vmatprep.subr.mxu0 %v1212
    %1246 = vmatpush1.msra.mxu0 %v1211
    %1247 = vmatprep.subr.mxu0 %v1214
    %1248 = vmatpush1.msra.mxu0 %v1213
    %1249 = vmatprep.subr.mxu0 %v1216
    %1250 = vmatpush1.msra.mxu0 %v1215
    %1251 = vmatprep.subr.mxu0 %v1218
    %1252 = vmatpush1.msra.mxu0 %v1217
    %1253 = vmatprep.subr.mxu0 %v1220
    %1254 = vmatpush1.msra.mxu0 %v1219
    %1255 = vmatprep.subr.mxu0 %v1222
    %1256 = vmatpush1.msra.mxu0 %v1221
    %1257 = vmatprep.subr.mxu0 %v1224
    %1258 = vmatpush1.msra.mxu0 %v1223
    %1259 = vmatprep.subr.mxu0 %v1226
    %1260 = vmatpush1.msra.mxu0 %v1225
    %1261 = vmatprep.subr.mxu0 0.0
    %1262 = vmatpush1.msra.mxu0 0.0
    %1263 = vmatprep.subr.mxu0 0.0
    %1264 = vmatpush1.msra.mxu0 0.0
    %1265 = vmatprep.subr.mxu0 0.0
    %1266 = vmatpush1.msra.mxu0 0.0
    %1267 = vmatprep.subr.mxu0 0.0
    %1268 = vmatpush1.msra.mxu0 0.0
    %1269 = vmatprep.subr.mxu0 0.0
    %1270 = vmatpush1.msra.mxu0 0.0
    %1271 = vmatprep.subr.mxu0 0.0
    %1272 = vmatpush1.msra.mxu0 0.0
    %1273 = vmatprep.subr.mxu0 0.0
    %1274 = vmatpush1.msra.mxu0 0.0
    %1275 = vmatprep.subr.mxu0 0.0
    %1276 = vmatpush1.msra.mxu0 0.0
    %1277 = vmatprep.subr.mxu0 0.0
    %1278 = vmatpush1.msra.mxu0 0.0
    %1279 = vmatprep.subr.mxu0 0.0
    %1280 = vmatpush1.msra.mxu0 0.0
    %1281 = vmatprep.subr.mxu0 0.0
    %1282 = vmatpush1.msra.mxu0 0.0
    %1283 = vmatprep.subr.mxu0 0.0
    %1284 = vmatpush1.msra.mxu0 0.0
    %1285 = vmatprep.subr.mxu0 0.0
    %1286 = vmatpush1.msra.mxu0 0.0
    %1287 = vmatprep.subr.mxu0 0.0
    %1288 = vmatpush1.msra.mxu0 0.0
    %1289 = vmatprep.subr.mxu0 0.0
    %1290 = vmatpush1.msra.mxu0 0.0
    %1291 = vmatprep.subr.mxu0 0.0
    %1292 = vmatpush1.msra.mxu0 0.0
    %1293 = vmatprep.subr.mxu0 0.0
    %1294 = vmatpush1.msra.mxu0 0.0
    %1295 = vmatprep.subr.mxu0 0.0
    %1296 = vmatpush1.msra.mxu0 0.0
    %1297 = vmatprep.subr.mxu0 0.0
    %1298 = vmatpush1.msra.mxu0 0.0
    %1299 = vmatprep.subr.mxu0 0.0
    %1300 = vmatpush1.msra.mxu0 0.0
    %1301 = vmatprep.subr.mxu0 0.0
    %1302 = vmatpush1.msra.mxu0 0.0
    %1303 = vmatprep.subr.mxu0 0.0
    %1304 = vmatpush1.msra.mxu0 0.0
    %1305 = vmatprep.subr.mxu0 0.0
    %1306 = vmatpush1.msra.mxu0 0.0
    %1307 = vmatprep.subr.mxu0 0.0
    %1308 = vmatpush1.msra.mxu0 0.0
    %1309 = vmatprep.mubr.f32.mxu0 0.0
    %1310 = vmatmul.mubr.f32.gmra.mrb[0].mxu0 %v1240
    %v1311 = vpop.f32.mrb[0].mxu0
    %v1312 = vadd.f32 %v1232, %v1311
    %v1313 = vpop.f32.mrb[0].mxu0
    %v1314 = vadd.f32 %v1236, %v1313
    %1315 = vmatprep.mubr.f32.mxu0 0.0
    %1316 = vmatmul.mubr.f32.gmra.mrb[0].mxu0 %v1243
    %v1317 = vpop.f32.mrb[0].mxu0
    %v1318 = vadd.f32 %v1232, %v1317
    %v1319 = vpop.f32.mrb[0].mxu0
    %v1320 = vadd.f32 %v1236, %v1319
    %1321 = vdwg.mxu0
    %v1322 = vld [vmem:[%s5] sm:$0xff]
    %v1323 = vld [vmem:[%s5 + $0x8] sm:$0xff]
    %v1324 = vld [vmem:[%s5 + $0x10] sm:$0xff]
    %v1325 = vld [vmem:[%s5 + $0x18] sm:$0xff]
    %v1326 = vld [vmem:[%s5 + $0x20] sm:$0xff]
    %v1327 = vld [vmem:[%s5 + $0x28] sm:$0xff]
    %v1328 = vld [vmem:[%s5 + $0x30] sm:$0xff]
    %v1329 = vld [vmem:[%s5 + $0x38] sm:$0xff]
    %v1330 = vld [vmem:[%s5 + $0x40] sm:$0xff]
    %v1331 = vld [vmem:[%s5 + $0x48] sm:$0xff]
    %v1332 = vld [vmem:[%s5 + $0x50] sm:$0xff]
    %v1333 = vld [vmem:[%s5 + $0x58] sm:$0xff]
    %v1334 = vld [vmem:[%s5 + $0x60] sm:$0xff]
    %v1335 = vld [vmem:[%s5 + $0x68] sm:$0xff]
    %v1336 = vld [vmem:[%s5 + $0x70] sm:$0xff]
    %v1337 = vld [vmem:[%s5 + $0x78] sm:$0xff]
    %1338 = vmatprep.subr.mxu0 %v1323
    %1339 = vmatpush1.msra.mxu0 %v1322
    %1340 = vmatprep.subr.mxu0 %v1325
    %1341 = vmatpush1.msra.mxu0 %v1324
    %1342 = vmatprep.subr.mxu0 %v1327
    %1343 = vmatpush1.msra.mxu0 %v1326
    %1344 = vmatprep.subr.mxu0 %v1329
    %1345 = vmatpush1.msra.mxu0 %v1328
    %1346 = vmatprep.subr.mxu0 %v1331
    %1347 = vmatpush1.msra.mxu0 %v1330
    %1348 = vmatprep.subr.mxu0 %v1333
    %1349 = vmatpush1.msra.mxu0 %v1332
    %1350 = vmatprep.subr.mxu0 %v1335
    %1351 = vmatpush1.msra.mxu0 %v1334
    %1352 = vmatprep.subr.mxu0 %v1337
    %1353 = vmatpush1.msra.mxu0 %v1336
    %1354 = vmatprep.subr.mxu0 0.0
    %1355 = vmatpush1.msra.mxu0 0.0
    %1356 = vmatprep.subr.mxu0 0.0
    %1357 = vmatpush1.msra.mxu0 0.0
    %1358 = vmatprep.subr.mxu0 0.0
    %1359 = vmatpush1.msra.mxu0 0.0
    %1360 = vmatprep.subr.mxu0 0.0
    %1361 = vmatpush1.msra.mxu0 0.0
    %1362 = vmatprep.subr.mxu0 0.0
    %1363 = vmatpush1.msra.mxu0 0.0
    %1364 = vmatprep.subr.mxu0 0.0
    %1365 = vmatpush1.msra.mxu0 0.0
    %1366 = vmatprep.subr.mxu0 0.0
    %1367 = vmatpush1.msra.mxu0 0.0
    %1368 = vmatprep.subr.mxu0 0.0
    %1369 = vmatpush1.msra.mxu0 0.0
    %1370 = vmatprep.subr.mxu0 0.0
    %1371 = vmatpush1.msra.mxu0 0.0
    %1372 = vmatprep.subr.mxu0 0.0
    %1373 = vmatpush1.msra.mxu0 0.0
    %1374 = vmatprep.subr.mxu0 0.0
    %1375 = vmatpush1.msra.mxu0 0.0
    %1376 = vmatprep.subr.mxu0 0.0
    %1377 = vmatpush1.msra.mxu0 0.0
    %1378 = vmatprep.subr.mxu0 0.0
    %1379 = vmatpush1.msra.mxu0 0.0
    %1380 = vmatprep.subr.mxu0 0.0
    %1381 = vmatpush1.msra.mxu0 0.0
    %1382 = vmatprep.subr.mxu0 0.0
    %1383 = vmatpush1.msra.mxu0 0.0
    %1384 = vmatprep.subr.mxu0 0.0
    %1385 = vmatpush1.msra.mxu0 0.0
    %1386 = vmatprep.subr.mxu0 0.0
    %1387 = vmatpush1.msra.mxu0 0.0
    %1388 = vmatprep.subr.mxu0 0.0
    %1389 = vmatpush1.msra.mxu0 0.0
    %1390 = vmatprep.subr.mxu0 0.0
    %1391 = vmatpush1.msra.mxu0 0.0
    %1392 = vmatprep.subr.mxu0 0.0
    %1393 = vmatpush1.msra.mxu0 0.0
    %1394 = vmatprep.subr.mxu0 0.0
    %1395 = vmatpush1.msra.mxu0 0.0
    %1396 = vmatprep.subr.mxu0 0.0
    %1397 = vmatpush1.msra.mxu0 0.0
    %1398 = vmatprep.subr.mxu0 0.0
    %1399 = vmatpush1.msra.mxu0 0.0
    %1400 = vmatprep.subr.mxu0 0.0
    %1401 = vmatpush1.msra.mxu0 0.0
    %1402 = vmatprep.mubr.f32.mxu0 0.0
    %1403 = vmatmul.mubr.f32.gmra.mrb[0].mxu0 %v153
    %v1404 = vpop.f32.mrb[0].mxu0
    %v1405 = vadd.f32 0.0, %v1404
    %v1406 = vpop.f32.mrb[0].mxu0
    %v1407 = vadd.f32 0.0, %v1406
    %1408 = vdwg.mxu0
    %v1410 = vrot.slane %v1320, 6
    %v1412 = vadd.f32 %v1312, %v1405
    %v1413 = vadd.f32 %v1410, %v1407
    %v1414 = vxor.u32 %v1412, 2147483648
    %v1415 = vxor.u32 %v1413, 2147483648
    %v1416 = vmul.f32 %v1414, 1.442695
    %v1417 = vpow.pop %v1416
    %v1418 = vmul.f32 %v1415, 1.442695
    %v1419 = vpow.pop %v1418
    %v1420 = vadd.f32 %v1417, 1.0
    %v1421 = vadd.f32 %v1419, 1.0
    %v1422 = vrcp.pop %v1420
    %v1423 = vmul.f32 1.0, %v1422
    %v1424 = vrcp.pop %v1421
    %v1425 = vmul.f32 1.0, %v1424
    %1427 = vrot.lane.b32.xlu0 %v1412, 64
    %v1428 = vpop.permute.xlu0 %1427
    %1431 = vrot.lane.b32.xlu0 %v1413, 96
    %v1432 = vpop.permute.xlu0 %1431
    %v1434 = vsel %vm251, %v1428, %v1432
    %v1435 = vtanh.pop %v1434
    %1437 = vrot.lane.b32.xlu0 %v1425, 32
    %v1438 = vpop.permute.xlu0 %1437
    %v1440 = vsel %vm251, %v1423, %v1438
    %1442 = vrot.lane.b32.xlu0 %v1423, 96
    %v1443 = vpop.permute.xlu0 %1442
    %v1445 = vsel %vm251, %v1443, %v1425
    %1446 = vrot.lane.b32.xlu0 %v1423, 32
    %v1447 = vpop.permute.xlu0 %1446
    %1449 = vrot.lane.b32.xlu0 %v1425, 64
    %v1450 = vpop.permute.xlu0 %1449
    %v1452 = vsel %vm251, %v1447, %v1450
    %v1453 = vmul.f32 %v1445, 0.0
    %v1454 = vmul.f32 %v1440, %v1435
    %v1455 = vadd.f32 %v1453, %v1454
    %v1456 = vtanh.pop %v1455
    %v1457 = vmul.f32 %v1452, %v1456
    %1458 = vst.msk [vmem:[#allocation3] sm:$0x3] %vm276, %v1457
    %1459 = vst.msk [vmem:[#allocation3 + $0xe] sm:$0x3] %vm278, %v1457
    %v1461 = vsel %vm151, %v1457, 0
    %1463 = vmatprep.subr.mxu0 %v1323
    %1464 = vmatpush1.msra.mxu0 %v1322
    %1465 = vmatprep.subr.mxu0 %v1325
    %1466 = vmatpush1.msra.mxu0 %v1324
    %1467 = vmatprep.subr.mxu0 %v1327
    %1468 = vmatpush1.msra.mxu0 %v1326
    %1469 = vmatprep.subr.mxu0 %v1329
    %1470 = vmatpush1.msra.mxu0 %v1328
    %1471 = vmatprep.subr.mxu0 %v1331
    %1472 = vmatpush1.msra.mxu0 %v1330
    %1473 = vmatprep.subr.mxu0 %v1333
    %1474 = vmatpush1.msra.mxu0 %v1332
    %1475 = vmatprep.subr.mxu0 %v1335
    %1476 = vmatpush1.msra.mxu0 %v1334
    %1477 = vmatprep.subr.mxu0 %v1337
    %1478 = vmatpush1.msra.mxu0 %v1336
    %1479 = vmatprep.subr.mxu0 0.0
    %1480 = vmatpush1.msra.mxu0 0.0
    %1481 = vmatprep.subr.mxu0 0.0
    %1482 = vmatpush1.msra.mxu0 0.0
    %1483 = vmatprep.subr.mxu0 0.0
    %1484 = vmatpush1.msra.mxu0 0.0
    %1485 = vmatprep.subr.mxu0 0.0
    %1486 = vmatpush1.msra.mxu0 0.0
    %1487 = vmatprep.subr.mxu0 0.0
    %1488 = vmatpush1.msra.mxu0 0.0
    %1489 = vmatprep.subr.mxu0 0.0
    %1490 = vmatpush1.msra.mxu0 0.0
    %1491 = vmatprep.subr.mxu0 0.0
    %1492 = vmatpush1.msra.mxu0 0.0
    %1493 = vmatprep.subr.mxu0 0.0
    %1494 = vmatpush1.msra.mxu0 0.0
    %1495 = vmatprep.subr.mxu0 0.0
    %1496 = vmatpush1.msra.mxu0 0.0
    %1497 = vmatprep.subr.mxu0 0.0
    %1498 = vmatpush1.msra.mxu0 0.0
    %1499 = vmatprep.subr.mxu0 0.0
    %1500 = vmatpush1.msra.mxu0 0.0
    %1501 = vmatprep.subr.mxu0 0.0
    %1502 = vmatpush1.msra.mxu0 0.0
    %1503 = vmatprep.subr.mxu0 0.0
    %1504 = vmatpush1.msra.mxu0 0.0
    %1505 = vmatprep.subr.mxu0 0.0
    %1506 = vmatpush1.msra.mxu0 0.0
    %1507 = vmatprep.subr.mxu0 0.0
    %1508 = vmatpush1.msra.mxu0 0.0
    %1509 = vmatprep.subr.mxu0 0.0
    %1510 = vmatpush1.msra.mxu0 0.0
    %1511 = vmatprep.subr.mxu0 0.0
    %1512 = vmatpush1.msra.mxu0 0.0
    %1513 = vmatprep.subr.mxu0 0.0
    %1514 = vmatpush1.msra.mxu0 0.0
    %1515 = vmatprep.subr.mxu0 0.0
    %1516 = vmatpush1.msra.mxu0 0.0
    %1517 = vmatprep.subr.mxu0 0.0
    %1518 = vmatpush1.msra.mxu0 0.0
    %1519 = vmatprep.subr.mxu0 0.0
    %1520 = vmatpush1.msra.mxu0 0.0
    %1521 = vmatprep.subr.mxu0 0.0
    %1522 = vmatpush1.msra.mxu0 0.0
    %1523 = vmatprep.subr.mxu0 0.0
    %1524 = vmatpush1.msra.mxu0 0.0
    %1525 = vmatprep.subr.mxu0 0.0
    %1526 = vmatpush1.msra.mxu0 0.0
    %1527 = vmatprep.mubr.f32.mxu0 0.0
    %1528 = vmatmul.mubr.f32.gmra.mrb[0].mxu0 %v1461
    %v1529 = vpop.f32.mrb[0].mxu0
    %v1530 = vadd.f32 0.0, %v1529
    %v1531 = vpop.f32.mrb[0].mxu0
    %v1532 = vadd.f32 0.0, %v1531
    %1533 = vdwg.mxu0
    %v1534 = vrot.slane %v1320, 2
    %v1538 = vrot.slane %v1530, 6
    %v1539 = vrot.slane %v1532, 6
    %v1542 = vadd.f32 %v1312, %v1538
    %v1543 = vadd.f32 %v1534, %v1539
    %v1544 = vxor.u32 %v1542, 2147483648
    %v1545 = vxor.u32 %v1543, 2147483648
    %v1546 = vmul.f32 %v1544, 1.442695
    %v1547 = vpow.pop %v1546
    %v1548 = vmul.f32 %v1545, 1.442695
    %v1549 = vpow.pop %v1548
    %v1550 = vadd.f32 %v1547, 1.0
    %v1551 = vadd.f32 %v1549, 1.0
    %v1552 = vrcp.pop %v1550
    %v1553 = vmul.f32 1.0, %v1552
    %v1554 = vrcp.pop %v1551
    %v1555 = vmul.f32 1.0, %v1554
    %1557 = vrot.lane.b32.xlu0 %v1542, 64
    %v1558 = vpop.permute.xlu0 %1557
    %1561 = vrot.lane.b32.xlu0 %v1543, 96
    %v1562 = vpop.permute.xlu0 %1561
    %v1564 = vsel %vm251, %v1558, %v1562
    %v1565 = vtanh.pop %v1564
    %1567 = vrot.lane.b32.xlu0 %v1555, 32
    %v1568 = vpop.permute.xlu0 %1567
    %v1570 = vsel %vm251, %v1553, %v1568
    %1572 = vrot.lane.b32.xlu0 %v1553, 96
    %v1573 = vpop.permute.xlu0 %1572
    %v1575 = vsel %vm251, %v1573, %v1555
    %1576 = vrot.lane.b32.xlu0 %v1553, 32
    %v1577 = vpop.permute.xlu0 %1576
    %1579 = vrot.lane.b32.xlu0 %v1555, 64
    %v1580 = vpop.permute.xlu0 %1579
    %v1582 = vsel %vm251, %v1577, %v1580
    %v1584 = vrot.slane %v1455, 6
    %v1586 = vmul.f32 %v1575, %v1584
    %v1587 = vmul.f32 %v1570, %v1565
    %v1588 = vadd.f32 %v1586, %v1587
    %v1589 = vtanh.pop %v1588
    %v1590 = vmul.f32 %v1582, %v1589
    %1591 = vst.msk [vmem:[#allocation3] sm:$0xc] %vm411, %v1590
    %1592 = vst.msk [vmem:[#allocation3 + $0xa] sm:$0xc] %vm413, %v1590
    %v1594 = vrot.slane %v1590, 2
    %v1595 = vsel %vm151, %v1594, 0
    %1597 = vmatprep.subr.mxu0 %v1323
    %1598 = vmatpush1.msra.mxu0 %v1322
    %1599 = vmatprep.subr.mxu0 %v1325
    %1600 = vmatpush1.msra.mxu0 %v1324
    %1601 = vmatprep.subr.mxu0 %v1327
    %1602 = vmatpush1.msra.mxu0 %v1326
    %1603 = vmatprep.subr.mxu0 %v1329
    %1604 = vmatpush1.msra.mxu0 %v1328
    %1605 = vmatprep.subr.mxu0 %v1331
    %1606 = vmatpush1.msra.mxu0 %v1330
    %1607 = vmatprep.subr.mxu0 %v1333
    %1608 = vmatpush1.msra.mxu0 %v1332
    %1609 = vmatprep.subr.mxu0 %v1335
    %1610 = vmatpush1.msra.mxu0 %v1334
    %1611 = vmatprep.subr.mxu0 %v1337
    %1612 = vmatpush1.msra.mxu0 %v1336
    %1613 = vmatprep.subr.mxu0 0.0
    %1614 = vmatpush1.msra.mxu0 0.0
    %1615 = vmatprep.subr.mxu0 0.0
    %1616 = vmatpush1.msra.mxu0 0.0
    %1617 = vmatprep.subr.mxu0 0.0
    %1618 = vmatpush1.msra.mxu0 0.0
    %1619 = vmatprep.subr.mxu0 0.0
    %1620 = vmatpush1.msra.mxu0 0.0
    %1621 = vmatprep.subr.mxu0 0.0
    %1622 = vmatpush1.msra.mxu0 0.0
    %1623 = vmatprep.subr.mxu0 0.0
    %1624 = vmatpush1.msra.mxu0 0.0
    %1625 = vmatprep.subr.mxu0 0.0
    %1626 = vmatpush1.msra.mxu0 0.0
    %1627 = vmatprep.subr.mxu0 0.0
    %1628 = vmatpush1.msra.mxu0 0.0
    %1629 = vmatprep.subr.mxu0 0.0
    %1630 = vmatpush1.msra.mxu0 0.0
    %1631 = vmatprep.subr.mxu0 0.0
    %1632 = vmatpush1.msra.mxu0 0.0
    %1633 = vmatprep.subr.mxu0 0.0
    %1634 = vmatpush1.msra.mxu0 0.0
    %1635 = vmatprep.subr.mxu0 0.0
    %1636 = vmatpush1.msra.mxu0 0.0
    %1637 = vmatprep.subr.mxu0 0.0
    %1638 = vmatpush1.msra.mxu0 0.0
    %1639 = vmatprep.subr.mxu0 0.0
    %1640 = vmatpush1.msra.mxu0 0.0
    %1641 = vmatprep.subr.mxu0 0.0
    %1642 = vmatpush1.msra.mxu0 0.0
    %1643 = vmatprep.subr.mxu0 0.0
    %1644 = vmatpush1.msra.mxu0 0.0
    %1645 = vmatprep.subr.mxu0 0.0
    %1646 = vmatpush1.msra.mxu0 0.0
    %1647 = vmatprep.subr.mxu0 0.0
    %1648 = vmatpush1.msra.mxu0 0.0
    %1649 = vmatprep.subr.mxu0 0.0
    %1650 = vmatpush1.msra.mxu0 0.0
    %1651 = vmatprep.subr.mxu0 0.0
    %1652 = vmatpush1.msra.mxu0 0.0
    %1653 = vmatprep.subr.mxu0 0.0
    %1654 = vmatpush1.msra.mxu0 0.0
    %1655 = vmatprep.subr.mxu0 0.0
    %1656 = vmatpush1.msra.mxu0 0.0
    %1657 = vmatprep.subr.mxu0 0.0
    %1658 = vmatpush1.msra.mxu0 0.0
    %1659 = vmatprep.subr.mxu0 0.0
    %1660 = vmatpush1.msra.mxu0 0.0
    %1661 = vmatprep.mubr.f32.mxu0 0.0
    %1662 = vmatmul.mubr.f32.gmra.mrb[0].mxu0 %v1595
    %v1663 = vpop.f32.mrb[0].mxu0
    %v1664 = vadd.f32 0.0, %v1663
    %v1665 = vpop.f32.mrb[0].mxu0
    %v1666 = vadd.f32 0.0, %v1665
    %1667 = vdwg.mxu0
    %v1670 = vrot.slane %v1664, 4
    %v1671 = vrot.slane %v1666, 4
    %v1674 = vadd.f32 %v1312, %v1670
    %v1675 = vadd.f32 %v1410, %v1671
    %v1676 = vxor.u32 %v1674, 2147483648
    %v1677 = vxor.u32 %v1675, 2147483648
    %v1678 = vmul.f32 %v1676, 1.442695
    %v1679 = vpow.pop %v1678
    %v1680 = vmul.f32 %v1677, 1.442695
    %v1681 = vpow.pop %v1680
    %v1682 = vadd.f32 %v1679, 1.0
    %v1683 = vadd.f32 %v1681, 1.0
    %v1684 = vrcp.pop %v1682
    %v1685 = vmul.f32 1.0, %v1684
    %v1686 = vrcp.pop %v1683
    %v1687 = vmul.f32 1.0, %v1686
    %1689 = vrot.lane.b32.xlu0 %v1674, 64
    %v1690 = vpop.permute.xlu0 %1689
    %1693 = vrot.lane.b32.xlu0 %v1675, 96
    %v1694 = vpop.permute.xlu0 %1693
    %v1696 = vsel %vm251, %v1690, %v1694
    %v1697 = vtanh.pop %v1696
    %1699 = vrot.lane.b32.xlu0 %v1687, 32
    %v1700 = vpop.permute.xlu0 %1699
    %v1702 = vsel %vm251, %v1685, %v1700
    %1704 = vrot.lane.b32.xlu0 %v1685, 96
    %v1705 = vpop.permute.xlu0 %1704
    %v1707 = vsel %vm251, %v1705, %v1687
    %1708 = vrot.lane.b32.xlu0 %v1685, 32
    %v1709 = vpop.permute.xlu0 %1708
    %1711 = vrot.lane.b32.xlu0 %v1687, 64
    %v1712 = vpop.permute.xlu0 %1711
    %v1714 = vsel %vm251, %v1709, %v1712
    %v1716 = vrot.slane %v1588, 6
    %v1718 = vmul.f32 %v1707, %v1716
    %v1719 = vmul.f32 %v1702, %v1697
    %v1720 = vadd.f32 %v1718, %v1719
    %v1721 = vtanh.pop %v1720
    %v1722 = vmul.f32 %v1714, %v1721
    %1723 = vst.msk [vmem:[#allocation3] sm:$0x30] %vm545, %v1722
    %1724 = vst.msk [vmem:[#allocation3 + $0x6] sm:$0x30] %vm547, %v1722
    %v1726 = vrot.slane %v1722, 4
    %v1727 = vsel %vm151, %v1726, 0
    %1729 = vmatprep.subr.mxu0 %v1323
    %1730 = vmatpush1.msra.mxu0 %v1322
    %1731 = vmatprep.subr.mxu0 %v1325
    %1732 = vmatpush1.msra.mxu0 %v1324
    %1733 = vmatprep.subr.mxu0 %v1327
    %1734 = vmatpush1.msra.mxu0 %v1326
    %1735 = vmatprep.subr.mxu0 %v1329
    %1736 = vmatpush1.msra.mxu0 %v1328
    %1737 = vmatprep.subr.mxu0 %v1331
    %1738 = vmatpush1.msra.mxu0 %v1330
    %1739 = vmatprep.subr.mxu0 %v1333
    %1740 = vmatpush1.msra.mxu0 %v1332
    %1741 = vmatprep.subr.mxu0 %v1335
    %1742 = vmatpush1.msra.mxu0 %v1334
    %1743 = vmatprep.subr.mxu0 %v1337
    %1744 = vmatpush1.msra.mxu0 %v1336
    %1745 = vmatprep.subr.mxu0 0.0
    %1746 = vmatpush1.msra.mxu0 0.0
    %1747 = vmatprep.subr.mxu0 0.0
    %1748 = vmatpush1.msra.mxu0 0.0
    %1749 = vmatprep.subr.mxu0 0.0
    %1750 = vmatpush1.msra.mxu0 0.0
    %1751 = vmatprep.subr.mxu0 0.0
    %1752 = vmatpush1.msra.mxu0 0.0
    %1753 = vmatprep.subr.mxu0 0.0
    %1754 = vmatpush1.msra.mxu0 0.0
    %1755 = vmatprep.subr.mxu0 0.0
    %1756 = vmatpush1.msra.mxu0 0.0
    %1757 = vmatprep.subr.mxu0 0.0
    %1758 = vmatpush1.msra.mxu0 0.0
    %1759 = vmatprep.subr.mxu0 0.0
    %1760 = vmatpush1.msra.mxu0 0.0
    %1761 = vmatprep.subr.mxu0 0.0
    %1762 = vmatpush1.msra.mxu0 0.0
    %1763 = vmatprep.subr.mxu0 0.0
    %1764 = vmatpush1.msra.mxu0 0.0
    %1765 = vmatprep.subr.mxu0 0.0
    %1766 = vmatpush1.msra.mxu0 0.0
    %1767 = vmatprep.subr.mxu0 0.0
    %1768 = vmatpush1.msra.mxu0 0.0
    %1769 = vmatprep.subr.mxu0 0.0
    %1770 = vmatpush1.msra.mxu0 0.0
    %1771 = vmatprep.subr.mxu0 0.0
    %1772 = vmatpush1.msra.mxu0 0.0
    %1773 = vmatprep.subr.mxu0 0.0
    %1774 = vmatpush1.msra.mxu0 0.0
    %1775 = vmatprep.subr.mxu0 0.0
    %1776 = vmatpush1.msra.mxu0 0.0
    %1777 = vmatprep.subr.mxu0 0.0
    %1778 = vmatpush1.msra.mxu0 0.0
    %1779 = vmatprep.subr.mxu0 0.0
    %1780 = vmatpush1.msra.mxu0 0.0
    %1781 = vmatprep.subr.mxu0 0.0
    %1782 = vmatpush1.msra.mxu0 0.0
    %1783 = vmatprep.subr.mxu0 0.0
    %1784 = vmatpush1.msra.mxu0 0.0
    %1785 = vmatprep.subr.mxu0 0.0
    %1786 = vmatpush1.msra.mxu0 0.0
    %1787 = vmatprep.subr.mxu0 0.0
    %1788 = vmatpush1.msra.mxu0 0.0
    %1789 = vmatprep.subr.mxu0 0.0
    %1790 = vmatpush1.msra.mxu0 0.0
    %1791 = vmatprep.subr.mxu0 0.0
    %1792 = vmatpush1.msra.mxu0 0.0
    %1793 = vmatprep.mubr.f32.mxu0 0.0
    %1794 = vmatmul.mubr.f32.gmra.mrb[0].mxu0 %v1727
    %v1795 = vpop.f32.mrb[0].mxu0
    %v1796 = vadd.f32 0.0, %v1795
    %v1797 = vpop.f32.mrb[0].mxu0
    %v1798 = vadd.f32 0.0, %v1797
    %1799 = vdwg.mxu0
    %v1802 = vrot.slane %v1796, 2
    %v1803 = vrot.slane %v1798, 2
    %v1806 = vadd.f32 %v1312, %v1802
    %v1807 = vadd.f32 %v1534, %v1803
    %v1808 = vxor.u32 %v1806, 2147483648
    %v1809 = vxor.u32 %v1807, 2147483648
    %v1810 = vmul.f32 %v1808, 1.442695
    %v1811 = vpow.pop %v1810
    %v1812 = vmul.f32 %v1809, 1.442695
    %v1813 = vpow.pop %v1812
    %v1814 = vadd.f32 %v1811, 1.0
    %v1815 = vadd.f32 %v1813, 1.0
    %v1816 = vrcp.pop %v1814
    %v1817 = vmul.f32 1.0, %v1816
    %v1818 = vrcp.pop %v1815
    %v1819 = vmul.f32 1.0, %v1818
    %1821 = vrot.lane.b32.xlu0 %v1806, 64
    %v1822 = vpop.permute.xlu0 %1821
    %1825 = vrot.lane.b32.xlu0 %v1807, 96
    %v1826 = vpop.permute.xlu0 %1825
    %v1828 = vsel %vm251, %v1822, %v1826
    %v1829 = vtanh.pop %v1828
    %1831 = vrot.lane.b32.xlu0 %v1819, 32
    %v1832 = vpop.permute.xlu0 %1831
    %v1834 = vsel %vm251, %v1817, %v1832
    %1836 = vrot.lane.b32.xlu0 %v1817, 96
    %v1837 = vpop.permute.xlu0 %1836
    %v1839 = vsel %vm251, %v1837, %v1819
    %1840 = vrot.lane.b32.xlu0 %v1817, 32
    %v1841 = vpop.permute.xlu0 %1840
    %1843 = vrot.lane.b32.xlu0 %v1819, 64
    %v1844 = vpop.permute.xlu0 %1843
    %v1846 = vsel %vm251, %v1841, %v1844
    %v1848 = vrot.slane %v1720, 6
    %v1850 = vmul.f32 %v1839, %v1848
    %v1851 = vmul.f32 %v1834, %v1829
    %v1852 = vadd.f32 %v1850, %v1851
    %v1853 = vtanh.pop %v1852
    %v1854 = vmul.f32 %v1846, %v1853
    %1855 = vst.msk [vmem:[#allocation3] sm:$0xc0] %vm679, %v1854
    %1856 = vst.msk [vmem:[#allocation3 + $0x2] sm:$0xc0] %vm681, %v1854
    %v1858 = vrot.slane %v1854, 6
    %v1859 = vsel %vm151, %v1858, 0
    %1861 = vmatprep.subr.mxu0 %v1323
    %1862 = vmatpush1.msra.mxu0 %v1322
    %1863 = vmatprep.subr.mxu0 %v1325
    %1864 = vmatpush1.msra.mxu0 %v1324
    %1865 = vmatprep.subr.mxu0 %v1327
    %1866 = vmatpush1.msra.mxu0 %v1326
    %1867 = vmatprep.subr.mxu0 %v1329
    %1868 = vmatpush1.msra.mxu0 %v1328
    %1869 = vmatprep.subr.mxu0 %v1331
    %1870 = vmatpush1.msra.mxu0 %v1330
    %1871 = vmatprep.subr.mxu0 %v1333
    %1872 = vmatpush1.msra.mxu0 %v1332
    %1873 = vmatprep.subr.mxu0 %v1335
    %1874 = vmatpush1.msra.mxu0 %v1334
    %1875 = vmatprep.subr.mxu0 %v1337
    %1876 = vmatpush1.msra.mxu0 %v1336
    %1877 = vmatprep.subr.mxu0 0.0
    %1878 = vmatpush1.msra.mxu0 0.0
    %1879 = vmatprep.subr.mxu0 0.0
    %1880 = vmatpush1.msra.mxu0 0.0
    %1881 = vmatprep.subr.mxu0 0.0
    %1882 = vmatpush1.msra.mxu0 0.0
    %1883 = vmatprep.subr.mxu0 0.0
    %1884 = vmatpush1.msra.mxu0 0.0
    %1885 = vmatprep.subr.mxu0 0.0
    %1886 = vmatpush1.msra.mxu0 0.0
    %1887 = vmatprep.subr.mxu0 0.0
    %1888 = vmatpush1.msra.mxu0 0.0
    %1889 = vmatprep.subr.mxu0 0.0
    %1890 = vmatpush1.msra.mxu0 0.0
    %1891 = vmatprep.subr.mxu0 0.0
    %1892 = vmatpush1.msra.mxu0 0.0
    %1893 = vmatprep.subr.mxu0 0.0
    %1894 = vmatpush1.msra.mxu0 0.0
    %1895 = vmatprep.subr.mxu0 0.0
    %1896 = vmatpush1.msra.mxu0 0.0
    %1897 = vmatprep.subr.mxu0 0.0
    %1898 = vmatpush1.msra.mxu0 0.0
    %1899 = vmatprep.subr.mxu0 0.0
    %1900 = vmatpush1.msra.mxu0 0.0
    %1901 = vmatprep.subr.mxu0 0.0
    %1902 = vmatpush1.msra.mxu0 0.0
    %1903 = vmatprep.subr.mxu0 0.0
    %1904 = vmatpush1.msra.mxu0 0.0
    %1905 = vmatprep.subr.mxu0 0.0
    %1906 = vmatpush1.msra.mxu0 0.0
    %1907 = vmatprep.subr.mxu0 0.0
    %1908 = vmatpush1.msra.mxu0 0.0
    %1909 = vmatprep.subr.mxu0 0.0
    %1910 = vmatpush1.msra.mxu0 0.0
    %1911 = vmatprep.subr.mxu0 0.0
    %1912 = vmatpush1.msra.mxu0 0.0
    %1913 = vmatprep.subr.mxu0 0.0
    %1914 = vmatpush1.msra.mxu0 0.0
    %1915 = vmatprep.subr.mxu0 0.0
    %1916 = vmatpush1.msra.mxu0 0.0
    %1917 = vmatprep.subr.mxu0 0.0
    %1918 = vmatpush1.msra.mxu0 0.0
    %1919 = vmatprep.subr.mxu0 0.0
    %1920 = vmatpush1.msra.mxu0 0.0
    %1921 = vmatprep.subr.mxu0 0.0
    %1922 = vmatpush1.msra.mxu0 0.0
    %1923 = vmatprep.subr.mxu0 0.0
    %1924 = vmatpush1.msra.mxu0 0.0
    %1925 = vmatprep.mubr.f32.mxu0 0.0
    %1926 = vmatmul.mubr.f32.gmra.mrb[0].mxu0 %v1859
    %v1927 = vpop.f32.mrb[0].mxu0
    %v1928 = vadd.f32 0.0, %v1927
    %v1929 = vpop.f32.mrb[0].mxu0
    %v1930 = vadd.f32 0.0, %v1929
    %1931 = vdwg.mxu0
    %v1933 = vrot.slane %v1314, 6
    %v1935 = vadd.f32 %v1318, %v1928
    %v1936 = vadd.f32 %v1933, %v1930
    %v1937 = vxor.u32 %v1935, 2147483648
    %v1938 = vxor.u32 %v1936, 2147483648
    %v1939 = vmul.f32 %v1937, 1.442695
    %v1940 = vpow.pop %v1939
    %v1941 = vmul.f32 %v1938, 1.442695
    %v1942 = vpow.pop %v1941
    %v1943 = vadd.f32 %v1940, 1.0
    %v1944 = vadd.f32 %v1942, 1.0
    %v1945 = vrcp.pop %v1943
    %v1946 = vmul.f32 1.0, %v1945
    %v1947 = vrcp.pop %v1944
    %v1948 = vmul.f32 1.0, %v1947
    %1950 = vrot.lane.b32.xlu0 %v1935, 64
    %v1951 = vpop.permute.xlu0 %1950
    %1954 = vrot.lane.b32.xlu0 %v1936, 96
    %v1955 = vpop.permute.xlu0 %1954
    %v1957 = vsel %vm251, %v1951, %v1955
    %v1958 = vtanh.pop %v1957
    %1960 = vrot.lane.b32.xlu0 %v1948, 32
    %v1961 = vpop.permute.xlu0 %1960
    %v1963 = vsel %vm251, %v1946, %v1961
    %1965 = vrot.lane.b32.xlu0 %v1946, 96
    %v1966 = vpop.permute.xlu0 %1965
    %v1968 = vsel %vm251, %v1966, %v1948
    %1969 = vrot.lane.b32.xlu0 %v1946, 32
    %v1970 = vpop.permute.xlu0 %1969
    %1972 = vrot.lane.b32.xlu0 %v1948, 64
    %v1973 = vpop.permute.xlu0 %1972
    %v1975 = vsel %vm251, %v1970, %v1973
    %v1977 = vrot.slane %v1852, 6
    %v1979 = vmul.f32 %v1968, %v1977
    %v1980 = vmul.f32 %v1963, %v1958
    %v1981 = vadd.f32 %v1979, %v1980
    %v1982 = vtanh.pop %v1981
    %v1983 = vmul.f32 %v1975, %v1982
    %1984 = vst.msk [vmem:[#allocation3 + $0x8] sm:$0x3] %vm276, %v1983
    %1985 = vst.msk [vmem:[#allocation3 + $0x6] sm:$0x3] %vm278, %v1983
    %v1987 = vsel %vm151, %v1983, 0
    %1989 = vmatprep.subr.mxu0 %v1323
    %1990 = vmatpush1.msra.mxu0 %v1322
    %1991 = vmatprep.subr.mxu0 %v1325
    %1992 = vmatpush1.msra.mxu0 %v1324
    %1993 = vmatprep.subr.mxu0 %v1327
    %1994 = vmatpush1.msra.mxu0 %v1326
    %1995 = vmatprep.subr.mxu0 %v1329
    %1996 = vmatpush1.msra.mxu0 %v1328
    %1997 = vmatprep.subr.mxu0 %v1331
    %1998 = vmatpush1.msra.mxu0 %v1330
    %1999 = vmatprep.subr.mxu0 %v1333
    %2000 = vmatpush1.msra.mxu0 %v1332
    %2001 = vmatprep.subr.mxu0 %v1335
    %2002 = vmatpush1.msra.mxu0 %v1334
    %2003 = vmatprep.subr.mxu0 %v1337
    %2004 = vmatpush1.msra.mxu0 %v1336
    %2005 = vmatprep.subr.mxu0 0.0
    %2006 = vmatpush1.msra.mxu0 0.0
    %2007 = vmatprep.subr.mxu0 0.0
    %2008 = vmatpush1.msra.mxu0 0.0
    %2009 = vmatprep.subr.mxu0 0.0
    %2010 = vmatpush1.msra.mxu0 0.0
    %2011 = vmatprep.subr.mxu0 0.0
    %2012 = vmatpush1.msra.mxu0 0.0
    %2013 = vmatprep.subr.mxu0 0.0
    %2014 = vmatpush1.msra.mxu0 0.0
    %2015 = vmatprep.subr.mxu0 0.0
    %2016 = vmatpush1.msra.mxu0 0.0
    %2017 = vmatprep.subr.mxu0 0.0
    %2018 = vmatpush1.msra.mxu0 0.0
    %2019 = vmatprep.subr.mxu0 0.0
    %2020 = vmatpush1.msra.mxu0 0.0
    %2021 = vmatprep.subr.mxu0 0.0
    %2022 = vmatpush1.msra.mxu0 0.0
    %2023 = vmatprep.subr.mxu0 0.0
    %2024 = vmatpush1.msra.mxu0 0.0
    %2025 = vmatprep.subr.mxu0 0.0
    %2026 = vmatpush1.msra.mxu0 0.0
    %2027 = vmatprep.subr.mxu0 0.0
    %2028 = vmatpush1.msra.mxu0 0.0
    %2029 = vmatprep.subr.mxu0 0.0
    %2030 = vmatpush1.msra.mxu0 0.0
    %2031 = vmatprep.subr.mxu0 0.0
    %2032 = vmatpush1.msra.mxu0 0.0
    %2033 = vmatprep.subr.mxu0 0.0
    %2034 = vmatpush1.msra.mxu0 0.0
    %2035 = vmatprep.subr.mxu0 0.0
    %2036 = vmatpush1.msra.mxu0 0.0
    %2037 = vmatprep.subr.mxu0 0.0
    %2038 = vmatpush1.msra.mxu0 0.0
    %2039 = vmatprep.subr.mxu0 0.0
    %2040 = vmatpush1.msra.mxu0 0.0
    %2041 = vmatprep.subr.mxu0 0.0
    %2042 = vmatpush1.msra.mxu0 0.0
    %2043 = vmatprep.subr.mxu0 0.0
    %2044 = vmatpush1.msra.mxu0 0.0
    %2045 = vmatprep.subr.mxu0 0.0
    %2046 = vmatpush1.msra.mxu0 0.0
    %2047 = vmatprep.subr.mxu0 0.0
    %2048 = vmatpush1.msra.mxu0 0.0
    %2049 = vmatprep.subr.mxu0 0.0
    %2050 = vmatpush1.msra.mxu0 0.0
    %2051 = vmatprep.subr.mxu0 0.0
    %2052 = vmatpush1.msra.mxu0 0.0
    %2053 = vmatprep.mubr.f32.mxu0 0.0
    %2054 = vmatmul.mubr.f32.gmra.mrb[0].mxu0 %v1987
    %v2055 = vpop.f32.mrb[0].mxu0
    %v2056 = vadd.f32 0.0, %v2055
    %v2057 = vpop.f32.mrb[0].mxu0
    %v2058 = vadd.f32 0.0, %v2057
    %2059 = vdwg.mxu0
    %v2060 = vrot.slane %v1314, 2
    %v2064 = vrot.slane %v2056, 6
    %v2065 = vrot.slane %v2058, 6
    %v2068 = vadd.f32 %v1318, %v2064
    %v2069 = vadd.f32 %v2060, %v2065
    %v2070 = vxor.u32 %v2068, 2147483648
    %v2071 = vxor.u32 %v2069, 2147483648
    %v2072 = vmul.f32 %v2070, 1.442695
    %v2073 = vpow.pop %v2072
    %v2074 = vmul.f32 %v2071, 1.442695
    %v2075 = vpow.pop %v2074
    %v2076 = vadd.f32 %v2073, 1.0
    %v2077 = vadd.f32 %v2075, 1.0
    %v2078 = vrcp.pop %v2076
    %v2079 = vmul.f32 1.0, %v2078
    %v2080 = vrcp.pop %v2077
    %v2081 = vmul.f32 1.0, %v2080
    %2083 = vrot.lane.b32.xlu0 %v2068, 64
    %v2084 = vpop.permute.xlu0 %2083
    %2087 = vrot.lane.b32.xlu0 %v2069, 96
    %v2088 = vpop.permute.xlu0 %2087
    %v2090 = vsel %vm251, %v2084, %v2088
    %v2091 = vtanh.pop %v2090
    %2093 = vrot.lane.b32.xlu0 %v2081, 32
    %v2094 = vpop.permute.xlu0 %2093
    %v2096 = vsel %vm251, %v2079, %v2094
    %2098 = vrot.lane.b32.xlu0 %v2079, 96
    %v2099 = vpop.permute.xlu0 %2098
    %v2101 = vsel %vm251, %v2099, %v2081
    %2102 = vrot.lane.b32.xlu0 %v2079, 32
    %v2103 = vpop.permute.xlu0 %2102
    %2105 = vrot.lane.b32.xlu0 %v2081, 64
    %v2106 = vpop.permute.xlu0 %2105
    %v2108 = vsel %vm251, %v2103, %v2106
    %v2110 = vrot.slane %v1981, 6
    %v2112 = vmul.f32 %v2101, %v2110
    %v2113 = vmul.f32 %v2096, %v2091
    %v2114 = vadd.f32 %v2112, %v2113
    %v2115 = vtanh.pop %v2114
    %v2116 = vmul.f32 %v2108, %v2115
    %2117 = vst.msk [vmem:[#allocation3 + $0x8] sm:$0xc] %vm411, %v2116
    %2118 = vst.msk [vmem:[#allocation3 + $0x2] sm:$0xc] %vm413, %v2116
    %v2120 = vrot.slane %v2116, 2
    %v2121 = vsel %vm151, %v2120, 0
    %2123 = vmatprep.subr.mxu0 %v1323
    %2124 = vmatpush1.msra.mxu0 %v1322
    %2125 = vmatprep.subr.mxu0 %v1325
    %2126 = vmatpush1.msra.mxu0 %v1324
    %2127 = vmatprep.subr.mxu0 %v1327
    %2128 = vmatpush1.msra.mxu0 %v1326
    %2129 = vmatprep.subr.mxu0 %v1329
    %2130 = vmatpush1.msra.mxu0 %v1328
    %2131 = vmatprep.subr.mxu0 %v1331
    %2132 = vmatpush1.msra.mxu0 %v1330
    %2133 = vmatprep.subr.mxu0 %v1333
    %2134 = vmatpush1.msra.mxu0 %v1332
    %2135 = vmatprep.subr.mxu0 %v1335
    %2136 = vmatpush1.msra.mxu0 %v1334
    %2137 = vmatprep.subr.mxu0 %v1337
    %2138 = vmatpush1.msra.mxu0 %v1336
    %2139 = vmatprep.subr.mxu0 0.0
    %2140 = vmatpush1.msra.mxu0 0.0
    %2141 = vmatprep.subr.mxu0 0.0
    %2142 = vmatpush1.msra.mxu0 0.0
    %2143 = vmatprep.subr.mxu0 0.0
    %2144 = vmatpush1.msra.mxu0 0.0
    %2145 = vmatprep.subr.mxu0 0.0
    %2146 = vmatpush1.msra.mxu0 0.0
    %2147 = vmatprep.subr.mxu0 0.0
    %2148 = vmatpush1.msra.mxu0 0.0
    %2149 = vmatprep.subr.mxu0 0.0
    %2150 = vmatpush1.msra.mxu0 0.0
    %2151 = vmatprep.subr.mxu0 0.0
    %2152 = vmatpush1.msra.mxu0 0.0
    %2153 = vmatprep.subr.mxu0 0.0
    %2154 = vmatpush1.msra.mxu0 0.0
    %2155 = vmatprep.subr.mxu0 0.0
    %2156 = vmatpush1.msra.mxu0 0.0
    %2157 = vmatprep.subr.mxu0 0.0
    %2158 = vmatpush1.msra.mxu0 0.0
    %2159 = vmatprep.subr.mxu0 0.0
    %2160 = vmatpush1.msra.mxu0 0.0
    %2161 = vmatprep.subr.mxu0 0.0
    %2162 = vmatpush1.msra.mxu0 0.0
    %2163 = vmatprep.subr.mxu0 0.0
    %2164 = vmatpush1.msra.mxu0 0.0
    %2165 = vmatprep.subr.mxu0 0.0
    %2166 = vmatpush1.msra.mxu0 0.0
    %2167 = vmatprep.subr.mxu0 0.0
    %2168 = vmatpush1.msra.mxu0 0.0
    %2169 = vmatprep.subr.mxu0 0.0
    %2170 = vmatpush1.msra.mxu0 0.0
    %2171 = vmatprep.subr.mxu0 0.0
    %2172 = vmatpush1.msra.mxu0 0.0
    %2173 = vmatprep.subr.mxu0 0.0
    %2174 = vmatpush1.msra.mxu0 0.0
    %2175 = vmatprep.subr.mxu0 0.0
    %2176 = vmatpush1.msra.mxu0 0.0
    %2177 = vmatprep.subr.mxu0 0.0
    %2178 = vmatpush1.msra.mxu0 0.0
    %2179 = vmatprep.subr.mxu0 0.0
    %2180 = vmatpush1.msra.mxu0 0.0
    %2181 = vmatprep.subr.mxu0 0.0
    %2182 = vmatpush1.msra.mxu0 0.0
    %2183 = vmatprep.subr.mxu0 0.0
    %2184 = vmatpush1.msra.mxu0 0.0
    %2185 = vmatprep.subr.mxu0 0.0
    %2186 = vmatpush1.msra.mxu0 0.0
    %2187 = vmatprep.mubr.f32.mxu0 0.0
    %2188 = vmatmul.mubr.f32.gmra.mrb[0].mxu0 %v2121
    %v2189 = vpop.f32.mrb[0].mxu0
    %v2190 = vadd.f32 0.0, %v2189
    %v2191 = vpop.f32.mrb[0].mxu0
    %v2192 = vadd.f32 0.0, %v2191
    %2193 = vdwg.mxu0
    %v2196 = vrot.slane %v2190, 4
    %v2197 = vrot.slane %v2192, 4
    %v2200 = vadd.f32 %v1318, %v2196
    %v2201 = vadd.f32 %v1933, %v2197
    %v2202 = vxor.u32 %v2200, 2147483648
    %v2203 = vxor.u32 %v2201, 2147483648
    %v2204 = vmul.f32 %v2202, 1.442695
    %v2205 = vpow.pop %v2204
    %v2206 = vmul.f32 %v2203, 1.442695
    %v2207 = vpow.pop %v2206
    %v2208 = vadd.f32 %v2205, 1.0
    %v2209 = vadd.f32 %v2207, 1.0
    %v2210 = vrcp.pop %v2208
    %v2211 = vmul.f32 1.0, %v2210
    %v2212 = vrcp.pop %v2209
    %v2213 = vmul.f32 1.0, %v2212
    %2215 = vrot.lane.b32.xlu0 %v2200, 64
    %v2216 = vpop.permute.xlu0 %2215
    %2219 = vrot.lane.b32.xlu0 %v2201, 96
    %v2220 = vpop.permute.xlu0 %2219
    %v2222 = vsel %vm251, %v2216, %v2220
    %v2223 = vtanh.pop %v2222
    %2225 = vrot.lane.b32.xlu0 %v2213, 32
    %v2226 = vpop.permute.xlu0 %2225
    %v2228 = vsel %vm251, %v2211, %v2226
    %2230 = vrot.lane.b32.xlu0 %v2211, 96
    %v2231 = vpop.permute.xlu0 %2230
    %v2233 = vsel %vm251, %v2231, %v2213
    %2234 = vrot.lane.b32.xlu0 %v2211, 32
    %v2235 = vpop.permute.xlu0 %2234
    %2237 = vrot.lane.b32.xlu0 %v2213, 64
    %v2238 = vpop.permute.xlu0 %2237
    %v2240 = vsel %vm251, %v2235, %v2238
    %v2242 = vrot.slane %v2114, 6
    %v2244 = vmul.f32 %v2233, %v2242
    %v2245 = vmul.f32 %v2228, %v2223
    %v2246 = vadd.f32 %v2244, %v2245
    %v2247 = vtanh.pop %v2246
    %v2248 = vmul.f32 %v2240, %v2247
    %2249 = vst.msk [vmem:[#allocation3 + $0x8] sm:$0x30] %vm545, %v2248
    %2250 = vst.msk [vmem:[#allocation3 - $0x2] sm:$0x30] %vm547, %v2248
    %v2252 = vrot.slane %v2248, 4
    %v2253 = vsel %vm151, %v2252, 0
    %2255 = vmatprep.subr.mxu0 %v1323
    %2256 = vmatpush1.msra.mxu0 %v1322
    %2257 = vmatprep.subr.mxu0 %v1325
    %2258 = vmatpush1.msra.mxu0 %v1324
    %2259 = vmatprep.subr.mxu0 %v1327
    %2260 = vmatpush1.msra.mxu0 %v1326
    %2261 = vmatprep.subr.mxu0 %v1329
    %2262 = vmatpush1.msra.mxu0 %v1328
    %2263 = vmatprep.subr.mxu0 %v1331
    %2264 = vmatpush1.msra.mxu0 %v1330
    %2265 = vmatprep.subr.mxu0 %v1333
    %2266 = vmatpush1.msra.mxu0 %v1332
    %2267 = vmatprep.subr.mxu0 %v1335
    %2268 = vmatpush1.msra.mxu0 %v1334
    %2269 = vmatprep.subr.mxu0 %v1337
    %2270 = vmatpush1.msra.mxu0 %v1336
    %2271 = vmatprep.subr.mxu0 0.0
    %2272 = vmatpush1.msra.mxu0 0.0
    %2273 = vmatprep.subr.mxu0 0.0
    %2274 = vmatpush1.msra.mxu0 0.0
    %2275 = vmatprep.subr.mxu0 0.0
    %2276 = vmatpush1.msra.mxu0 0.0
    %2277 = vmatprep.subr.mxu0 0.0
    %2278 = vmatpush1.msra.mxu0 0.0
    %2279 = vmatprep.subr.mxu0 0.0
    %2280 = vmatpush1.msra.mxu0 0.0
    %2281 = vmatprep.subr.mxu0 0.0
    %2282 = vmatpush1.msra.mxu0 0.0
    %2283 = vmatprep.subr.mxu0 0.0
    %2284 = vmatpush1.msra.mxu0 0.0
    %2285 = vmatprep.subr.mxu0 0.0
    %2286 = vmatpush1.msra.mxu0 0.0
    %2287 = vmatprep.subr.mxu0 0.0
    %2288 = vmatpush1.msra.mxu0 0.0
    %2289 = vmatprep.subr.mxu0 0.0
    %2290 = vmatpush1.msra.mxu0 0.0
    %2291 = vmatprep.subr.mxu0 0.0
    %2292 = vmatpush1.msra.mxu0 0.0
    %2293 = vmatprep.subr.mxu0 0.0
    %2294 = vmatpush1.msra.mxu0 0.0
    %2295 = vmatprep.subr.mxu0 0.0
    %2296 = vmatpush1.msra.mxu0 0.0
    %2297 = vmatprep.subr.mxu0 0.0
    %2298 = vmatpush1.msra.mxu0 0.0
    %2299 = vmatprep.subr.mxu0 0.0
    %2300 = vmatpush1.msra.mxu0 0.0
    %2301 = vmatprep.subr.mxu0 0.0
    %2302 = vmatpush1.msra.mxu0 0.0
    %2303 = vmatprep.subr.mxu0 0.0
    %2304 = vmatpush1.msra.mxu0 0.0
    %2305 = vmatprep.subr.mxu0 0.0
    %2306 = vmatpush1.msra.mxu0 0.0
    %2307 = vmatprep.subr.mxu0 0.0
    %2308 = vmatpush1.msra.mxu0 0.0
    %2309 = vmatprep.subr.mxu0 0.0
    %2310 = vmatpush1.msra.mxu0 0.0
    %2311 = vmatprep.subr.mxu0 0.0
    %2312 = vmatpush1.msra.mxu0 0.0
    %2313 = vmatprep.subr.mxu0 0.0
    %2314 = vmatpush1.msra.mxu0 0.0
    %2315 = vmatprep.subr.mxu0 0.0
    %2316 = vmatpush1.msra.mxu0 0.0
    %2317 = vmatprep.subr.mxu0 0.0
    %2318 = vmatpush1.msra.mxu0 0.0
    %2319 = vmatprep.mubr.f32.mxu0 0.0
    %2320 = vmatmul.mubr.f32.gmra.mrb[0].mxu0 %v2253
    %v2321 = vpop.f32.mrb[0].mxu0
    %v2322 = vadd.f32 0.0, %v2321
    %v2323 = vpop.f32.mrb[0].mxu0
    %v2324 = vadd.f32 0.0, %v2323
    %2325 = vdwg.mxu0
    %v2328 = vrot.slane %v2322, 2
    %v2329 = vrot.slane %v2324, 2
    %v2332 = vadd.f32 %v1318, %v2328
    %v2333 = vadd.f32 %v2060, %v2329
    %v2334 = vxor.u32 %v2332, 2147483648
    %v2335 = vxor.u32 %v2333, 2147483648
    %v2336 = vmul.f32 %v2334, 1.442695
    %v2337 = vpow.pop %v2336
    %v2338 = vmul.f32 %v2335, 1.442695
    %v2339 = vpow.pop %v2338
    %v2340 = vadd.f32 %v2337, 1.0
    %v2341 = vadd.f32 %v2339, 1.0
    %v2342 = vrcp.pop %v2340
    %v2343 = vmul.f32 1.0, %v2342
    %v2344 = vrcp.pop %v2341
    %v2345 = vmul.f32 1.0, %v2344
    %2347 = vrot.lane.b32.xlu0 %v2332, 64
    %v2348 = vpop.permute.xlu0 %2347
    %2351 = vrot.lane.b32.xlu0 %v2333, 96
    %v2352 = vpop.permute.xlu0 %2351
    %v2354 = vsel %vm251, %v2348, %v2352
    %v2355 = vtanh.pop %v2354
    %2357 = vrot.lane.b32.xlu0 %v2345, 32
    %v2358 = vpop.permute.xlu0 %2357
    %v2360 = vsel %vm251, %v2343, %v2358
    %2362 = vrot.lane.b32.xlu0 %v2343, 96
    %v2363 = vpop.permute.xlu0 %2362
    %v2365 = vsel %vm251, %v2363, %v2345
    %2366 = vrot.lane.b32.xlu0 %v2343, 32
    %v2367 = vpop.permute.xlu0 %2366
    %2369 = vrot.lane.b32.xlu0 %v2345, 64
    %v2370 = vpop.permute.xlu0 %2369
    %v2372 = vsel %vm251, %v2367, %v2370
    %v2374 = vrot.slane %v2246, 6
    %v2376 = vmul.f32 %v2365, %v2374
    %v2377 = vmul.f32 %v2360, %v2355
    %v2378 = vadd.f32 %v2376, %v2377
    %v2379 = vtanh.pop %v2378
    %v2380 = vmul.f32 %v2372, %v2379
    %2381 = vst.msk [vmem:[#allocation3 + $0x8] sm:$0xc0] %vm679, %v2380
    %2382 = vst.msk [vmem:[#allocation3 - $0x6] sm:$0xc0] %vm681, %v2380
    %v2383 = vld [vmem:[#allocation3 + $0x8] sm:$0xff]
    %v2384 = vld [vmem:[%s7] sm:$0xff]
    %v2385 = vld [vmem:[%s7 + $0x8] sm:$0xff]
    %v2386 = vld [vmem:[%s7 + $0x10] sm:$0xff]
    %v2387 = vld [vmem:[%s7 + $0x18] sm:$0xff]
    %v2388 = vld [vmem:[%s7 + $0x20] sm:$0xff]
    %v2389 = vld [vmem:[%s7 + $0x28] sm:$0xff]
    %v2390 = vld [vmem:[%s7 + $0x30] sm:$0xff]
    %v2391 = vld [vmem:[%s7 + $0x38] sm:$0xff]
    %v2392 = vld [vmem:[%s8] sm:$0x1]
    %v2394 = vlaneseq
    %v2395 = vshrl.u32 %v2394, 7
    %v2396 = vsub.s32 0, %v2395
    %v2397 = vrot.slane %v2392, %v2396
    %v2400 = vrot.slane %v2383, 6
    %v2401 = vsel %vm151, %v2400, 0
    %2403 = vmatprep.subr.mxu0 0.0
    %2404 = vmatpush1.msra.mxu0 %v2384
    %2405 = vmatprep.subr.mxu0 0.0
    %2406 = vmatpush1.msra.mxu0 %v2385
    %2407 = vmatprep.subr.mxu0 0.0
    %2408 = vmatpush1.msra.mxu0 %v2386
    %2409 = vmatprep.subr.mxu0 0.0
    %2410 = vmatpush1.msra.mxu0 %v2387
    %2411 = vmatprep.subr.mxu0 0.0
    %2412 = vmatpush1.msra.mxu0 %v2388
    %2413 = vmatprep.subr.mxu0 0.0
    %2414 = vmatpush1.msra.mxu0 %v2389
    %2415 = vmatprep.subr.mxu0 0.0
    %2416 = vmatpush1.msra.mxu0 %v2390
    %2417 = vmatprep.subr.mxu0 0.0
    %2418 = vmatpush1.msra.mxu0 %v2391
    %2419 = vmatprep.subr.mxu0 0.0
    %2420 = vmatpush1.msra.mxu0 0.0
    %2421 = vmatprep.subr.mxu0 0.0
    %2422 = vmatpush1.msra.mxu0 0.0
    %2423 = vmatprep.subr.mxu0 0.0
    %2424 = vmatpush1.msra.mxu0 0.0
    %2425 = vmatprep.subr.mxu0 0.0
    %2426 = vmatpush1.msra.mxu0 0.0
    %2427 = vmatprep.subr.mxu0 0.0
    %2428 = vmatpush1.msra.mxu0 0.0
    %2429 = vmatprep.subr.mxu0 0.0
    %2430 = vmatpush1.msra.mxu0 0.0
    %2431 = vmatprep.subr.mxu0 0.0
    %2432 = vmatpush1.msra.mxu0 0.0
    %2433 = vmatprep.subr.mxu0 0.0
    %2434 = vmatpush1.msra.mxu0 0.0
    %2435 = vmatprep.subr.mxu0 0.0
    %2436 = vmatpush1.msra.mxu0 0.0
    %2437 = vmatprep.subr.mxu0 0.0
    %2438 = vmatpush1.msra.mxu0 0.0
    %2439 = vmatprep.subr.mxu0 0.0
    %2440 = vmatpush1.msra.mxu0 0.0
    %2441 = vmatprep.subr.mxu0 0.0
    %2442 = vmatpush1.msra.mxu0 0.0
    %2443 = vmatprep.subr.mxu0 0.0
    %2444 = vmatpush1.msra.mxu0 0.0
    %2445 = vmatprep.subr.mxu0 0.0
    %2446 = vmatpush1.msra.mxu0 0.0
    %2447 = vmatprep.subr.mxu0 0.0
    %2448 = vmatpush1.msra.mxu0 0.0
    %2449 = vmatprep.subr.mxu0 0.0
    %2450 = vmatpush1.msra.mxu0 0.0
    %2451 = vmatprep.subr.mxu0 0.0
    %2452 = vmatpush1.msra.mxu0 0.0
    %2453 = vmatprep.subr.mxu0 0.0
    %2454 = vmatpush1.msra.mxu0 0.0
    %2455 = vmatprep.subr.mxu0 0.0
    %2456 = vmatpush1.msra.mxu0 0.0
    %2457 = vmatprep.subr.mxu0 0.0
    %2458 = vmatpush1.msra.mxu0 0.0
    %2459 = vmatprep.subr.mxu0 0.0
    %2460 = vmatpush1.msra.mxu0 0.0
    %2461 = vmatprep.subr.mxu0 0.0
    %2462 = vmatpush1.msra.mxu0 0.0
    %2463 = vmatprep.subr.mxu0 0.0
    %2464 = vmatpush1.msra.mxu0 0.0
    %2465 = vmatprep.subr.mxu0 0.0
    %2466 = vmatpush1.msra.mxu0 0.0
    %2467 = vmatprep.mubr.f32.mxu0 0.0
    %2468 = vmatmul.mubr.f32.gmra.mrb[0].mxu0 %v2401
    %v2469 = vpop.f32.mrb[0].mxu0
    %v2470 = vadd.f32 %v2397, %v2469
    %v2471 = vpop.f32.mrb[0].mxu0
    %2472 = vdwg.mxu0
    %vm2473 = vcmask 17408
    %2474 = vst.msk [vmem:[#allocation4] sm:$0x3] %vm2473, %v2470
    // Predicated region
    $region38: #{fall_detection_rnn_forward.1} parent=1 // pred_check
      _
    $region39: #{fall_detection_rnn_forward.1} parent=1 // pred_check_branch
      %2476 = sbr.rel (0) target = $region41
    $region40: #{fall_detection_rnn_forward.1} parent=1 // pred_region
      %s2478 = ssub.s32 32, 32
      %2479 = vsyncadd [#allocation5], %s2478
      %s2481 = sshll.u32 [#allocation4], 4
      %s2482 = int_to_ptr.vmem [resolvable:$true] %s2481
      %2484 = dma.vmem_to_hbm [thread:$0]  %s2482, 32, %s9, [#allocation5]
    $region41: #{fall_detection_rnn_forward.1} parent=1 // pred_fallthru
      _
    // Predicated region
    $region42: #{fall_detection_rnn_forward.1} parent=1 // pred_check
      _
    $region43: #{fall_detection_rnn_forward.1} parent=1 // pred_check_branch
      %2486 = sbr.rel (0) target = $region45
    $region44: #{fall_detection_rnn_forward.1} parent=1 // pred_region
      %2487 = dma.done [#allocation5], 32
    $region45: #{fall_detection_rnn_forward.1} parent=1 // pred_fallthru
      _
    %2488 = vsyncpa [#allocation5], 1

</llo_original>
